<compile_context>
chip_gen: v5e
topology: v5e:2x2
jax: 0.10.0
libtpu: 0.0.40
codegen_flags: <defaults>
</compile_context>

<pallas_src>
import jax
import jax.numpy as jnp
from jax.experimental import pallas as pl
from jax.experimental.pallas import tpu as pltpu

EMB = 128                      # embedding_dim (chosen small)
H0 = 768                       # hidden_dims[0]
HALF = H0 // 2                 # 384  (pos/neg processor width, attention embed_dim)
H1, H2, H3 = 384, 192, 96      # hidden_dims[1:]
NUM_HEADS = 8
HEAD_DIM = HALF // NUM_HEADS   # 48
BN_EPS = 1e-5
HEAD_PAD = 128                 # lane-dense width of the final head slab / output


def _round_up(x, m):
    return ((x + m - 1) // m) * m


def _cdiv(a, b):
    return (a + b - 1) // b


# Packed (1, N) parameter vector: name -> (lane offset, slice width used in-kernel).
# Every segment is stored at a 128-lane-aligned offset.
_VEC_SPEC = [
    ("b1p", HALF), ("s1p", HALF), ("t1p", HALF),
    ("b1n", HALF), ("s1n", HALF), ("t1n", HALF),
    ("bqkv", 3 * HALF), ("bo", HALF), ("bcombo", 2 * H1),
    ("sc1", H1), ("tc1", H1),
    ("bc2", H2), ("sc2", H2), ("tc2", H2),
    ("bc3", HEAD_PAD), ("sc3", HEAD_PAD), ("tc3", HEAD_PAD),
    ("bhead", HEAD_PAD),
]
VEC_LAYOUT = {}
_off = 0
for _name, _w in _VEC_SPEC:
    VEC_LAYOUT[_name] = (_off, _w)
    _off += _round_up(_w, 128)
VEC_W = _off  # 6656


def classifier_kernel(pos_ref, neg_ref,
                      w1p_ref, w1n_ref, wqkv_ref, wo_ref, wcombo_ref,
                      wc2_ref, wc3_ref, whead_ref, p_ref, pt_ref,
                      vec_ref, out_ref):
    f32 = jnp.float32
    bf16 = jnp.bfloat16
    TB = pos_ref.shape[0]

    def vec(name):
        off, width = VEC_LAYOUT[name]
        return vec_ref[:, off:off + width]            # (1, width) f32

    def mm(x, w):                                     # bf16 MXU matmul, f32 accumulation
        return jnp.dot(x.astype(bf16), w, preferred_element_type=f32)

    # --- pos / neg processors: Linear -> ReLU -> BatchNorm(eval, folded) [-> Dropout=id] ---
    pos_f = (jnp.maximum(mm(pos_ref[...], w1p_ref[...]) + vec("b1p"), 0.0)
             * vec("s1p") + vec("t1p"))
    neg_f = (jnp.maximum(mm(neg_ref[...], w1n_ref[...]) + vec("b1n"), 0.0)
             * vec("s1n") + vec("t1n"))

    # --- fused Q/K/V projection over the stacked [pos_f ; neg_f] rows (bf16 before concat) ---
    xf = jnp.concatenate([pos_f.astype(bf16), neg_f.astype(bf16)], axis=0)   # (2TB, 384)
    qkv = mm(xf, wqkv_ref[...]) + vec("bqkv")         # (2TB, 1152); q pre-scaled by 1/sqrt(hd)
    q, k, v = qkv[:, 0:HALF], qkv[:, HALF:2 * HALF], qkv[:, 2 * HALF:3 * HALF]
    q0, q1 = q[0:TB], q[TB:2 * TB]
    k0, k1 = k[0:TB], k[TB:2 * TB]
    v0, v1 = v[0:TB], v[TB:2 * TB]

    # multi-head self-attention over the length-2 sequence:
    # softmax over 2 keys == sigmoid of the per-head score difference.
    dk = k1 - k0                                      # hoisted, shared by both queries
    dv = v1 - v0
    Ppad = p_ref[...]        # (384, 128) bf16, P[d,h]=1 iff d//48==h (cols >= 8 are zero)
    PTpad = pt_ref[...]      # (128, 384) bf16

    s = jnp.concatenate([(q0 * dk).astype(bf16), (q1 * dk).astype(bf16)], axis=0)  # (2TB, 384)
    d = mm(s, Ppad)                                   # (2TB, 128): per-head (s1 - s0) in lanes 0:8
    e = jnp.exp(-jnp.abs(d))                          # numerically stable sigmoid, one exp
    r = pl.reciprocal(1.0 + e, approx=True)           # EUP
    w1 = jnp.where(d >= 0.0, r, e * r)                # softmax weight of key 1 (per head)
    wb = mm(w1, PTpad)                                # broadcast per-head weight to 384 lanes
    att0 = v0 + wb[0:TB] * dv
    att1 = v0 + wb[TB:2 * TB] * dv
    att = jnp.concatenate([att0.astype(bf16), att1.astype(bf16)], axis=0)          # (2TB, 384)

    proj = mm(att, wo_ref[...]) + vec("bo")           # single output projection
    attn0, attn1 = proj[0:TB], proj[TB:2 * TB]

    # combined = [attn0 | attn1];  wcombo = [wc1 | wch1]  ->  classifier + choice trunks at once
    cb = (mm(attn0, wcombo_ref[0:HALF, :])
          + mm(attn1, wcombo_ref[HALF:2 * HALF, :])
          + vec("bcombo"))                            # (TB, 768)
    c = jnp.maximum(cb[:, 0:H1], 0.0) * vec("sc1") + vec("tc1")
    g = jnp.maximum(cb[:, H1:2 * H1], 0.0)

    # classifier tail: (Linear -> ReLU -> BN) x2
    c = jnp.maximum(mm(c, wc2_ref[...]) + vec("bc2"), 0.0) * vec("sc2") + vec("tc2")  # (TB, 192)
    c = jnp.maximum(mm(c, wc3_ref[...]) + vec("bc3"), 0.0) * vec("sc3") + vec("tc3")  # (TB, 128)

    # merged head: lane-concat [c | g] -> (TB, 512), single stacked (512, 128) weight.
    # lane0 = binary logit, lane1 = z0-z1, lane2 = z1-z0 (choice logits)
    cg = jnp.concatenate([c.astype(bf16), g.astype(bf16)], axis=1)                    # (TB, 512)
    head = mm(cg, whead_ref[...]) + vec("bhead")                                      # (TB, 128)

    # numerically stable sigmoid; EXACT reciprocal so choice lanes sum to 1 to f32 rounding.
    e2 = jnp.exp(-jnp.abs(head))
    r2 = 1.0 / (1.0 + e2)
    out_ref[...] = jnp.where(head >= 0.0, r2, e2 * r2)


def _chip_config():
    kind = ""
    try:
        kind = jax.devices()[0].device_kind.lower()
    except Exception:
        pass
    if "v7" in kind or "7x" in kind:
        # v7x: 64 MiB VMEM per TensorCore, 2 TCs -> keep tiles modest, want >=2 grid steps.
        return {"tb_max": 512, "vmem": 48 * 1024 * 1024, "even_steps": True}
    # v5e / v6e: 128 MiB VMEM, single TC -> bigger tiles amortize per-step overhead.
    return {"tb_max": 1024, "vmem": 96 * 1024 * 1024, "even_steps": False}


def forward(pos, neg, params, *, tb=None, vmem_limit_bytes=None):
    B = pos.shape[0]
    cfg = _chip_config()
    tb_max = tb if tb is not None else cfg["tb_max"]
    vmem = vmem_limit_bytes if vmem_limit_bytes is not None else cfg["vmem"]

    # Adaptive, balanced tiling: minimal padded rows; on v7x force an even number of grid
    # steps (when possible) so both TensorCores get work under "parallel" sharding.
    Bp8 = _round_up(max(B, 8), 8)
    n_steps = _cdiv(Bp8, tb_max)
    if cfg["even_steps"] and Bp8 >= 16 and (n_steps % 2 == 1):
        n_steps += 1
    tb_eff = _round_up(_cdiv(Bp8, n_steps), 8)
    Bp = tb_eff * n_steps

    if Bp != B:
        pad = Bp - B
        pos = jnp.pad(pos, ((0, pad), (0, 0)))
        neg = jnp.pad(neg, ((0, pad), (0, 0)))

    weights = tuple(params)
    row_spec = lambda lanes: pl.BlockSpec((tb_eff, lanes), lambda i: (i, 0))
    const_spec = lambda arr: pl.BlockSpec(arr.shape, lambda i: (0, 0))

    slab = pl.pallas_call(
        classifier_kernel,
        out_shape=jax.ShapeDtypeStruct((Bp, HEAD_PAD), jnp.float32),
        grid=(Bp // tb_eff,),
        in_specs=[row_spec(EMB), row_spec(EMB)] + [const_spec(w) for w in weights],
        out_specs=row_spec(HEAD_PAD),
        compiler_params=pltpu.CompilerParams(
            dimension_semantics=("parallel",),
            vmem_limit_bytes=vmem),
    )(pos, neg, *weights)

    binary = slab[:B, 0:1]
    choice = slab[:B, 1:3]
    return binary, choice


forward_jit = jax.jit(forward, static_argnames=("tb", "vmem_limit_bytes"))


# ------------------------- parameter construction (deterministic) -------------------------
def build_params(key):
    kit = iter(jax.random.split(key, 64))

    def nrm(shape, scale=0.06):
        return (scale * jax.random.normal(next(kit), shape)).astype(jnp.float32)

    def bn(n):
        gamma = (1.0 + 0.1 * jax.random.normal(next(kit), (n,))).astype(jnp.float32)
        beta = (0.1 * jax.random.normal(next(kit), (n,))).astype(jnp.float32)
        mean = (0.1 * jax.random.normal(next(kit), (n,))).astype(jnp.float32)
        var = (0.5 + jax.random.uniform(next(kit), (n,))).astype(jnp.float32)
        s = gamma / jnp.sqrt(var + BN_EPS)
        t = beta - mean * s
        return s[None, :], t[None, :]

    p = {}
    p["w1p"], p["b1p"] = nrm((EMB, HALF)), nrm((1, HALF)); p["s1p"], p["t1p"] = bn(HALF)
    p["w1n"], p["b1n"] = nrm((EMB, HALF)), nrm((1, HALF)); p["s1n"], p["t1n"] = bn(HALF)
    for nm in ("q", "k", "v", "o"):
        p["w" + nm], p["b" + nm] = nrm((HALF, HALF)), nrm((1, HALF))
    p["wc1"], p["bc1"] = nrm((H0, H1)), nrm((1, H1)); p["sc1"], p["tc1"] = bn(H1)
    p["wc2"], p["bc2"] = nrm((H1, H2)), nrm((1, H2)); p["sc2"], p["tc2"] = bn(H2)
    p["wc3"], p["bc3"] = nrm((H2, H3)), nrm((1, H3)); p["sc3"], p["tc3"] = bn(H3)
    p["wc4"], p["bc4"] = nrm((H3, 1)), nrm((1, 1))
    p["wch1"], p["bch1"] = nrm((H0, H1)), nrm((1, H1))
    p["wch2"], p["bch2"] = nrm((H1, 2)), nrm((1, 2))

    # ----------------- pack / fuse for the kernel -----------------
    bf16 = jnp.bfloat16
    scale = 1.0 / (HEAD_DIM ** 0.5)
    # fold the attention scale into wq / bq (exact numerics, removes in-kernel multiply)
    wqkv = jnp.concatenate([p["wq"] * scale, p["wk"], p["wv"]], axis=1)   # (384, 1152)
    bqkv = jnp.concatenate([p["bq"] * scale, p["bk"], p["bv"]], axis=1)   # (1, 1152)
    wcombo = jnp.concatenate([p["wc1"], p["wch1"]], axis=1)               # (768, 768)
    wc3p = jnp.pad(p["wc3"], ((0, 0), (0, HEAD_PAD - H3)))                # (192, 128)

    # merged head weight: rows 0:128 act on c (H3 padded to 128), rows 128:512 act on g (384).
    wdiff = p["wch2"][:, 0] - p["wch2"][:, 1]
    whead = jnp.zeros((HEAD_PAD + H1, HEAD_PAD), jnp.float32)
    whead = whead.at[0:H3, 0].set(p["wc4"][:, 0])
    whead = whead.at[HEAD_PAD:, 1].set(wdiff)
    whead = whead.at[HEAD_PAD:, 2].set(-wdiff)                            # (512, 128)

    d_idx = jnp.arange(HALF)[:, None]
    h_idx = jnp.arange(HEAD_PAD)[None, :]
    Ppad = ((d_idx // HEAD_DIM) == h_idx).astype(jnp.float32)             # (384, 128), cols>=8 zero
    PTpad = Ppad.T                                                        # (128, 384)

    bdiff = p["bch2"][0, 0] - p["bch2"][0, 1]
    bhead = (jnp.zeros((1, HEAD_PAD), jnp.float32)
             .at[0, 0].set(p["bc4"][0, 0]).at[0, 1].set(bdiff).at[0, 2].set(-bdiff))

    def pad_to(arr, width):
        return jnp.pad(arr, ((0, 0), (0, width - arr.shape[1])))

    vec_values = {
        "b1p": p["b1p"], "s1p": p["s1p"], "t1p": p["t1p"],
        "b1n": p["b1n"], "s1n": p["s1n"], "t1n": p["t1n"],
        "bqkv": bqkv,
        "bo": p["bo"],
        "bcombo": jnp.concatenate([p["bc1"], p["bch1"]], axis=1),
        "sc1": p["sc1"], "tc1": p["tc1"],
        "bc2": p["bc2"], "sc2": p["sc2"], "tc2": p["tc2"],
        "bc3": pad_to(p["bc3"], HEAD_PAD),
        "sc3": pad_to(p["sc3"], HEAD_PAD),
        "tc3": pad_to(p["tc3"], HEAD_PAD),
        "bhead": bhead,
    }
    pieces = []
    for name, w in _VEC_SPEC:
        arr = vec_values[name]
        assert arr.shape == (1, w)
        sw = _round_up(w, 128)
        if sw != w:
            arr = pad_to(arr, sw)
        pieces.append(arr)
    vec = jnp.concatenate(pieces, axis=1).astype(jnp.float32)
    assert vec.shape == (1, VEC_W)

    packed = (p["w1p"].astype(bf16), p["w1n"].astype(bf16), wqkv.astype(bf16),
              p["wo"].astype(bf16), wcombo.astype(bf16), p["wc2"].astype(bf16),
              wc3p.astype(bf16), whead.astype(bf16),
              Ppad.astype(bf16), PTpad.astype(bf16), vec)
    return p, packed


# ------------------------- pure-JAX f32 reference (standard MHA math) -------------------------
def ref_forward(pos, neg, p):
    B = pos.shape[0]
    lin = lambda x, w, b: x @ w + b
    pos_f = jnp.maximum(lin(pos, p["w1p"], p["b1p"]), 0.0) * p["s1p"] + p["t1p"]
    neg_f = jnp.maximum(lin(neg, p["w1n"], p["b1n"]), 0.0) * p["s1n"] + p["t1n"]

    x = jnp.stack([pos_f, neg_f], axis=1)                      # (B, 2, HALF)
    q = x @ p["wq"] + p["bq"]
    k = x @ p["wk"] + p["bk"]
    v = x @ p["wv"] + p["bv"]
    to_h = lambda a: a.reshape(B, 2, NUM_HEADS, HEAD_DIM).transpose(0, 2, 1, 3)
    qh, kh, vh = to_h(q), to_h(k), to_h(v)
    scores = (qh @ kh.transpose(0, 1, 3, 2)) / jnp.sqrt(jnp.float32(HEAD_DIM))
    attn = jax.nn.softmax(scores, axis=-1)
    o = (attn @ vh).transpose(0, 2, 1, 3).reshape(B, 2, HALF)
    o = o @ p["wo"] + p["bo"]

    combined = jnp.concatenate([o[:, 0, :], o[:, 1, :]], axis=1)   # (B, 768)

    c = jnp.maximum(lin(combined, p["wc1"], p["bc1"]), 0.0) * p["sc1"] + p["tc1"]
    c = jnp.maximum(lin(c, p["wc2"], p["bc2"]), 0.0) * p["sc2"] + p["tc2"]
    c = jnp.maximum(lin(c, p["wc3"], p["bc3"]), 0.0) * p["sc3"] + p["tc3"]
    binary = jax.nn.sigmoid(lin(c, p["wc4"], p["bc4"]))

    g = jnp.maximum(lin(combined, p["wch1"], p["bch1"]), 0.0)
    choice = jax.nn.softmax(lin(g, p["wch2"], p["bch2"]), axis=1)
    return binary, choice


if __name__ == "__main__":
    B = 8
    key = jax.random.PRNGKey(0)
    k_pos, k_neg, k_par = jax.random.split(key, 3)
    pos = jax.random.normal(k_pos, (B, EMB), dtype=jnp.float32)
    neg = jax.random.normal(k_neg, (B, EMB), dtype=jnp.float32)
    pdict, packed = build_params(k_par)

    binary_out, choice_out = forward_jit(pos, neg, packed)
    jax.block_until_ready((binary_out, choice_out))

    ref_bin, ref_choice = ref_forward(pos, neg, pdict)
    assert binary_out.shape == (B, 1) and choice_out.shape == (B, 2)
    # tolerance relaxed vs an all-f32 version: bf16 matmul operands + approx reciprocal in attn
    assert jnp.allclose(binary_out, ref_bin, atol=1e-2, rtol=1e-2), \
        float(jnp.max(jnp.abs(binary_out - ref_bin)))
    assert jnp.allclose(choice_out, ref_choice, atol=1e-2, rtol=1e-2), \
        float(jnp.max(jnp.abs(choice_out - ref_choice)))
    assert jnp.allclose(jnp.sum(choice_out, axis=1), 1.0, atol=5e-3)
    print("KERNEL_OK")
</pallas_src>

<mosaic_0001>
module attributes {stable_mosaic.version = 11 : i64} {
  func.func @classifier_kernel(%arg0: i32, %arg1: memref<8x128xf32, #tpu.memory_space<vmem>>, %arg2: memref<8x128xf32, #tpu.memory_space<vmem>>, %arg3: memref<128x384xbf16, #tpu.memory_space<vmem>>, %arg4: memref<128x384xbf16, #tpu.memory_space<vmem>>, %arg5: memref<384x1152xbf16, #tpu.memory_space<vmem>>, %arg6: memref<384x384xbf16, #tpu.memory_space<vmem>>, %arg7: memref<768x768xbf16, #tpu.memory_space<vmem>>, %arg8: memref<384x192xbf16, #tpu.memory_space<vmem>>, %arg9: memref<192x128xbf16, #tpu.memory_space<vmem>>, %arg10: memref<512x128xbf16, #tpu.memory_space<vmem>>, %arg11: memref<384x128xbf16, #tpu.memory_space<vmem>>, %arg12: memref<128x384xbf16, #tpu.memory_space<vmem>>, %arg13: memref<1x6656xf32, #tpu.memory_space<vmem>>, %arg14: memref<8x128xf32, #tpu.memory_space<vmem>>) attributes {dimension_semantics = [#tpu.dimension_semantics<parallel>], iteration_bounds = array<i64: 1>, scalar_prefetch = 0 : i64, scratch_operands = 0 : i64, tpu.core_type = #tpu.core_type<tc>, window_params = [{transform_indices = @transform_0, window_bounds = array<i64: 8, 128>}, {transform_indices = @transform_1, window_bounds = array<i64: 8, 128>}, {pipeline_mode = #tpu.pipeline_mode<synchronous>, transform_indices = @transform_2, window_bounds = array<i64: 128, 384>}, {pipeline_mode = #tpu.pipeline_mode<synchronous>, transform_indices = @transform_3, window_bounds = array<i64: 128, 384>}, {pipeline_mode = #tpu.pipeline_mode<synchronous>, transform_indices = @transform_4, window_bounds = array<i64: 384, 1152>}, {pipeline_mode = #tpu.pipeline_mode<synchronous>, transform_indices = @transform_5, window_bounds = array<i64: 384, 384>}, {pipeline_mode = #tpu.pipeline_mode<synchronous>, transform_indices = @transform_6, window_bounds = array<i64: 768, 768>}, {pipeline_mode = #tpu.pipeline_mode<synchronous>, transform_indices = @transform_7, window_bounds = array<i64: 384, 192>}, {pipeline_mode = #tpu.pipeline_mode<synchronous>, transform_indices = @transform_8, window_bounds = array<i64: 192, 128>}, {pipeline_mode = #tpu.pipeline_mode<synchronous>, transform_indices = @transform_9, window_bounds = array<i64: 512, 128>}, {pipeline_mode = #tpu.pipeline_mode<synchronous>, transform_indices = @transform_10, window_bounds = array<i64: 384, 128>}, {pipeline_mode = #tpu.pipeline_mode<synchronous>, transform_indices = @transform_11, window_bounds = array<i64: 128, 384>}, {pipeline_mode = #tpu.pipeline_mode<synchronous>, transform_indices = @transform_12, window_bounds = array<i64: 1, 6656>}, {transform_indices = @transform_13, window_bounds = array<i64: 8, 128>}]} {
    %c0 = arith.constant 0 : index
    %c0_0 = arith.constant 0 : index
    %0 = vector.load %arg1[%c0, %c0_0] : memref<8x128xf32, #tpu.memory_space<vmem>>, vector<8x128xf32>
    %c0_1 = arith.constant 0 : index
    %c0_2 = arith.constant 0 : index
    %1 = vector.load %arg3[%c0_1, %c0_2] : memref<128x384xbf16, #tpu.memory_space<vmem>>, vector<128x384xbf16>
    %2 = arith.truncf %0 : vector<8x128xf32> to vector<8x128xbf16>
    %cst = arith.constant dense<0.000000e+00> : vector<8x384xf32>
    %3 = tpu.matmul %2, %1, %cst {dimension_numbers = #tpu.dot_dimension_numbers<[1], [0], [0], [1], [0, 0, 1, 1], [], []>} : vector<8x128xbf16>, vector<128x384xbf16>, vector<8x384xf32> -> vector<8x384xf32>
    %c0_3 = arith.constant 0 : index
    %c0_4 = arith.constant 0 : index
    %4 = vector.load %arg13[%c0_3, %c0_4] : memref<1x6656xf32, #tpu.memory_space<vmem>>, vector<1x384xf32>
    %5 = vector.broadcast %4 : vector<1x384xf32> to vector<8x384xf32>
    %6 = arith.addf %3, %5 : vector<8x384xf32>
    %cst_5 = arith.constant 0.000000e+00 : f32
    %7 = vector.broadcast %cst_5 : f32 to vector<8x384xf32>
    %8 = arith.maximumf %6, %7 : vector<8x384xf32>
    %c0_6 = arith.constant 0 : index
    %c384 = arith.constant 384 : index
    %9 = vector.load %arg13[%c0_6, %c384] : memref<1x6656xf32, #tpu.memory_space<vmem>>, vector<1x384xf32>
    %10 = vector.broadcast %9 : vector<1x384xf32> to vector<8x384xf32>
    %11 = arith.mulf %8, %10 : vector<8x384xf32>
    %c0_7 = arith.constant 0 : index
    %c768 = arith.constant 768 : index
    %12 = vector.load %arg13[%c0_7, %c768] : memref<1x6656xf32, #tpu.memory_space<vmem>>, vector<1x384xf32>
    %13 = vector.broadcast %12 : vector<1x384xf32> to vector<8x384xf32>
    %14 = arith.addf %11, %13 : vector<8x384xf32>
    %c0_8 = arith.constant 0 : index
    %c0_9 = arith.constant 0 : index
    %15 = vector.load %arg2[%c0_8, %c0_9] : memref<8x128xf32, #tpu.memory_space<vmem>>, vector<8x128xf32>
    %c0_10 = arith.constant 0 : index
    %c0_11 = arith.constant 0 : index
    %16 = vector.load %arg4[%c0_10, %c0_11] : memref<128x384xbf16, #tpu.memory_space<vmem>>, vector<128x384xbf16>
    %17 = arith.truncf %15 : vector<8x128xf32> to vector<8x128xbf16>
    %cst_12 = arith.constant dense<0.000000e+00> : vector<8x384xf32>
    %18 = tpu.matmul %17, %16, %cst_12 {dimension_numbers = #tpu.dot_dimension_numbers<[1], [0], [0], [1], [0, 0, 1, 1], [], []>} : vector<8x128xbf16>, vector<128x384xbf16>, vector<8x384xf32> -> vector<8x384xf32>
    %c0_13 = arith.constant 0 : index
    %c1152 = arith.constant 1152 : index
    %19 = vector.load %arg13[%c0_13, %c1152] : memref<1x6656xf32, #tpu.memory_space<vmem>>, vector<1x384xf32>
    %20 = vector.broadcast %19 : vector<1x384xf32> to vector<8x384xf32>
    %21 = arith.addf %18, %20 : vector<8x384xf32>
    %cst_14 = arith.constant 0.000000e+00 : f32
    %22 = vector.broadcast %cst_14 : f32 to vector<8x384xf32>
    %23 = arith.maximumf %21, %22 : vector<8x384xf32>
    %c0_15 = arith.constant 0 : index
    %c1536 = arith.constant 1536 : index
    %24 = vector.load %arg13[%c0_15, %c1536] : memref<1x6656xf32, #tpu.memory_space<vmem>>, vector<1x384xf32>
    %25 = vector.broadcast %24 : vector<1x384xf32> to vector<8x384xf32>
    %26 = arith.mulf %23, %25 : vector<8x384xf32>
    %c0_16 = arith.constant 0 : index
    %c1920 = arith.constant 1920 : index
    %27 = vector.load %arg13[%c0_16, %c1920] : memref<1x6656xf32, #tpu.memory_space<vmem>>, vector<1x384xf32>
    %28 = vector.broadcast %27 : vector<1x384xf32> to vector<8x384xf32>
    %29 = arith.addf %26, %28 : vector<8x384xf32>
    %30 = arith.truncf %14 : vector<8x384xf32> to vector<8x384xbf16>
    %31 = arith.truncf %29 : vector<8x384xf32> to vector<8x384xbf16>
    %32 = tpu.concatenate %30, %31 in 0 : vector<8x384xbf16>, vector<8x384xbf16> -> vector<16x384xbf16>
    %c0_17 = arith.constant 0 : index
    %c0_18 = arith.constant 0 : index
    %33 = vector.load %arg5[%c0_17, %c0_18] : memref<384x1152xbf16, #tpu.memory_space<vmem>>, vector<384x1152xbf16>
    %cst_19 = arith.constant dense<0.000000e+00> : vector<16x1152xf32>
    %34 = tpu.matmul %32, %33, %cst_19 {dimension_numbers = #tpu.dot_dimension_numbers<[1], [0], [0], [1], [0, 0, 1, 1], [], []>} : vector<16x384xbf16>, vector<384x1152xbf16>, vector<16x1152xf32> -> vector<16x1152xf32>
    %c0_20 = arith.constant 0 : index
    %c2304 = arith.constant 2304 : index
    %35 = vector.load %arg13[%c0_20, %c2304] : memref<1x6656xf32, #tpu.memory_space<vmem>>, vector<1x1152xf32>
    %36 = vector.broadcast %35 : vector<1x1152xf32> to vector<16x1152xf32>
    %37 = arith.addf %34, %36 : vector<16x1152xf32>
    %38 = vector.extract_strided_slice %37 {offsets = [0, 0], sizes = [16, 384], strides = [1, 1]} : vector<16x1152xf32> to vector<16x384xf32>
    %39 = vector.extract_strided_slice %37 {offsets = [0, 384], sizes = [16, 384], strides = [1, 1]} : vector<16x1152xf32> to vector<16x384xf32>
    %40 = vector.extract_strided_slice %37 {offsets = [0, 768], sizes = [16, 384], strides = [1, 1]} : vector<16x1152xf32> to vector<16x384xf32>
    %41 = vector.extract_strided_slice %38 {offsets = [0, 0], sizes = [8, 384], strides = [1, 1]} : vector<16x384xf32> to vector<8x384xf32>
    %42 = vector.extract_strided_slice %38 {offsets = [8, 0], sizes = [8, 384], strides = [1, 1]} : vector<16x384xf32> to vector<8x384xf32>
    %43 = vector.extract_strided_slice %39 {offsets = [0, 0], sizes = [8, 384], strides = [1, 1]} : vector<16x384xf32> to vector<8x384xf32>
    %44 = vector.extract_strided_slice %39 {offsets = [8, 0], sizes = [8, 384], strides = [1, 1]} : vector<16x384xf32> to vector<8x384xf32>
    %45 = vector.extract_strided_slice %40 {offsets = [0, 0], sizes = [8, 384], strides = [1, 1]} : vector<16x384xf32> to vector<8x384xf32>
    %46 = vector.extract_strided_slice %40 {offsets = [8, 0], sizes = [8, 384], strides = [1, 1]} : vector<16x384xf32> to vector<8x384xf32>
    %47 = arith.subf %44, %43 : vector<8x384xf32>
    %48 = arith.subf %46, %45 : vector<8x384xf32>
    %c0_21 = arith.constant 0 : index
    %c0_22 = arith.constant 0 : index
    %49 = vector.load %arg11[%c0_21, %c0_22] : memref<384x128xbf16, #tpu.memory_space<vmem>>, vector<384x128xbf16>
    %c0_23 = arith.constant 0 : index
    %c0_24 = arith.constant 0 : index
    %50 = vector.load %arg12[%c0_23, %c0_24] : memref<128x384xbf16, #tpu.memory_space<vmem>>, vector<128x384xbf16>
    %51 = arith.mulf %41, %47 : vector<8x384xf32>
    %52 = arith.truncf %51 : vector<8x384xf32> to vector<8x384xbf16>
    %53 = arith.mulf %42, %47 : vector<8x384xf32>
    %54 = arith.truncf %53 : vector<8x384xf32> to vector<8x384xbf16>
    %55 = tpu.concatenate %52, %54 in 0 : vector<8x384xbf16>, vector<8x384xbf16> -> vector<16x384xbf16>
    %cst_25 = arith.constant dense<0.000000e+00> : vector<16x128xf32>
    %56 = tpu.matmul %55, %49, %cst_25 {dimension_numbers = #tpu.dot_dimension_numbers<[1], [0], [0], [1], [0, 0, 1, 1], [], []>} : vector<16x384xbf16>, vector<384x128xbf16>, vector<16x128xf32> -> vector<16x128xf32>
    %57 = math.absf %56 : vector<16x128xf32>
    %cst_26 = arith.constant 0.000000e+00 : f32
    %58 = vector.broadcast %cst_26 : f32 to vector<16x128xf32>
    %59 = arith.subf %58, %57 : vector<16x128xf32>
    %60 = math.exp %59 : vector<16x128xf32>
    %cst_27 = arith.constant 1.000000e+00 : f32
    %61 = vector.broadcast %cst_27 : f32 to vector<16x128xf32>
    %62 = arith.addf %61, %60 : vector<16x128xf32>
    %63 = tpu.reciprocal %62 {approx = true} : vector<16x128xf32> -> vector<16x128xf32>
    %cst_28 = arith.constant 0.000000e+00 : f32
    %64 = vector.broadcast %cst_28 : f32 to vector<16x128xf32>
    %65 = arith.cmpf oge, %56, %64 : vector<16x128xf32>
    %66 = arith.mulf %60, %63 : vector<16x128xf32>
    %67 = arith.select %65, %63, %66 : vector<16x128xi1>, vector<16x128xf32>
    %68 = arith.truncf %67 : vector<16x128xf32> to vector<16x128xbf16>
    %cst_29 = arith.constant dense<0.000000e+00> : vector<16x384xf32>
    %69 = tpu.matmul %68, %50, %cst_29 {dimension_numbers = #tpu.dot_dimension_numbers<[1], [0], [0], [1], [0, 0, 1, 1], [], []>} : vector<16x128xbf16>, vector<128x384xbf16>, vector<16x384xf32> -> vector<16x384xf32>
    %70 = vector.extract_strided_slice %69 {offsets = [0, 0], sizes = [8, 384], strides = [1, 1]} : vector<16x384xf32> to vector<8x384xf32>
    %71 = arith.mulf %70, %48 : vector<8x384xf32>
    %72 = arith.addf %45, %71 : vector<8x384xf32>
    %73 = vector.extract_strided_slice %69 {offsets = [8, 0], sizes = [8, 384], strides = [1, 1]} : vector<16x384xf32> to vector<8x384xf32>
    %74 = arith.mulf %73, %48 : vector<8x384xf32>
    %75 = arith.addf %45, %74 : vector<8x384xf32>
    %76 = arith.truncf %72 : vector<8x384xf32> to vector<8x384xbf16>
    %77 = arith.truncf %75 : vector<8x384xf32> to vector<8x384xbf16>
    %78 = tpu.concatenate %76, %77 in 0 : vector<8x384xbf16>, vector<8x384xbf16> -> vector<16x384xbf16>
    %c0_30 = arith.constant 0 : index
    %c0_31 = arith.constant 0 : index
    %79 = vector.load %arg6[%c0_30, %c0_31] : memref<384x384xbf16, #tpu.memory_space<vmem>>, vector<384x384xbf16>
    %cst_32 = arith.constant dense<0.000000e+00> : vector<16x384xf32>
    %80 = tpu.matmul %78, %79, %cst_32 {dimension_numbers = #tpu.dot_dimension_numbers<[1], [0], [0], [1], [0, 0, 1, 1], [], []>} : vector<16x384xbf16>, vector<384x384xbf16>, vector<16x384xf32> -> vector<16x384xf32>
    %c0_33 = arith.constant 0 : index
    %c3456 = arith.constant 3456 : index
    %81 = vector.load %arg13[%c0_33, %c3456] : memref<1x6656xf32, #tpu.memory_space<vmem>>, vector<1x384xf32>
    %82 = vector.broadcast %81 : vector<1x384xf32> to vector<16x384xf32>
    %83 = arith.addf %80, %82 : vector<16x384xf32>
    %84 = vector.extract_strided_slice %83 {offsets = [0, 0], sizes = [8, 384], strides = [1, 1]} : vector<16x384xf32> to vector<8x384xf32>
    %85 = vector.extract_strided_slice %83 {offsets = [8, 0], sizes = [8, 384], strides = [1, 1]} : vector<16x384xf32> to vector<8x384xf32>
    %c0_34 = arith.constant 0 : index
    %c0_35 = arith.constant 0 : index
    %86 = vector.load %arg7[%c0_34, %c0_35] : memref<768x768xbf16, #tpu.memory_space<vmem>>, vector<384x768xbf16>
    %87 = arith.truncf %84 : vector<8x384xf32> to vector<8x384xbf16>
    %cst_36 = arith.constant dense<0.000000e+00> : vector<8x768xf32>
    %88 = tpu.matmul %87, %86, %cst_36 {dimension_numbers = #tpu.dot_dimension_numbers<[1], [0], [0], [1], [0, 0, 1, 1], [], []>} : vector<8x384xbf16>, vector<384x768xbf16>, vector<8x768xf32> -> vector<8x768xf32>
    %c384_37 = arith.constant 384 : index
    %c0_38 = arith.constant 0 : index
    %89 = vector.load %arg7[%c384_37, %c0_38] : memref<768x768xbf16, #tpu.memory_space<vmem>>, vector<384x768xbf16>
    %90 = arith.truncf %85 : vector<8x384xf32> to vector<8x384xbf16>
    %cst_39 = arith.constant dense<0.000000e+00> : vector<8x768xf32>
    %91 = tpu.matmul %90, %89, %cst_39 {dimension_numbers = #tpu.dot_dimension_numbers<[1], [0], [0], [1], [0, 0, 1, 1], [], []>} : vector<8x384xbf16>, vector<384x768xbf16>, vector<8x768xf32> -> vector<8x768xf32>
    %92 = arith.addf %88, %91 : vector<8x768xf32>
    %c0_40 = arith.constant 0 : index
    %c3840 = arith.constant 3840 : index
    %93 = vector.load %arg13[%c0_40, %c3840] : memref<1x6656xf32, #tpu.memory_space<vmem>>, vector<1x768xf32>
    %94 = vector.broadcast %93 : vector<1x768xf32> to vector<8x768xf32>
    %95 = arith.addf %92, %94 : vector<8x768xf32>
    %96 = vector.extract_strided_slice %95 {offsets = [0, 0], sizes = [8, 384], strides = [1, 1]} : vector<8x768xf32> to vector<8x384xf32>
    %cst_41 = arith.constant 0.000000e+00 : f32
    %97 = vector.broadcast %cst_41 : f32 to vector<8x384xf32>
    %98 = arith.maximumf %96, %97 : vector<8x384xf32>
    %c0_42 = arith.constant 0 : index
    %c4608 = arith.constant 4608 : index
    %99 = vector.load %arg13[%c0_42, %c4608] : memref<1x6656xf32, #tpu.memory_space<vmem>>, vector<1x384xf32>
    %100 = vector.broadcast %99 : vector<1x384xf32> to vector<8x384xf32>
    %101 = arith.mulf %98, %100 : vector<8x384xf32>
    %c0_43 = arith.constant 0 : index
    %c4992 = arith.constant 4992 : index
    %102 = vector.load %arg13[%c0_43, %c4992] : memref<1x6656xf32, #tpu.memory_space<vmem>>, vector<1x384xf32>
    %103 = vector.broadcast %102 : vector<1x384xf32> to vector<8x384xf32>
    %104 = arith.addf %101, %103 : vector<8x384xf32>
    %105 = vector.extract_strided_slice %95 {offsets = [0, 384], sizes = [8, 384], strides = [1, 1]} : vector<8x768xf32> to vector<8x384xf32>
    %cst_44 = arith.constant 0.000000e+00 : f32
    %106 = vector.broadcast %cst_44 : f32 to vector<8x384xf32>
    %107 = arith.maximumf %105, %106 : vector<8x384xf32>
    %c0_45 = arith.constant 0 : index
    %c0_46 = arith.constant 0 : index
    %108 = vector.load %arg8[%c0_45, %c0_46] : memref<384x192xbf16, #tpu.memory_space<vmem>>, vector<384x192xbf16>
    %109 = arith.truncf %104 : vector<8x384xf32> to vector<8x384xbf16>
    %cst_47 = arith.constant dense<0.000000e+00> : vector<8x192xf32>
    %110 = tpu.matmul %109, %108, %cst_47 {dimension_numbers = #tpu.dot_dimension_numbers<[1], [0], [0], [1], [0, 0, 1, 1], [], []>} : vector<8x384xbf16>, vector<384x192xbf16>, vector<8x192xf32> -> vector<8x192xf32>
    %c0_48 = arith.constant 0 : index
    %c5376 = arith.constant 5376 : index
    %111 = vector.load %arg13[%c0_48, %c5376] : memref<1x6656xf32, #tpu.memory_space<vmem>>, vector<1x192xf32>
    %112 = vector.broadcast %111 : vector<1x192xf32> to vector<8x192xf32>
    %113 = arith.addf %110, %112 : vector<8x192xf32>
    %cst_49 = arith.constant 0.000000e+00 : f32
    %114 = vector.broadcast %cst_49 : f32 to vector<8x192xf32>
    %115 = arith.maximumf %113, %114 : vector<8x192xf32>
    %c0_50 = arith.constant 0 : index
    %c5632 = arith.constant 5632 : index
    %116 = vector.load %arg13[%c0_50, %c5632] : memref<1x6656xf32, #tpu.memory_space<vmem>>, vector<1x192xf32>
    %117 = vector.broadcast %116 : vector<1x192xf32> to vector<8x192xf32>
    %118 = arith.mulf %115, %117 : vector<8x192xf32>
    %c0_51 = arith.constant 0 : index
    %c5888 = arith.constant 5888 : index
    %119 = vector.load %arg13[%c0_51, %c5888] : memref<1x6656xf32, #tpu.memory_space<vmem>>, vector<1x192xf32>
    %120 = vector.broadcast %119 : vector<1x192xf32> to vector<8x192xf32>
    %121 = arith.addf %118, %120 : vector<8x192xf32>
    %c0_52 = arith.constant 0 : index
    %c0_53 = arith.constant 0 : index
    %122 = vector.load %arg9[%c0_52, %c0_53] : memref<192x128xbf16, #tpu.memory_space<vmem>>, vector<192x128xbf16>
    %123 = arith.truncf %121 : vector<8x192xf32> to vector<8x192xbf16>
    %cst_54 = arith.constant dense<0.000000e+00> : vector<8x128xf32>
    %124 = tpu.matmul %123, %122, %cst_54 {dimension_numbers = #tpu.dot_dimension_numbers<[1], [0], [0], [1], [0, 0, 1, 1], [], []>} : vector<8x192xbf16>, vector<192x128xbf16>, vector<8x128xf32> -> vector<8x128xf32>
    %c0_55 = arith.constant 0 : index
    %c6144 = arith.constant 6144 : index
    %125 = vector.load %arg13[%c0_55, %c6144] : memref<1x6656xf32, #tpu.memory_space<vmem>>, vector<1x128xf32>
    %126 = vector.broadcast %125 : vector<1x128xf32> to vector<8x128xf32>
    %127 = arith.addf %124, %126 : vector<8x128xf32>
    %cst_56 = arith.constant 0.000000e+00 : f32
    %128 = vector.broadcast %cst_56 : f32 to vector<8x128xf32>
    %129 = arith.maximumf %127, %128 : vector<8x128xf32>
    %c0_57 = arith.constant 0 : index
    %c6272 = arith.constant 6272 : index
    %130 = vector.load %arg13[%c0_57, %c6272] : memref<1x6656xf32, #tpu.memory_space<vmem>>, vector<1x128xf32>
    %131 = vector.broadcast %130 : vector<1x128xf32> to vector<8x128xf32>
    %132 = arith.mulf %129, %131 : vector<8x128xf32>
    %c0_58 = arith.constant 0 : index
    %c6400 = arith.constant 6400 : index
    %133 = vector.load %arg13[%c0_58, %c6400] : memref<1x6656xf32, #tpu.memory_space<vmem>>, vector<1x128xf32>
    %134 = vector.broadcast %133 : vector<1x128xf32> to vector<8x128xf32>
    %135 = arith.addf %132, %134 : vector<8x128xf32>
    %136 = arith.truncf %135 : vector<8x128xf32> to vector<8x128xbf16>
    %137 = arith.truncf %107 : vector<8x384xf32> to vector<8x384xbf16>
    %138 = tpu.concatenate %136, %137 in 1 : vector<8x128xbf16>, vector<8x384xbf16> -> vector<8x512xbf16>
    %c0_59 = arith.constant 0 : index
    %c0_60 = arith.constant 0 : index
    %139 = vector.load %arg10[%c0_59, %c0_60] : memref<512x128xbf16, #tpu.memory_space<vmem>>, vector<512x128xbf16>
    %cst_61 = arith.constant dense<0.000000e+00> : vector<8x128xf32>
    %140 = tpu.matmul %138, %139, %cst_61 {dimension_numbers = #tpu.dot_dimension_numbers<[1], [0], [0], [1], [0, 0, 1, 1], [], []>} : vector<8x512xbf16>, vector<512x128xbf16>, vector<8x128xf32> -> vector<8x128xf32>
    %c0_62 = arith.constant 0 : index
    %c6528 = arith.constant 6528 : index
    %141 = vector.load %arg13[%c0_62, %c6528] : memref<1x6656xf32, #tpu.memory_space<vmem>>, vector<1x128xf32>
    %142 = vector.broadcast %141 : vector<1x128xf32> to vector<8x128xf32>
    %143 = arith.addf %140, %142 : vector<8x128xf32>
    %144 = math.absf %143 : vector<8x128xf32>
    %cst_63 = arith.constant 0.000000e+00 : f32
    %145 = vector.broadcast %cst_63 : f32 to vector<8x128xf32>
    %146 = arith.subf %145, %144 : vector<8x128xf32>
    %147 = math.exp %146 : vector<8x128xf32>
    %cst_64 = arith.constant 1.000000e+00 : f32
    %148 = vector.broadcast %cst_64 : f32 to vector<8x128xf32>
    %149 = arith.addf %148, %147 : vector<8x128xf32>
    %cst_65 = arith.constant 1.000000e+00 : f32
    %150 = vector.broadcast %cst_65 : f32 to vector<8x128xf32>
    %151 = arith.divf %150, %149 : vector<8x128xf32>
    %cst_66 = arith.constant 0.000000e+00 : f32
    %152 = vector.broadcast %cst_66 : f32 to vector<8x128xf32>
    %153 = arith.cmpf oge, %143, %152 : vector<8x128xf32>
    %154 = arith.mulf %147, %151 : vector<8x128xf32>
    %155 = arith.select %153, %151, %154 : vector<8x128xi1>, vector<8x128xf32>
    %c0_67 = arith.constant 0 : index
    %c0_68 = arith.constant 0 : index
    %156 = vector.load %arg14[%c0_67, %c0_68] : memref<8x128xf32, #tpu.memory_space<vmem>>, vector<8x128xf32>
    tpu.vector_store %arg14[%c0_67, %c0_68], %155 {strides = array<i32>} : memref<8x128xf32, #tpu.memory_space<vmem>>, vector<8x128xf32>,
    return
  }
  func.func @transform_0(%arg0: i32) -> (i32, i32) {
    %c0_i32 = arith.constant 0 : i32
    %c0_i32_0 = arith.constant 0 : i32
    return %arg0, %c0_i32 : i32, i32
  }
  func.func @transform_1(%arg0: i32) -> (i32, i32) {
    %c0_i32 = arith.constant 0 : i32
    %c0_i32_0 = arith.constant 0 : i32
    return %arg0, %c0_i32 : i32, i32
  }
  func.func @transform_2(%arg0: i32) -> (i32, i32) {
    %c0_i32 = arith.constant 0 : i32
    %c0_i32_0 = arith.constant 0 : i32
    %c0_i32_1 = arith.constant 0 : i32
    return %c0_i32, %c0_i32_0 : i32, i32
  }
  func.func @transform_3(%arg0: i32) -> (i32, i32) {
    %c0_i32 = arith.constant 0 : i32
    %c0_i32_0 = arith.constant 0 : i32
    %c0_i32_1 = arith.constant 0 : i32
    return %c0_i32, %c0_i32_0 : i32, i32
  }
  func.func @transform_4(%arg0: i32) -> (i32, i32) {
    %c0_i32 = arith.constant 0 : i32
    %c0_i32_0 = arith.constant 0 : i32
    %c0_i32_1 = arith.constant 0 : i32
    return %c0_i32, %c0_i32_0 : i32, i32
  }
  func.func @transform_5(%arg0: i32) -> (i32, i32) {
    %c0_i32 = arith.constant 0 : i32
    %c0_i32_0 = arith.constant 0 : i32
    %c0_i32_1 = arith.constant 0 : i32
    return %c0_i32, %c0_i32_0 : i32, i32
  }
  func.func @transform_6(%arg0: i32) -> (i32, i32) {
    %c0_i32 = arith.constant 0 : i32
    %c0_i32_0 = arith.constant 0 : i32
    %c0_i32_1 = arith.constant 0 : i32
    return %c0_i32, %c0_i32_0 : i32, i32
  }
  func.func @transform_7(%arg0: i32) -> (i32, i32) {
    %c0_i32 = arith.constant 0 : i32
    %c0_i32_0 = arith.constant 0 : i32
    %c0_i32_1 = arith.constant 0 : i32
    return %c0_i32, %c0_i32_0 : i32, i32
  }
  func.func @transform_8(%arg0: i32) -> (i32, i32) {
    %c0_i32 = arith.constant 0 : i32
    %c0_i32_0 = arith.constant 0 : i32
    %c0_i32_1 = arith.constant 0 : i32
    return %c0_i32, %c0_i32_0 : i32, i32
  }
  func.func @transform_9(%arg0: i32) -> (i32, i32) {
    %c0_i32 = arith.constant 0 : i32
    %c0_i32_0 = arith.constant 0 : i32
    %c0_i32_1 = arith.constant 0 : i32
    return %c0_i32, %c0_i32_0 : i32, i32
  }
  func.func @transform_10(%arg0: i32) -> (i32, i32) {
    %c0_i32 = arith.constant 0 : i32
    %c0_i32_0 = arith.constant 0 : i32
    %c0_i32_1 = arith.constant 0 : i32
    return %c0_i32, %c0_i32_0 : i32, i32
  }
  func.func @transform_11(%arg0: i32) -> (i32, i32) {
    %c0_i32 = arith.constant 0 : i32
    %c0_i32_0 = arith.constant 0 : i32
    %c0_i32_1 = arith.constant 0 : i32
    return %c0_i32, %c0_i32_0 : i32, i32
  }
  func.func @transform_12(%arg0: i32) -> (i32, i32) {
    %c0_i32 = arith.constant 0 : i32
    %c0_i32_0 = arith.constant 0 : i32
    %c0_i32_1 = arith.constant 0 : i32
    return %c0_i32, %c0_i32_0 : i32, i32
  }
  func.func @transform_13(%arg0: i32) -> (i32, i32) {
    %c0_i32 = arith.constant 0 : i32
    %c0_i32_0 = arith.constant 0 : i32
    return %arg0, %c0_i32 : i32, i32
  }
}

</mosaic_0001>

<llo_original>
// kernel: forward.1
$region0: #{forward.1}
  #allocation0 [shape = 'u32[]', space=smem, size = 0x4, offset = 0x4, fixed_abs, tag = 'smem constant byte address 0x4 - core index']
  #allocation1 [shape = 'u32[72,128]{1,0:T(1,128)}', space=vmem, size = 0x9000, scoped, tag = 'internal scratch']
  %s0 = inlined_call_operand.hbm [shape: f32[8,128], index: 0, kind: input, shape index: {}]
  %s1 = inlined_call_operand.hbm [shape: f32[8,128], index: 1, kind: input, shape index: {}]
  %s2 = inlined_call_operand.hbm [shape: bf16[128,384], index: 2, kind: input, shape index: {}]
  %s3 = inlined_call_operand.hbm [shape: bf16[128,384], index: 3, kind: input, shape index: {}]
  %s4 = inlined_call_operand.hbm [shape: bf16[384,1152], index: 4, kind: input, shape index: {}]
  %s5 = inlined_call_operand.hbm [shape: bf16[384,384], index: 5, kind: input, shape index: {}]
  %s6 = inlined_call_operand.hbm [shape: bf16[768,768], index: 6, kind: input, shape index: {}]
  %s7 = inlined_call_operand.vmem [shape: bf16[384,192], index: 7, kind: input, shape index: {}]
  %s8 = inlined_call_operand.hbm [shape: bf16[192,128], index: 8, kind: input, shape index: {}]
  %s9 = inlined_call_operand.hbm [shape: bf16[512,128], index: 9, kind: input, shape index: {}]
  %s10 = inlined_call_operand.hbm [shape: bf16[384,128], index: 10, kind: input, shape index: {}]
  %s11 = inlined_call_operand.hbm [shape: bf16[128,384], index: 11, kind: input, shape index: {}]
  %s12 = inlined_call_operand.hbm [shape: f32[1,6656], index: 12, kind: input, shape index: {}]
  %s13 = inlined_call_operand.vmem [shape: f32[8,128], index: 13, kind: output, shape index: {}]
  %s14 = sld [smem:[#allocation0]]
  $region110: #{forward.1} parent=0
    _
  %s16 = ssub.s32 1, %s14
  %s17 = scalar_select 0, %s16, %s14
  $region1: #{forward.1} parent=0
    #allocation2 [shape = 'u8[4096]{0}', space=vmem, size = 0x1000, scoped, tag = 'input window, operand 0, single buffered']
    #allocation3 [shape = 's32[1]{0}', space=sflag, size = 0x4, scoped, tag = 'scoped memory for forward.1']
    #allocation4 [shape = 'u8[4096]{0}', space=vmem, size = 0x1000, scoped, tag = 'input window, operand 1, single buffered']
    #allocation5 [shape = 's32[1]{0}', space=sflag, size = 0x4, scoped, tag = 'scoped memory for forward.1']
    #allocation6 [shape = 'u8[98304]{0}', space=vmem, size = 0x18000, scoped, tag = 'input window, operand 2, single buffered']
    #allocation7 [shape = 'u8[98304]{0}', space=vmem, size = 0x18000, scoped, tag = 'input window, operand 3, single buffered']
    #allocation8 [shape = 's32[1]{0}', space=sflag, size = 0x4, scoped, tag = 'scoped memory for forward.1']
    #allocation9 [shape = 'u8[884736]{0}', space=vmem, size = 0xd8000, scoped, tag = 'input window, operand 4, single buffered']
    #allocation10 [shape = 'u8[294912]{0}', space=vmem, size = 0x48000, scoped, tag = 'input window, operand 5, single buffered']
    #allocation11 [shape = 's32[1]{0}', space=sflag, size = 0x4, scoped, tag = 'scoped memory for forward.1']
    #allocation12 [shape = 'u8[1179648]{0}', space=vmem, size = 0x120000, scoped, tag = 'input window, operand 6, single buffered']
    #allocation13 [shape = 'u8[49152]{0}', space=vmem, size = 0xc000, scoped, tag = 'input window, operand 8, single buffered']
    #allocation14 [shape = 's32[1]{0}', space=sflag, size = 0x4, scoped, tag = 'scoped memory for forward.1']
    #allocation15 [shape = 'u8[131072]{0}', space=vmem, size = 0x20000, scoped, tag = 'input window, operand 9, single buffered']
    #allocation16 [shape = 'u8[98304]{0}', space=vmem, size = 0x18000, scoped, tag = 'input window, operand 10, single buffered']
    #allocation17 [shape = 's32[1]{0}', space=sflag, size = 0x4, scoped, tag = 'scoped memory for forward.1']
    #allocation18 [shape = 'u8[98304]{0}', space=vmem, size = 0x18000, scoped, tag = 'input window, operand 11, single buffered']
    #allocation19 [shape = 'u8[26624]{0}', space=vmem, size = 0x6800, scoped, tag = 'input window, operand 12, single buffered']
    #allocation20 [shape = 's32[1]{0}', space=sflag, size = 0x4, scoped, tag = 'scoped memory for forward.1']
    %18 = vsyncpa [#allocation3], 0
    %19 = vsyncpa [#allocation5], 0
    %20 = vsyncpa [#allocation8], 0
    %21 = vsyncpa [#allocation11], 0
    %22 = vsyncpa [#allocation14], 0
    %23 = vsyncpa [#allocation17], 0
    %24 = vsyncpa [#allocation20], 0
    // Predicated region
    $region2: #{forward.1} parent=1 // pred_check
      _
    $region3: #{forward.1} parent=1 // pred_check_branch
      %26 = sbr.rel (0) target = $region5
    $region4: #{forward.1} parent=1 // pred_region
      %28 = vsyncadd [#allocation3], 0
      %s30 = sshll.u32 %s0, 4
      %s31 = int_to_ptr.hbm [resolvable:$true] %s30
      %s32 = sshll.u32 [#allocation2], 4
      %s33 = int_to_ptr.vmem [resolvable:$true] %s32
      %35 = dma.hbm_to_vmem [thread:$0]  %s31, 128, %s33, [#allocation3]
    $region5: #{forward.1} parent=1 // pred_fallthru
      _
    // Predicated region
    $region6: #{forward.1} parent=1 // pred_check
      _
    $region7: #{forward.1} parent=1 // pred_check_branch
      %37 = sbr.rel (0) target = $region9
    $region8: #{forward.1} parent=1 // pred_region
      %39 = vsyncadd [#allocation5], 0
      %s41 = sshll.u32 %s1, 4
      %s42 = int_to_ptr.hbm [resolvable:$true] %s41
      %s43 = sshll.u32 [#allocation4], 4
      %s44 = int_to_ptr.vmem [resolvable:$true] %s43
      %46 = dma.hbm_to_vmem [thread:$0]  %s42, 128, %s44, [#allocation5]
    $region9: #{forward.1} parent=1 // pred_fallthru
      _
    // Predicated region
    $region10: #{forward.1} parent=1 // pred_check
      _
    $region11: #{forward.1} parent=1 // pred_check_branch
      %48 = sbr.rel (0) target = $region13
    $region12: #{forward.1} parent=1 // pred_region
      %50 = vsyncadd [#allocation5], 0
      %s51 = sshll.u32 %s2, 4
      %s52 = int_to_ptr.hbm [resolvable:$true] %s51
      %s53 = sshll.u32 [#allocation6], 4
      %s54 = int_to_ptr.vmem [resolvable:$true] %s53
      %59 = dma.hbm_to_vmem [thread:$0]  %s52, 3072, %s54, [#allocation5], 192, 192, 12
    $region13: #{forward.1} parent=1 // pred_fallthru
      _
    // Predicated region
    $region14: #{forward.1} parent=1 // pred_check
      _
    $region15: #{forward.1} parent=1 // pred_check_branch
      %61 = sbr.rel (0) target = $region17
    $region16: #{forward.1} parent=1 // pred_region
      %63 = vsyncadd [#allocation8], 0
      %s64 = sshll.u32 %s3, 4
      %s65 = int_to_ptr.hbm [resolvable:$true] %s64
      %s66 = sshll.u32 [#allocation7], 4
      %s67 = int_to_ptr.vmem [resolvable:$true] %s66
      %72 = dma.hbm_to_vmem [thread:$0]  %s65, 3072, %s67, [#allocation8], 192, 192, 12
    $region17: #{forward.1} parent=1 // pred_fallthru
      _
    // Predicated region
    $region18: #{forward.1} parent=1 // pred_check
      _
    $region19: #{forward.1} parent=1 // pred_check_branch
      %74 = sbr.rel (0) target = $region21
    $region20: #{forward.1} parent=1 // pred_region
      %76 = vsyncadd [#allocation8], 0
      %s77 = sshll.u32 %s4, 4
      %s78 = int_to_ptr.hbm [resolvable:$true] %s77
      %s79 = sshll.u32 [#allocation9], 4
      %s80 = int_to_ptr.vmem [resolvable:$true] %s79
      %85 = dma.hbm_to_vmem [thread:$0]  %s78, 27648, %s80, [#allocation8], 576, 576, 36
    $region21: #{forward.1} parent=1 // pred_fallthru
      _
    // Predicated region
    $region22: #{forward.1} parent=1 // pred_check
      _
    $region23: #{forward.1} parent=1 // pred_check_branch
      %87 = sbr.rel (0) target = $region25
    $region24: #{forward.1} parent=1 // pred_region
      %89 = vsyncadd [#allocation11], 0
      %s90 = sshll.u32 %s5, 4
      %s91 = int_to_ptr.hbm [resolvable:$true] %s90
      %s92 = sshll.u32 [#allocation10], 4
      %s93 = int_to_ptr.vmem [resolvable:$true] %s92
      %98 = dma.hbm_to_vmem [thread:$0]  %s91, 9216, %s93, [#allocation11], 192, 192, 12
    $region25: #{forward.1} parent=1 // pred_fallthru
      _
    // Predicated region
    $region26: #{forward.1} parent=1 // pred_check
      _
    $region27: #{forward.1} parent=1 // pred_check_branch
      %100 = sbr.rel (0) target = $region29
    $region28: #{forward.1} parent=1 // pred_region
      %102 = vsyncadd [#allocation11], 0
      %s103 = sshll.u32 %s6, 4
      %s104 = int_to_ptr.hbm [resolvable:$true] %s103
      %s105 = sshll.u32 [#allocation12], 4
      %s106 = int_to_ptr.vmem [resolvable:$true] %s105
      %111 = dma.hbm_to_vmem [thread:$0]  %s104, 36864, %s106, [#allocation11], 384, 384, 24
    $region29: #{forward.1} parent=1 // pred_fallthru
      _
    // Predicated region
    $region30: #{forward.1} parent=1 // pred_check
      _
    $region31: #{forward.1} parent=1 // pred_check_branch
      %113 = sbr.rel (0) target = $region33
    $region32: #{forward.1} parent=1 // pred_region
      _
    $region33: #{forward.1} parent=1 // pred_fallthru
      _
    // Predicated region
    $region34: #{forward.1} parent=1 // pred_check
      _
    $region35: #{forward.1} parent=1 // pred_check_branch
      %115 = sbr.rel (0) target = $region37
    $region36: #{forward.1} parent=1 // pred_region
      %117 = vsyncadd [#allocation14], 0
      %s118 = sshll.u32 %s8, 4
      %s119 = int_to_ptr.hbm [resolvable:$true] %s118
      %s120 = sshll.u32 [#allocation13], 4
      %s121 = int_to_ptr.vmem [resolvable:$true] %s120
      %126 = dma.hbm_to_vmem [thread:$0]  %s119, 1536, %s121, [#allocation14], 64, 64, 4
    $region37: #{forward.1} parent=1 // pred_fallthru
      _
    // Predicated region
    $region38: #{forward.1} parent=1 // pred_check
      _
    $region39: #{forward.1} parent=1 // pred_check_branch
      %128 = sbr.rel (0) target = $region41
    $region40: #{forward.1} parent=1 // pred_region
      %130 = vsyncadd [#allocation14], 0
      %s131 = sshll.u32 %s9, 4
      %s132 = int_to_ptr.hbm [resolvable:$true] %s131
      %s133 = sshll.u32 [#allocation15], 4
      %s134 = int_to_ptr.vmem [resolvable:$true] %s133
      %139 = dma.hbm_to_vmem [thread:$0]  %s132, 4096, %s134, [#allocation14], 64, 64, 4
    $region41: #{forward.1} parent=1 // pred_fallthru
      _
    // Predicated region
    $region42: #{forward.1} parent=1 // pred_check
      _
    $region43: #{forward.1} parent=1 // pred_check_branch
      %141 = sbr.rel (0) target = $region45
    $region44: #{forward.1} parent=1 // pred_region
      %143 = vsyncadd [#allocation17], 0
      %s144 = sshll.u32 %s10, 4
      %s145 = int_to_ptr.hbm [resolvable:$true] %s144
      %s146 = sshll.u32 [#allocation16], 4
      %s147 = int_to_ptr.vmem [resolvable:$true] %s146
      %152 = dma.hbm_to_vmem [thread:$0]  %s145, 3072, %s147, [#allocation17], 64, 64, 4
    $region45: #{forward.1} parent=1 // pred_fallthru
      _
    // Predicated region
    $region46: #{forward.1} parent=1 // pred_check
      _
    $region47: #{forward.1} parent=1 // pred_check_branch
      %154 = sbr.rel (0) target = $region49
    $region48: #{forward.1} parent=1 // pred_region
      %156 = vsyncadd [#allocation17], 0
      %s157 = sshll.u32 %s11, 4
      %s158 = int_to_ptr.hbm [resolvable:$true] %s157
      %s159 = sshll.u32 [#allocation18], 4
      %s160 = int_to_ptr.vmem [resolvable:$true] %s159
      %165 = dma.hbm_to_vmem [thread:$0]  %s158, 3072, %s160, [#allocation17], 192, 192, 12
    $region49: #{forward.1} parent=1 // pred_fallthru
      _
    // Predicated region
    $region50: #{forward.1} parent=1 // pred_check
      _
    $region51: #{forward.1} parent=1 // pred_check_branch
      %167 = sbr.rel (0) target = $region53
    $region52: #{forward.1} parent=1 // pred_region
      %169 = vsyncadd [#allocation20], 0
      %s171 = sshll.u32 %s12, 4
      %s172 = int_to_ptr.hbm [resolvable:$true] %s171
      %s173 = sshll.u32 [#allocation19], 4
      %s174 = int_to_ptr.vmem [resolvable:$true] %s173
      %176 = dma.hbm_to_vmem [thread:$0]  %s172, 832, %s174, [#allocation20]
    $region53: #{forward.1} parent=1 // pred_fallthru
      _
    // Predicated region
    $region54: #{forward.1} parent=1 // pred_check
      _
    $region55: #{forward.1} parent=1 // pred_check_branch
      %178 = sbr.rel (0) target = $region57
    $region56: #{forward.1} parent=1 // pred_region
      %180 = dma.done [#allocation3], 128
    $region57: #{forward.1} parent=1 // pred_fallthru
      _
    // Predicated region
    $region58: #{forward.1} parent=1 // pred_check
      _
    $region59: #{forward.1} parent=1 // pred_check_branch
      %182 = sbr.rel (0) target = $region61
    $region60: #{forward.1} parent=1 // pred_region
      %184 = dma.done [#allocation5], 128
    $region61: #{forward.1} parent=1 // pred_fallthru
      _
    // Predicated region
    $region62: #{forward.1} parent=1 // pred_check
      _
    $region63: #{forward.1} parent=1 // pred_check_branch
      %186 = sbr.rel (0) target = $region65
    $region64: #{forward.1} parent=1 // pred_region
      %188 = dma.done [#allocation5], 3072
    $region65: #{forward.1} parent=1 // pred_fallthru
      _
    // Predicated region
    $region66: #{forward.1} parent=1 // pred_check
      _
    $region67: #{forward.1} parent=1 // pred_check_branch
      %190 = sbr.rel (0) target = $region69
    $region68: #{forward.1} parent=1 // pred_region
      %192 = dma.done [#allocation8], 3072
    $region69: #{forward.1} parent=1 // pred_fallthru
      _
    // Predicated region
    $region70: #{forward.1} parent=1 // pred_check
      _
    $region71: #{forward.1} parent=1 // pred_check_branch
      %194 = sbr.rel (0) target = $region73
    $region72: #{forward.1} parent=1 // pred_region
      %196 = dma.done [#allocation8], 27648
    $region73: #{forward.1} parent=1 // pred_fallthru
      _
    // Predicated region
    $region74: #{forward.1} parent=1 // pred_check
      _
    $region75: #{forward.1} parent=1 // pred_check_branch
      %198 = sbr.rel (0) target = $region77
    $region76: #{forward.1} parent=1 // pred_region
      %200 = dma.done [#allocation11], 9216
    $region77: #{forward.1} parent=1 // pred_fallthru
      _
    // Predicated region
    $region78: #{forward.1} parent=1 // pred_check
      _
    $region79: #{forward.1} parent=1 // pred_check_branch
      %202 = sbr.rel (0) target = $region81
    $region80: #{forward.1} parent=1 // pred_region
      %204 = dma.done [#allocation11], 36864
    $region81: #{forward.1} parent=1 // pred_fallthru
      _
    // Predicated region
    $region82: #{forward.1} parent=1 // pred_check
      _
    $region83: #{forward.1} parent=1 // pred_check_branch
      %206 = sbr.rel (0) target = $region85
    $region84: #{forward.1} parent=1 // pred_region
      %208 = dma.done [#allocation14], 1536
    $region85: #{forward.1} parent=1 // pred_fallthru
      _
    // Predicated region
    $region86: #{forward.1} parent=1 // pred_check
      _
    $region87: #{forward.1} parent=1 // pred_check_branch
      %210 = sbr.rel (0) target = $region89
    $region88: #{forward.1} parent=1 // pred_region
      %212 = dma.done [#allocation14], 4096
    $region89: #{forward.1} parent=1 // pred_fallthru
      _
    // Predicated region
    $region90: #{forward.1} parent=1 // pred_check
      _
    $region91: #{forward.1} parent=1 // pred_check_branch
      %214 = sbr.rel (0) target = $region93
    $region92: #{forward.1} parent=1 // pred_region
      %216 = dma.done [#allocation17], 3072
    $region93: #{forward.1} parent=1 // pred_fallthru
      _
    // Predicated region
    $region94: #{forward.1} parent=1 // pred_check
      _
    $region95: #{forward.1} parent=1 // pred_check_branch
      %218 = sbr.rel (0) target = $region97
    $region96: #{forward.1} parent=1 // pred_region
      %220 = dma.done [#allocation17], 3072
    $region97: #{forward.1} parent=1 // pred_fallthru
      _
    // Predicated region
    $region98: #{forward.1} parent=1 // pred_check
      _
    $region99: #{forward.1} parent=1 // pred_check_branch
      %222 = sbr.rel (0) target = $region101
    $region100: #{forward.1} parent=1 // pred_region
      %224 = dma.done [#allocation20], 832
    $region101: #{forward.1} parent=1 // pred_fallthru
      _
    %v226 = vld [vmem:[#allocation2] sm:$0xff]
    %v227 = vld [vmem:[#allocation6] sm:$0xff]
    %v228 = vld [vmem:[#allocation6 + $0x8] sm:$0xf]
    %v229 = vld [vmem:[#allocation6 + $0xc] sm:$0xff]
    %v230 = vld [vmem:[#allocation6 + $0x14] sm:$0xf]
    %v231 = vld [vmem:[#allocation6 + $0x18] sm:$0xff]
    %v232 = vld [vmem:[#allocation6 + $0x20] sm:$0xf]
    %v233 = vld [vmem:[#allocation6 + $0x24] sm:$0xff]
    %v234 = vld [vmem:[#allocation6 + $0x2c] sm:$0xf]
    %v235 = vld [vmem:[#allocation6 + $0x30] sm:$0xff]
    %v236 = vld [vmem:[#allocation6 + $0x38] sm:$0xf]
    %v237 = vld [vmem:[#allocation6 + $0x3c] sm:$0xff]
    %v238 = vld [vmem:[#allocation6 + $0x44] sm:$0xf]
    %v239 = vld [vmem:[#allocation6 + $0x48] sm:$0xff]
    %v240 = vld [vmem:[#allocation6 + $0x50] sm:$0xf]
    %v241 = vld [vmem:[#allocation6 + $0x54] sm:$0xff]
    %v242 = vld [vmem:[#allocation6 + $0x5c] sm:$0xf]
    %v243 = vld [vmem:[#allocation6 + $0x60] sm:$0xff]
    %v244 = vld [vmem:[#allocation6 + $0x68] sm:$0xf]
    %v245 = vld [vmem:[#allocation6 + $0x6c] sm:$0xff]
    %v246 = vld [vmem:[#allocation6 + $0x74] sm:$0xf]
    %v247 = vld [vmem:[#allocation6 + $0x78] sm:$0xff]
    %v248 = vld [vmem:[#allocation6 + $0x80] sm:$0xf]
    %v249 = vld [vmem:[#allocation6 + $0x84] sm:$0xff]
    %v250 = vld [vmem:[#allocation6 + $0x8c] sm:$0xf]
    %v251 = vld [vmem:[#allocation6 + $0x90] sm:$0xff]
    %v252 = vld [vmem:[#allocation6 + $0x98] sm:$0xf]
    %v253 = vld [vmem:[#allocation6 + $0x9c] sm:$0xff]
    %v254 = vld [vmem:[#allocation6 + $0xa4] sm:$0xf]
    %v255 = vld [vmem:[#allocation6 + $0xa8] sm:$0xff]
    %v256 = vld [vmem:[#allocation6 + $0xb0] sm:$0xf]
    %v257 = vld [vmem:[#allocation6 + $0xb4] sm:$0xff]
    %v258 = vld [vmem:[#allocation6 + $0xbc] sm:$0xf]
    %v259 = vpack.c.bf16 %v226, %v226
    %v260 = vld [vmem:[#allocation19] sm:$0x7]
    %v262 = vperm.slane %v260, 0
    %v263 = vperm.slane %v260, 1
    %v264 = vperm.slane %v260, 2
    %v300 = vunpack.c.l.b16 %v227
    %v301 = vunpack.c.h.b16 %v227
    %v302 = vunpack.c.l.b16 %v228
    %v303 = vunpack.c.l.b16 %v229
    %v304 = vunpack.c.h.b16 %v229
    %v305 = vunpack.c.l.b16 %v230
    %v306 = vunpack.c.l.b16 %v231
    %v307 = vunpack.c.h.b16 %v231
    %v308 = vunpack.c.l.b16 %v232
    %v309 = vunpack.c.l.b16 %v233
    %v310 = vunpack.c.h.b16 %v233
    %v311 = vunpack.c.l.b16 %v234
    %v312 = vunpack.c.l.b16 %v235
    %v313 = vunpack.c.h.b16 %v235
    %v314 = vunpack.c.l.b16 %v236
    %v315 = vunpack.c.l.b16 %v237
    %v316 = vunpack.c.h.b16 %v237
    %v317 = vunpack.c.l.b16 %v238
    %v318 = vunpack.c.l.b16 %v239
    %v319 = vunpack.c.h.b16 %v239
    %v320 = vunpack.c.l.b16 %v240
    %v321 = vunpack.c.l.b16 %v241
    %v322 = vunpack.c.h.b16 %v241
    %v323 = vunpack.c.l.b16 %v242
    %v324 = vunpack.c.l.b16 %v243
    %v325 = vunpack.c.h.b16 %v243
    %v326 = vunpack.c.l.b16 %v244
    %v327 = vunpack.c.l.b16 %v245
    %v328 = vunpack.c.h.b16 %v245
    %v329 = vunpack.c.l.b16 %v246
    %v330 = vunpack.c.l.b16 %v247
    %v331 = vunpack.c.h.b16 %v247
    %v332 = vunpack.c.l.b16 %v248
    %v333 = vunpack.c.l.b16 %v249
    %v334 = vunpack.c.h.b16 %v249
    %v335 = vunpack.c.l.b16 %v250
    %v336 = vunpack.c.l.b16 %v251
    %v337 = vunpack.c.h.b16 %v251
    %v338 = vunpack.c.l.b16 %v252
    %v339 = vunpack.c.l.b16 %v253
    %v340 = vunpack.c.h.b16 %v253
    %v341 = vunpack.c.l.b16 %v254
    %v342 = vunpack.c.l.b16 %v255
    %v343 = vunpack.c.h.b16 %v255
    %v344 = vunpack.c.l.b16 %v256
    %v345 = vunpack.c.l.b16 %v257
    %v346 = vunpack.c.h.b16 %v257
    %v347 = vunpack.c.l.b16 %v258
    %v348 = vpack.c.b16 %v303, %v300
    %v349 = vpack.c.b16 %v304, %v301
    %v350 = vpack.c.b16 %v305, %v302
    %v351 = vpack.c.b16 %v309, %v306
    %v352 = vpack.c.b16 %v310, %v307
    %v353 = vpack.c.b16 %v311, %v308
    %v354 = vpack.c.b16 %v315, %v312
    %v355 = vpack.c.b16 %v316, %v313
    %v356 = vpack.c.b16 %v317, %v314
    %v357 = vpack.c.b16 %v321, %v318
    %v358 = vpack.c.b16 %v322, %v319
    %v359 = vpack.c.b16 %v323, %v320
    %v360 = vpack.c.b16 %v327, %v324
    %v361 = vpack.c.b16 %v328, %v325
    %v362 = vpack.c.b16 %v329, %v326
    %v363 = vpack.c.b16 %v333, %v330
    %v364 = vpack.c.b16 %v334, %v331
    %v365 = vpack.c.b16 %v335, %v332
    %v366 = vpack.c.b16 %v339, %v336
    %v367 = vpack.c.b16 %v340, %v337
    %v368 = vpack.c.b16 %v341, %v338
    %v369 = vpack.c.b16 %v345, %v342
    %v370 = vpack.c.b16 %v346, %v343
    %v371 = vpack.c.b16 %v347, %v344
    %396 = vmatpush.bf16.msra.mxu0 %v369
    %397 = vmatpush.bf16.msra.mxu0 %v366
    %398 = vmatpush.bf16.msra.mxu0 %v363
    %399 = vmatpush.bf16.msra.mxu0 %v360
    %400 = vmatpush.bf16.msra.mxu0 %v357
    %401 = vmatpush.bf16.msra.mxu0 %v354
    %402 = vmatpush.bf16.msra.mxu0 %v351
    %403 = vmatpush.bf16.msra.mxu0 %v348
    %404 = vmatmul.bf16.gmra.mxu0 %v259
    %v405 = vpop.f32.mrf.mxu0
    %v406 = vadd.f32 %v262, %v405
    %v407 = vpop.f32.mrf.mxu0
    %408 = vdwg.mxu0
    %409 = vmatpush.bf16.msra.mxu0 %v370
    %410 = vmatpush.bf16.msra.mxu0 %v367
    %411 = vmatpush.bf16.msra.mxu0 %v364
    %412 = vmatpush.bf16.msra.mxu0 %v361
    %413 = vmatpush.bf16.msra.mxu0 %v358
    %414 = vmatpush.bf16.msra.mxu0 %v355
    %415 = vmatpush.bf16.msra.mxu0 %v352
    %416 = vmatpush.bf16.msra.mxu0 %v349
    %417 = vmatmul.bf16.gmra.mxu0 %v259
    %v418 = vpop.f32.mrf.mxu0
    %v419 = vadd.f32 %v263, %v418
    %v420 = vpop.f32.mrf.mxu0
    %421 = vdwg.mxu0
    %422 = vmatpush.bf16.msra.mxu0 %v371
    %423 = vmatpush.bf16.msra.mxu0 %v368
    %424 = vmatpush.bf16.msra.mxu0 %v365
    %425 = vmatpush.bf16.msra.mxu0 %v362
    %426 = vmatpush.bf16.msra.mxu0 %v359
    %427 = vmatpush.bf16.msra.mxu0 %v356
    %428 = vmatpush.bf16.msra.mxu0 %v353
    %429 = vmatpush.bf16.msra.mxu0 %v350
    %430 = vmatmul.bf16.gmra.mxu0 %v259
    %v431 = vpop.f32.mrf.mxu0
    %v432 = vadd.f32 %v264, %v431
    %v433 = vpop.f32.mrf.mxu0
    %434 = vdwg.mxu0
    %v435 = vmax.f32 %v406, 0.0
    %v436 = vmax.f32 %v419, 0.0
    %v437 = vmax.f32 %v432, 0.0
    %v438 = vld [vmem:[#allocation19 + $0x3] sm:$0x7]
    %v440 = vperm.slane %v438, 0
    %v441 = vperm.slane %v438, 1
    %v442 = vperm.slane %v438, 2
    %v446 = vmul.f32 %v435, %v440
    %v447 = vmul.f32 %v436, %v441
    %v448 = vmul.f32 %v437, %v442
    %v449 = vld [vmem:[#allocation19 + $0x6] sm:$0x7]
    %v451 = vperm.slane %v449, 0
    %v452 = vperm.slane %v449, 1
    %v453 = vperm.slane %v449, 2
    %v457 = vadd.f32 %v446, %v451
    %v458 = vadd.f32 %v447, %v452
    %v459 = vadd.f32 %v448, %v453
    %v460 = vld [vmem:[#allocation4] sm:$0xff]
    %v461 = vld [vmem:[#allocation7] sm:$0xff]
    %v462 = vld [vmem:[#allocation7 + $0x8] sm:$0xf]
    %v463 = vld [vmem:[#allocation7 + $0xc] sm:$0xff]
    %v464 = vld [vmem:[#allocation7 + $0x14] sm:$0xf]
    %v465 = vld [vmem:[#allocation7 + $0x18] sm:$0xff]
    %v466 = vld [vmem:[#allocation7 + $0x20] sm:$0xf]
    %v467 = vld [vmem:[#allocation7 + $0x24] sm:$0xff]
    %v468 = vld [vmem:[#allocation7 + $0x2c] sm:$0xf]
    %v469 = vld [vmem:[#allocation7 + $0x30] sm:$0xff]
    %v470 = vld [vmem:[#allocation7 + $0x38] sm:$0xf]
    %v471 = vld [vmem:[#allocation7 + $0x3c] sm:$0xff]
    %v472 = vld [vmem:[#allocation7 + $0x44] sm:$0xf]
    %v473 = vld [vmem:[#allocation7 + $0x48] sm:$0xff]
    %v474 = vld [vmem:[#allocation7 + $0x50] sm:$0xf]
    %v475 = vld [vmem:[#allocation7 + $0x54] sm:$0xff]
    %v476 = vld [vmem:[#allocation7 + $0x5c] sm:$0xf]
    %v477 = vld [vmem:[#allocation7 + $0x60] sm:$0xff]
    %v478 = vld [vmem:[#allocation7 + $0x68] sm:$0xf]
    %v479 = vld [vmem:[#allocation7 + $0x6c] sm:$0xff]
    %v480 = vld [vmem:[#allocation7 + $0x74] sm:$0xf]
    %v481 = vld [vmem:[#allocation7 + $0x78] sm:$0xff]
    %v482 = vld [vmem:[#allocation7 + $0x80] sm:$0xf]
    %v483 = vld [vmem:[#allocation7 + $0x84] sm:$0xff]
    %v484 = vld [vmem:[#allocation7 + $0x8c] sm:$0xf]
    %v485 = vld [vmem:[#allocation7 + $0x90] sm:$0xff]
    %v486 = vld [vmem:[#allocation7 + $0x98] sm:$0xf]
    %v487 = vld [vmem:[#allocation7 + $0x9c] sm:$0xff]
    %v488 = vld [vmem:[#allocation7 + $0xa4] sm:$0xf]
    %v489 = vld [vmem:[#allocation7 + $0xa8] sm:$0xff]
    %v490 = vld [vmem:[#allocation7 + $0xb0] sm:$0xf]
    %v491 = vld [vmem:[#allocation7 + $0xb4] sm:$0xff]
    %v492 = vld [vmem:[#allocation7 + $0xbc] sm:$0xf]
    %v493 = vpack.c.bf16 %v460, %v460
    %v494 = vld [vmem:[#allocation19 + $0x9] sm:$0x7]
    %v496 = vperm.slane %v494, 0
    %v497 = vperm.slane %v494, 1
    %v498 = vperm.slane %v494, 2
    %v534 = vunpack.c.l.b16 %v461
    %v535 = vunpack.c.h.b16 %v461
    %v536 = vunpack.c.l.b16 %v462
    %v537 = vunpack.c.l.b16 %v463
    %v538 = vunpack.c.h.b16 %v463
    %v539 = vunpack.c.l.b16 %v464
    %v540 = vunpack.c.l.b16 %v465
    %v541 = vunpack.c.h.b16 %v465
    %v542 = vunpack.c.l.b16 %v466
    %v543 = vunpack.c.l.b16 %v467
    %v544 = vunpack.c.h.b16 %v467
    %v545 = vunpack.c.l.b16 %v468
    %v546 = vunpack.c.l.b16 %v469
    %v547 = vunpack.c.h.b16 %v469
    %v548 = vunpack.c.l.b16 %v470
    %v549 = vunpack.c.l.b16 %v471
    %v550 = vunpack.c.h.b16 %v471
    %v551 = vunpack.c.l.b16 %v472
    %v552 = vunpack.c.l.b16 %v473
    %v553 = vunpack.c.h.b16 %v473
    %v554 = vunpack.c.l.b16 %v474
    %v555 = vunpack.c.l.b16 %v475
    %v556 = vunpack.c.h.b16 %v475
    %v557 = vunpack.c.l.b16 %v476
    %v558 = vunpack.c.l.b16 %v477
    %v559 = vunpack.c.h.b16 %v477
    %v560 = vunpack.c.l.b16 %v478
    %v561 = vunpack.c.l.b16 %v479
    %v562 = vunpack.c.h.b16 %v479
    %v563 = vunpack.c.l.b16 %v480
    %v564 = vunpack.c.l.b16 %v481
    %v565 = vunpack.c.h.b16 %v481
    %v566 = vunpack.c.l.b16 %v482
    %v567 = vunpack.c.l.b16 %v483
    %v568 = vunpack.c.h.b16 %v483
    %v569 = vunpack.c.l.b16 %v484
    %v570 = vunpack.c.l.b16 %v485
    %v571 = vunpack.c.h.b16 %v485
    %v572 = vunpack.c.l.b16 %v486
    %v573 = vunpack.c.l.b16 %v487
    %v574 = vunpack.c.h.b16 %v487
    %v575 = vunpack.c.l.b16 %v488
    %v576 = vunpack.c.l.b16 %v489
    %v577 = vunpack.c.h.b16 %v489
    %v578 = vunpack.c.l.b16 %v490
    %v579 = vunpack.c.l.b16 %v491
    %v580 = vunpack.c.h.b16 %v491
    %v581 = vunpack.c.l.b16 %v492
    %v582 = vpack.c.b16 %v537, %v534
    %v583 = vpack.c.b16 %v538, %v535
    %v584 = vpack.c.b16 %v539, %v536
    %v585 = vpack.c.b16 %v543, %v540
    %v586 = vpack.c.b16 %v544, %v541
    %v587 = vpack.c.b16 %v545, %v542
    %v588 = vpack.c.b16 %v549, %v546
    %v589 = vpack.c.b16 %v550, %v547
    %v590 = vpack.c.b16 %v551, %v548
    %v591 = vpack.c.b16 %v555, %v552
    %v592 = vpack.c.b16 %v556, %v553
    %v593 = vpack.c.b16 %v557, %v554
    %v594 = vpack.c.b16 %v561, %v558
    %v595 = vpack.c.b16 %v562, %v559
    %v596 = vpack.c.b16 %v563, %v560
    %v597 = vpack.c.b16 %v567, %v564
    %v598 = vpack.c.b16 %v568, %v565
    %v599 = vpack.c.b16 %v569, %v566
    %v600 = vpack.c.b16 %v573, %v570
    %v601 = vpack.c.b16 %v574, %v571
    %v602 = vpack.c.b16 %v575, %v572
    %v603 = vpack.c.b16 %v579, %v576
    %v604 = vpack.c.b16 %v580, %v577
    %v605 = vpack.c.b16 %v581, %v578
    %630 = vmatpush.bf16.msra.mxu0 %v603
    %631 = vmatpush.bf16.msra.mxu0 %v600
    %632 = vmatpush.bf16.msra.mxu0 %v597
    %633 = vmatpush.bf16.msra.mxu0 %v594
    %634 = vmatpush.bf16.msra.mxu0 %v591
    %635 = vmatpush.bf16.msra.mxu0 %v588
    %636 = vmatpush.bf16.msra.mxu0 %v585
    %637 = vmatpush.bf16.msra.mxu0 %v582
    %638 = vmatmul.bf16.gmra.mxu0 %v493
    %v639 = vpop.f32.mrf.mxu0
    %v640 = vadd.f32 %v496, %v639
    %v641 = vpop.f32.mrf.mxu0
    %642 = vdwg.mxu0
    %643 = vmatpush.bf16.msra.mxu0 %v604
    %644 = vmatpush.bf16.msra.mxu0 %v601
    %645 = vmatpush.bf16.msra.mxu0 %v598
    %646 = vmatpush.bf16.msra.mxu0 %v595
    %647 = vmatpush.bf16.msra.mxu0 %v592
    %648 = vmatpush.bf16.msra.mxu0 %v589
    %649 = vmatpush.bf16.msra.mxu0 %v586
    %650 = vmatpush.bf16.msra.mxu0 %v583
    %651 = vmatmul.bf16.gmra.mxu0 %v493
    %v652 = vpop.f32.mrf.mxu0
    %v653 = vadd.f32 %v497, %v652
    %v654 = vpop.f32.mrf.mxu0
    %655 = vdwg.mxu0
    %656 = vmatpush.bf16.msra.mxu0 %v605
    %657 = vmatpush.bf16.msra.mxu0 %v602
    %658 = vmatpush.bf16.msra.mxu0 %v599
    %659 = vmatpush.bf16.msra.mxu0 %v596
    %660 = vmatpush.bf16.msra.mxu0 %v593
    %661 = vmatpush.bf16.msra.mxu0 %v590
    %662 = vmatpush.bf16.msra.mxu0 %v587
    %663 = vmatpush.bf16.msra.mxu0 %v584
    %664 = vmatmul.bf16.gmra.mxu0 %v493
    %v665 = vpop.f32.mrf.mxu0
    %v666 = vadd.f32 %v498, %v665
    %v667 = vpop.f32.mrf.mxu0
    %668 = vdwg.mxu0
    %v669 = vmax.f32 %v640, 0.0
    %v670 = vmax.f32 %v653, 0.0
    %v671 = vmax.f32 %v666, 0.0
    %v672 = vld [vmem:[#allocation19 + $0xc] sm:$0x7]
    %v674 = vperm.slane %v672, 0
    %v675 = vperm.slane %v672, 1
    %v676 = vperm.slane %v672, 2
    %v680 = vmul.f32 %v669, %v674
    %v681 = vmul.f32 %v670, %v675
    %v682 = vmul.f32 %v671, %v676
    %v683 = vld [vmem:[#allocation19 + $0xf] sm:$0x7]
    %v685 = vperm.slane %v683, 0
    %v686 = vperm.slane %v683, 1
    %v687 = vperm.slane %v683, 2
    %v691 = vadd.f32 %v680, %v685
    %v692 = vadd.f32 %v681, %v686
    %v693 = vadd.f32 %v682, %v687
    %v694 = vpack.c.bf16 %v458, %v457
    %v695 = vpack.c.bf16 %v459, %v459
    %v696 = vpack.c.bf16 %v692, %v691
    %v697 = vpack.c.bf16 %v693, %v693
    %v700 = vunpack.c.l.b16 %v694
    %v701 = vunpack.c.h.b16 %v694
    %v702 = vunpack.c.l.b16 %v695
    %v703 = vpack.c.b16 %v700, %v700
    %v704 = vpack.c.b16 %v701, %v701
    %v705 = vpack.c.b16 %v702, %v702
    %v708 = vunpack.c.l.b16 %v696
    %v709 = vunpack.c.h.b16 %v696
    %v710 = vunpack.c.l.b16 %v697
    %v711 = vpack.c.b16 %v708, %v708
    %v712 = vpack.c.b16 %v709, %v709
    %v713 = vpack.c.b16 %v710, %v710
    %vm714 = vcmask 1043456
    %v717 = vsel %vm714, %v703, %v711
    %v721 = vsel %vm714, %v704, %v712
    %v725 = vsel %vm714, %v705, %v713
    %v727 = vld [vmem:[#allocation9] sm:$0xff]
    %v728 = vld [vmem:[#allocation9 + $0x8] sm:$0xff]
    %v729 = vld [vmem:[#allocation9 + $0x10] sm:$0xff]
    %v730 = vld [vmem:[#allocation9 + $0x18] sm:$0xff]
    %v731 = vld [vmem:[#allocation9 + $0x20] sm:$0xf]
    %v732 = vld [vmem:[#allocation9 + $0x24] sm:$0xff]
    %v733 = vld [vmem:[#allocation9 + $0x2c] sm:$0xff]
    %v734 = vld [vmem:[#allocation9 + $0x34] sm:$0xff]
    %v735 = vld [vmem:[#allocation9 + $0x3c] sm:$0xff]
    %v736 = vld [vmem:[#allocation9 + $0x44] sm:$0xf]
    %v737 = vld [vmem:[#allocation9 + $0x48] sm:$0xff]
    %v738 = vld [vmem:[#allocation9 + $0x50] sm:$0xff]
    %v739 = vld [vmem:[#allocation9 + $0x58] sm:$0xff]
    %v740 = vld [vmem:[#allocation9 + $0x60] sm:$0xff]
    %v741 = vld [vmem:[#allocation9 + $0x68] sm:$0xf]
    %v742 = vld [vmem:[#allocation9 + $0x6c] sm:$0xff]
    %v743 = vld [vmem:[#allocation9 + $0x74] sm:$0xff]
    %v744 = vld [vmem:[#allocation9 + $0x7c] sm:$0xff]
    %v745 = vld [vmem:[#allocation9 + $0x84] sm:$0xff]
    %v746 = vld [vmem:[#allocation9 + $0x8c] sm:$0xf]
    %v747 = vld [vmem:[#allocation9 + $0x90] sm:$0xff]
    %v748 = vld [vmem:[#allocation9 + $0x98] sm:$0xff]
    %v749 = vld [vmem:[#allocation9 + $0xa0] sm:$0xff]
    %v750 = vld [vmem:[#allocation9 + $0xa8] sm:$0xff]
    %v751 = vld [vmem:[#allocation9 + $0xb0] sm:$0xf]
    %v752 = vld [vmem:[#allocation9 + $0xb4] sm:$0xff]
    %v753 = vld [vmem:[#allocation9 + $0xbc] sm:$0xff]
    %v754 = vld [vmem:[#allocation9 + $0xc4] sm:$0xff]
    %v755 = vld [vmem:[#allocation9 + $0xcc] sm:$0xff]
    %v756 = vld [vmem:[#allocation9 + $0xd4] sm:$0xf]
    %v757 = vld [vmem:[#allocation9 + $0xd8] sm:$0xff]
    %v758 = vld [vmem:[#allocation9 + $0xe0] sm:$0xff]
    %v759 = vld [vmem:[#allocation9 + $0xe8] sm:$0xff]
    %v760 = vld [vmem:[#allocation9 + $0xf0] sm:$0xff]
    %v761 = vld [vmem:[#allocation9 + $0xf8] sm:$0xf]
    %v762 = vld [vmem:[#allocation9 + $0xfc] sm:$0xff]
    %v763 = vld [vmem:[#allocation9 + $0x104] sm:$0xff]
    %v764 = vld [vmem:[#allocation9 + $0x10c] sm:$0xff]
    %v765 = vld [vmem:[#allocation9 + $0x114] sm:$0xff]
    %v766 = vld [vmem:[#allocation9 + $0x11c] sm:$0xf]
    %v767 = vld [vmem:[#allocation9 + $0x120] sm:$0xff]
    %v768 = vld [vmem:[#allocation9 + $0x128] sm:$0xff]
    %v769 = vld [vmem:[#allocation9 + $0x130] sm:$0xff]
    %v770 = vld [vmem:[#allocation9 + $0x138] sm:$0xff]
    %v771 = vld [vmem:[#allocation9 + $0x140] sm:$0xf]
    %v772 = vld [vmem:[#allocation9 + $0x144] sm:$0xff]
    %v773 = vld [vmem:[#allocation9 + $0x14c] sm:$0xff]
    %v774 = vld [vmem:[#allocation9 + $0x154] sm:$0xff]
    %v775 = vld [vmem:[#allocation9 + $0x15c] sm:$0xff]
    %v776 = vld [vmem:[#allocation9 + $0x164] sm:$0xf]
    %v777 = vld [vmem:[#allocation9 + $0x168] sm:$0xff]
    %v778 = vld [vmem:[#allocation9 + $0x170] sm:$0xff]
    %v779 = vld [vmem:[#allocation9 + $0x178] sm:$0xff]
    %v780 = vld [vmem:[#allocation9 + $0x180] sm:$0xff]
    %v781 = vld [vmem:[#allocation9 + $0x188] sm:$0xf]
    %v782 = vld [vmem:[#allocation9 + $0x18c] sm:$0xff]
    %v783 = vld [vmem:[#allocation9 + $0x194] sm:$0xff]
    %v784 = vld [vmem:[#allocation9 + $0x19c] sm:$0xff]
    %v785 = vld [vmem:[#allocation9 + $0x1a4] sm:$0xff]
    %v786 = vld [vmem:[#allocation9 + $0x1ac] sm:$0xf]
    %v787 = vld [vmem:[#allocation9 + $0x1b0] sm:$0xff]
    %v788 = vld [vmem:[#allocation9 + $0x1b8] sm:$0xff]
    %v789 = vld [vmem:[#allocation9 + $0x1c0] sm:$0xff]
    %v790 = vld [vmem:[#allocation9 + $0x1c8] sm:$0xff]
    %v791 = vld [vmem:[#allocation9 + $0x1d0] sm:$0xf]
    %v792 = vld [vmem:[#allocation9 + $0x1d4] sm:$0xff]
    %v793 = vld [vmem:[#allocation9 + $0x1dc] sm:$0xff]
    %v794 = vld [vmem:[#allocation9 + $0x1e4] sm:$0xff]
    %v795 = vld [vmem:[#allocation9 + $0x1ec] sm:$0xff]
    %v796 = vld [vmem:[#allocation9 + $0x1f4] sm:$0xf]
    %v797 = vld [vmem:[#allocation9 + $0x1f8] sm:$0xff]
    %v798 = vld [vmem:[#allocation9 + $0x200] sm:$0xff]
    %v799 = vld [vmem:[#allocation9 + $0x208] sm:$0xff]
    %v800 = vld [vmem:[#allocation9 + $0x210] sm:$0xff]
    %v801 = vld [vmem:[#allocation9 + $0x218] sm:$0xf]
    %v802 = vld [vmem:[#allocation9 + $0x21c] sm:$0xff]
    %v803 = vld [vmem:[#allocation9 + $0x224] sm:$0xff]
    %v804 = vld [vmem:[#allocation9 + $0x22c] sm:$0xff]
    %v805 = vld [vmem:[#allocation9 + $0x234] sm:$0xff]
    %v806 = vld [vmem:[#allocation9 + $0x23c] sm:$0xf]
    %v807 = vld [vmem:[#allocation9 + $0x240] sm:$0xff]
    %v808 = vld [vmem:[#allocation9 + $0x248] sm:$0xff]
    %v809 = vld [vmem:[#allocation9 + $0x250] sm:$0xff]
    %v810 = vld [vmem:[#allocation9 + $0x258] sm:$0xff]
    %v811 = vld [vmem:[#allocation9 + $0x260] sm:$0xf]
    %v812 = vld [vmem:[#allocation9 + $0x264] sm:$0xff]
    %v813 = vld [vmem:[#allocation9 + $0x26c] sm:$0xff]
    %v814 = vld [vmem:[#allocation9 + $0x274] sm:$0xff]
    %v815 = vld [vmem:[#allocation9 + $0x27c] sm:$0xff]
    %v816 = vld [vmem:[#allocation9 + $0x284] sm:$0xf]
    %v817 = vld [vmem:[#allocation9 + $0x288] sm:$0xff]
    %v818 = vld [vmem:[#allocation9 + $0x290] sm:$0xff]
    %v819 = vld [vmem:[#allocation9 + $0x298] sm:$0xff]
    %v820 = vld [vmem:[#allocation9 + $0x2a0] sm:$0xff]
    %v821 = vld [vmem:[#allocation9 + $0x2a8] sm:$0xf]
    %v822 = vld [vmem:[#allocation9 + $0x2ac] sm:$0xff]
    %v823 = vld [vmem:[#allocation9 + $0x2b4] sm:$0xff]
    %v824 = vld [vmem:[#allocation9 + $0x2bc] sm:$0xff]
    %v825 = vld [vmem:[#allocation9 + $0x2c4] sm:$0xff]
    %v826 = vld [vmem:[#allocation9 + $0x2cc] sm:$0xf]
    %v827 = vld [vmem:[#allocation9 + $0x2d0] sm:$0xff]
    %v828 = vld [vmem:[#allocation9 + $0x2d8] sm:$0xff]
    %v829 = vld [vmem:[#allocation9 + $0x2e0] sm:$0xff]
    %v830 = vld [vmem:[#allocation9 + $0x2e8] sm:$0xff]
    %v831 = vld [vmem:[#allocation9 + $0x2f0] sm:$0xf]
    %v832 = vld [vmem:[#allocation9 + $0x2f4] sm:$0xff]
    %v833 = vld [vmem:[#allocation9 + $0x2fc] sm:$0xff]
    %v834 = vld [vmem:[#allocation9 + $0x304] sm:$0xff]
    %v835 = vld [vmem:[#allocation9 + $0x30c] sm:$0xff]
    %v836 = vld [vmem:[#allocation9 + $0x314] sm:$0xf]
    %v837 = vld [vmem:[#allocation9 + $0x318] sm:$0xff]
    %v838 = vld [vmem:[#allocation9 + $0x320] sm:$0xff]
    %v839 = vld [vmem:[#allocation9 + $0x328] sm:$0xff]
    %v840 = vld [vmem:[#allocation9 + $0x330] sm:$0xff]
    %v841 = vld [vmem:[#allocation9 + $0x338] sm:$0xf]
    %v842 = vld [vmem:[#allocation9 + $0x33c] sm:$0xff]
    %v843 = vld [vmem:[#allocation9 + $0x344] sm:$0xff]
    %v844 = vld [vmem:[#allocation9 + $0x34c] sm:$0xff]
    %v845 = vld [vmem:[#allocation9 + $0x354] sm:$0xff]
    %v846 = vld [vmem:[#allocation9 + $0x35c] sm:$0xf]
    %v847 = vld [vmem:[#allocation9 + $0x360] sm:$0xff]
    %v848 = vld [vmem:[#allocation9 + $0x368] sm:$0xff]
    %v849 = vld [vmem:[#allocation9 + $0x370] sm:$0xff]
    %v850 = vld [vmem:[#allocation9 + $0x378] sm:$0xff]
    %v851 = vld [vmem:[#allocation9 + $0x380] sm:$0xf]
    %v852 = vld [vmem:[#allocation9 + $0x384] sm:$0xff]
    %v853 = vld [vmem:[#allocation9 + $0x38c] sm:$0xff]
    %v854 = vld [vmem:[#allocation9 + $0x394] sm:$0xff]
    %v855 = vld [vmem:[#allocation9 + $0x39c] sm:$0xff]
    %v856 = vld [vmem:[#allocation9 + $0x3a4] sm:$0xf]
    %v857 = vld [vmem:[#allocation9 + $0x3a8] sm:$0xff]
    %v858 = vld [vmem:[#allocation9 + $0x3b0] sm:$0xff]
    %v859 = vld [vmem:[#allocation9 + $0x3b8] sm:$0xff]
    %v860 = vld [vmem:[#allocation9 + $0x3c0] sm:$0xff]
    %v861 = vld [vmem:[#allocation9 + $0x3c8] sm:$0xf]
    %v862 = vld [vmem:[#allocation9 + $0x3cc] sm:$0xff]
    %v863 = vld [vmem:[#allocation9 + $0x3d4] sm:$0xff]
    %v864 = vld [vmem:[#allocation9 + $0x3dc] sm:$0xff]
    %v865 = vld [vmem:[#allocation9 + $0x3e4] sm:$0xff]
    %v866 = vld [vmem:[#allocation9 + $0x3ec] sm:$0xf]
    %v867 = vld [vmem:[#allocation9 + $0x3f0] sm:$0xff]
    %v868 = vld [vmem:[#allocation9 + $0x3f8] sm:$0xff]
    %v869 = vld [vmem:[#allocation9 + $0x400] sm:$0xff]
    %v870 = vld [vmem:[#allocation9 + $0x408] sm:$0xff]
    %v871 = vld [vmem:[#allocation9 + $0x410] sm:$0xf]
    %v872 = vld [vmem:[#allocation9 + $0x414] sm:$0xff]
    %v873 = vld [vmem:[#allocation9 + $0x41c] sm:$0xff]
    %v874 = vld [vmem:[#allocation9 + $0x424] sm:$0xff]
    %v875 = vld [vmem:[#allocation9 + $0x42c] sm:$0xff]
    %v876 = vld [vmem:[#allocation9 + $0x434] sm:$0xf]
    %v877 = vld [vmem:[#allocation9 + $0x438] sm:$0xff]
    %v878 = vld [vmem:[#allocation9 + $0x440] sm:$0xff]
    %v879 = vld [vmem:[#allocation9 + $0x448] sm:$0xff]
    %v880 = vld [vmem:[#allocation9 + $0x450] sm:$0xff]
    %v881 = vld [vmem:[#allocation9 + $0x458] sm:$0xf]
    %v882 = vld [vmem:[#allocation9 + $0x45c] sm:$0xff]
    %v883 = vld [vmem:[#allocation9 + $0x464] sm:$0xff]
    %v884 = vld [vmem:[#allocation9 + $0x46c] sm:$0xff]
    %v885 = vld [vmem:[#allocation9 + $0x474] sm:$0xff]
    %v886 = vld [vmem:[#allocation9 + $0x47c] sm:$0xf]
    %v887 = vld [vmem:[#allocation9 + $0x480] sm:$0xff]
    %v888 = vld [vmem:[#allocation9 + $0x488] sm:$0xff]
    %v889 = vld [vmem:[#allocation9 + $0x490] sm:$0xff]
    %v890 = vld [vmem:[#allocation9 + $0x498] sm:$0xff]
    %v891 = vld [vmem:[#allocation9 + $0x4a0] sm:$0xf]
    %v892 = vld [vmem:[#allocation9 + $0x4a4] sm:$0xff]
    %v893 = vld [vmem:[#allocation9 + $0x4ac] sm:$0xff]
    %v894 = vld [vmem:[#allocation9 + $0x4b4] sm:$0xff]
    %v895 = vld [vmem:[#allocation9 + $0x4bc] sm:$0xff]
    %v896 = vld [vmem:[#allocation9 + $0x4c4] sm:$0xf]
    %v897 = vld [vmem:[#allocation9 + $0x4c8] sm:$0xff]
    %v898 = vld [vmem:[#allocation9 + $0x4d0] sm:$0xff]
    %v899 = vld [vmem:[#allocation9 + $0x4d8] sm:$0xff]
    %v900 = vld [vmem:[#allocation9 + $0x4e0] sm:$0xff]
    %v901 = vld [vmem:[#allocation9 + $0x4e8] sm:$0xf]
    %v902 = vld [vmem:[#allocation9 + $0x4ec] sm:$0xff]
    %v903 = vld [vmem:[#allocation9 + $0x4f4] sm:$0xff]
    %v904 = vld [vmem:[#allocation9 + $0x4fc] sm:$0xff]
    %v905 = vld [vmem:[#allocation9 + $0x504] sm:$0xff]
    %v906 = vld [vmem:[#allocation9 + $0x50c] sm:$0xf]
    %v907 = vld [vmem:[#allocation9 + $0x510] sm:$0xff]
    %v908 = vld [vmem:[#allocation9 + $0x518] sm:$0xff]
    %v909 = vld [vmem:[#allocation9 + $0x520] sm:$0xff]
    %v910 = vld [vmem:[#allocation9 + $0x528] sm:$0xff]
    %v911 = vld [vmem:[#allocation9 + $0x530] sm:$0xf]
    %v912 = vld [vmem:[#allocation9 + $0x534] sm:$0xff]
    %v913 = vld [vmem:[#allocation9 + $0x53c] sm:$0xff]
    %v914 = vld [vmem:[#allocation9 + $0x544] sm:$0xff]
    %v915 = vld [vmem:[#allocation9 + $0x54c] sm:$0xff]
    %v916 = vld [vmem:[#allocation9 + $0x554] sm:$0xf]
    %v917 = vld [vmem:[#allocation9 + $0x558] sm:$0xff]
    %v918 = vld [vmem:[#allocation9 + $0x560] sm:$0xff]
    %v919 = vld [vmem:[#allocation9 + $0x568] sm:$0xff]
    %v920 = vld [vmem:[#allocation9 + $0x570] sm:$0xff]
    %v921 = vld [vmem:[#allocation9 + $0x578] sm:$0xf]
    %v922 = vld [vmem:[#allocation9 + $0x57c] sm:$0xff]
    %v923 = vld [vmem:[#allocation9 + $0x584] sm:$0xff]
    %v924 = vld [vmem:[#allocation9 + $0x58c] sm:$0xff]
    %v925 = vld [vmem:[#allocation9 + $0x594] sm:$0xff]
    %v926 = vld [vmem:[#allocation9 + $0x59c] sm:$0xf]
    %v927 = vld [vmem:[#allocation9 + $0x5a0] sm:$0xff]
    %v928 = vld [vmem:[#allocation9 + $0x5a8] sm:$0xff]
    %v929 = vld [vmem:[#allocation9 + $0x5b0] sm:$0xff]
    %v930 = vld [vmem:[#allocation9 + $0x5b8] sm:$0xff]
    %v931 = vld [vmem:[#allocation9 + $0x5c0] sm:$0xf]
    %v932 = vld [vmem:[#allocation9 + $0x5c4] sm:$0xff]
    %v933 = vld [vmem:[#allocation9 + $0x5cc] sm:$0xff]
    %v934 = vld [vmem:[#allocation9 + $0x5d4] sm:$0xff]
    %v935 = vld [vmem:[#allocation9 + $0x5dc] sm:$0xff]
    %v936 = vld [vmem:[#allocation9 + $0x5e4] sm:$0xf]
    %v937 = vld [vmem:[#allocation9 + $0x5e8] sm:$0xff]
    %v938 = vld [vmem:[#allocation9 + $0x5f0] sm:$0xff]
    %v939 = vld [vmem:[#allocation9 + $0x5f8] sm:$0xff]
    %v940 = vld [vmem:[#allocation9 + $0x600] sm:$0xff]
    %v941 = vld [vmem:[#allocation9 + $0x608] sm:$0xf]
    %v942 = vld [vmem:[#allocation9 + $0x60c] sm:$0xff]
    %v943 = vld [vmem:[#allocation9 + $0x614] sm:$0xff]
    %v944 = vld [vmem:[#allocation9 + $0x61c] sm:$0xff]
    %v945 = vld [vmem:[#allocation9 + $0x624] sm:$0xff]
    %v946 = vld [vmem:[#allocation9 + $0x62c] sm:$0xf]
    %v947 = vld [vmem:[#allocation9 + $0x630] sm:$0xff]
    %v948 = vld [vmem:[#allocation9 + $0x638] sm:$0xff]
    %v949 = vld [vmem:[#allocation9 + $0x640] sm:$0xff]
    %v950 = vld [vmem:[#allocation9 + $0x648] sm:$0xff]
    %v951 = vld [vmem:[#allocation9 + $0x650] sm:$0xf]
    %v952 = vld [vmem:[#allocation9 + $0x654] sm:$0xff]
    %v953 = vld [vmem:[#allocation9 + $0x65c] sm:$0xff]
    %v954 = vld [vmem:[#allocation9 + $0x664] sm:$0xff]
    %v955 = vld [vmem:[#allocation9 + $0x66c] sm:$0xff]
    %v956 = vld [vmem:[#allocation9 + $0x674] sm:$0xf]
    %v957 = vld [vmem:[#allocation9 + $0x678] sm:$0xff]
    %v958 = vld [vmem:[#allocation9 + $0x680] sm:$0xff]
    %v959 = vld [vmem:[#allocation9 + $0x688] sm:$0xff]
    %v960 = vld [vmem:[#allocation9 + $0x690] sm:$0xff]
    %v961 = vld [vmem:[#allocation9 + $0x698] sm:$0xf]
    %v962 = vld [vmem:[#allocation9 + $0x69c] sm:$0xff]
    %v963 = vld [vmem:[#allocation9 + $0x6a4] sm:$0xff]
    %v964 = vld [vmem:[#allocation9 + $0x6ac] sm:$0xff]
    %v965 = vld [vmem:[#allocation9 + $0x6b4] sm:$0xff]
    %v966 = vld [vmem:[#allocation9 + $0x6bc] sm:$0xf]
    %v967 = vld [vmem:[#allocation19 + $0x12] sm:$0xff]
    %v968 = vld [vmem:[#allocation19 + $0x1a] sm:$0x1]
    %v971 = vperm.slane %v967, 0
    %v972 = vperm.slane %v967, 1
    %v973 = vperm.slane %v967, 2
    %v974 = vperm.slane %v967, 3
    %v975 = vperm.slane %v967, 4
    %v976 = vperm.slane %v967, 5
    %v977 = vperm.slane %v967, 6
    %v978 = vperm.slane %v967, 7
    %v979 = vperm.slane %v968, 0
    %v1229 = vunpack.c.l.b16 %v727
    %v1230 = vunpack.c.h.b16 %v727
    %v1231 = vunpack.c.l.b16 %v728
    %v1232 = vunpack.c.h.b16 %v728
    %v1233 = vunpack.c.l.b16 %v729
    %v1234 = vunpack.c.h.b16 %v729
    %v1235 = vunpack.c.l.b16 %v730
    %v1236 = vunpack.c.h.b16 %v730
    %v1237 = vunpack.c.l.b16 %v731
    %v1238 = vunpack.c.l.b16 %v732
    %v1239 = vunpack.c.h.b16 %v732
    %v1240 = vunpack.c.l.b16 %v733
    %v1241 = vunpack.c.h.b16 %v733
    %v1242 = vunpack.c.l.b16 %v734
    %v1243 = vunpack.c.h.b16 %v734
    %v1244 = vunpack.c.l.b16 %v735
    %v1245 = vunpack.c.h.b16 %v735
    %v1246 = vunpack.c.l.b16 %v736
    %v1247 = vunpack.c.l.b16 %v737
    %v1248 = vunpack.c.h.b16 %v737
    %v1249 = vunpack.c.l.b16 %v738
    %v1250 = vunpack.c.h.b16 %v738
    %v1251 = vunpack.c.l.b16 %v739
    %v1252 = vunpack.c.h.b16 %v739
    %v1253 = vunpack.c.l.b16 %v740
    %v1254 = vunpack.c.h.b16 %v740
    %v1255 = vunpack.c.l.b16 %v741
    %v1256 = vunpack.c.l.b16 %v742
    %v1257 = vunpack.c.h.b16 %v742
    %v1258 = vunpack.c.l.b16 %v743
    %v1259 = vunpack.c.h.b16 %v743
    %v1260 = vunpack.c.l.b16 %v744
    %v1261 = vunpack.c.h.b16 %v744
    %v1262 = vunpack.c.l.b16 %v745
    %v1263 = vunpack.c.h.b16 %v745
    %v1264 = vunpack.c.l.b16 %v746
    %v1265 = vunpack.c.l.b16 %v747
    %v1266 = vunpack.c.h.b16 %v747
    %v1267 = vunpack.c.l.b16 %v748
    %v1268 = vunpack.c.h.b16 %v748
    %v1269 = vunpack.c.l.b16 %v749
    %v1270 = vunpack.c.h.b16 %v749
    %v1271 = vunpack.c.l.b16 %v750
    %v1272 = vunpack.c.h.b16 %v750
    %v1273 = vunpack.c.l.b16 %v751
    %v1274 = vunpack.c.l.b16 %v752
    %v1275 = vunpack.c.h.b16 %v752
    %v1276 = vunpack.c.l.b16 %v753
    %v1277 = vunpack.c.h.b16 %v753
    %v1278 = vunpack.c.l.b16 %v754
    %v1279 = vunpack.c.h.b16 %v754
    %v1280 = vunpack.c.l.b16 %v755
    %v1281 = vunpack.c.h.b16 %v755
    %v1282 = vunpack.c.l.b16 %v756
    %v1283 = vunpack.c.l.b16 %v757
    %v1284 = vunpack.c.h.b16 %v757
    %v1285 = vunpack.c.l.b16 %v758
    %v1286 = vunpack.c.h.b16 %v758
    %v1287 = vunpack.c.l.b16 %v759
    %v1288 = vunpack.c.h.b16 %v759
    %v1289 = vunpack.c.l.b16 %v760
    %v1290 = vunpack.c.h.b16 %v760
    %v1291 = vunpack.c.l.b16 %v761
    %v1292 = vunpack.c.l.b16 %v762
    %v1293 = vunpack.c.h.b16 %v762
    %v1294 = vunpack.c.l.b16 %v763
    %v1295 = vunpack.c.h.b16 %v763
    %v1296 = vunpack.c.l.b16 %v764
    %v1297 = vunpack.c.h.b16 %v764
    %v1298 = vunpack.c.l.b16 %v765
    %v1299 = vunpack.c.h.b16 %v765
    %v1300 = vunpack.c.l.b16 %v766
    %v1301 = vunpack.c.l.b16 %v767
    %v1302 = vunpack.c.h.b16 %v767
    %v1303 = vunpack.c.l.b16 %v768
    %v1304 = vunpack.c.h.b16 %v768
    %v1305 = vunpack.c.l.b16 %v769
    %v1306 = vunpack.c.h.b16 %v769
    %v1307 = vunpack.c.l.b16 %v770
    %v1308 = vunpack.c.h.b16 %v770
    %v1309 = vunpack.c.l.b16 %v771
    %v1310 = vunpack.c.l.b16 %v772
    %v1311 = vunpack.c.h.b16 %v772
    %v1312 = vunpack.c.l.b16 %v773
    %v1313 = vunpack.c.h.b16 %v773
    %v1314 = vunpack.c.l.b16 %v774
    %v1315 = vunpack.c.h.b16 %v774
    %v1316 = vunpack.c.l.b16 %v775
    %v1317 = vunpack.c.h.b16 %v775
    %v1318 = vunpack.c.l.b16 %v776
    %v1319 = vunpack.c.l.b16 %v777
    %v1320 = vunpack.c.h.b16 %v777
    %v1321 = vunpack.c.l.b16 %v778
    %v1322 = vunpack.c.h.b16 %v778
    %v1323 = vunpack.c.l.b16 %v779
    %v1324 = vunpack.c.h.b16 %v779
    %v1325 = vunpack.c.l.b16 %v780
    %v1326 = vunpack.c.h.b16 %v780
    %v1327 = vunpack.c.l.b16 %v781
    %v1328 = vunpack.c.l.b16 %v782
    %v1329 = vunpack.c.h.b16 %v782
    %v1330 = vunpack.c.l.b16 %v783
    %v1331 = vunpack.c.h.b16 %v783
    %v1332 = vunpack.c.l.b16 %v784
    %v1333 = vunpack.c.h.b16 %v784
    %v1334 = vunpack.c.l.b16 %v785
    %v1335 = vunpack.c.h.b16 %v785
    %v1336 = vunpack.c.l.b16 %v786
    %v1337 = vunpack.c.l.b16 %v787
    %v1338 = vunpack.c.h.b16 %v787
    %v1339 = vunpack.c.l.b16 %v788
    %v1340 = vunpack.c.h.b16 %v788
    %v1341 = vunpack.c.l.b16 %v789
    %v1342 = vunpack.c.h.b16 %v789
    %v1343 = vunpack.c.l.b16 %v790
    %v1344 = vunpack.c.h.b16 %v790
    %v1345 = vunpack.c.l.b16 %v791
    %v1346 = vunpack.c.l.b16 %v792
    %v1347 = vunpack.c.h.b16 %v792
    %v1348 = vunpack.c.l.b16 %v793
    %v1349 = vunpack.c.h.b16 %v793
    %v1350 = vunpack.c.l.b16 %v794
    %v1351 = vunpack.c.h.b16 %v794
    %v1352 = vunpack.c.l.b16 %v795
    %v1353 = vunpack.c.h.b16 %v795
    %v1354 = vunpack.c.l.b16 %v796
    %v1355 = vunpack.c.l.b16 %v797
    %v1356 = vunpack.c.h.b16 %v797
    %v1357 = vunpack.c.l.b16 %v798
    %v1358 = vunpack.c.h.b16 %v798
    %v1359 = vunpack.c.l.b16 %v799
    %v1360 = vunpack.c.h.b16 %v799
    %v1361 = vunpack.c.l.b16 %v800
    %v1362 = vunpack.c.h.b16 %v800
    %v1363 = vunpack.c.l.b16 %v801
    %v1364 = vunpack.c.l.b16 %v802
    %v1365 = vunpack.c.h.b16 %v802
    %v1366 = vunpack.c.l.b16 %v803
    %v1367 = vunpack.c.h.b16 %v803
    %v1368 = vunpack.c.l.b16 %v804
    %v1369 = vunpack.c.h.b16 %v804
    %v1370 = vunpack.c.l.b16 %v805
    %v1371 = vunpack.c.h.b16 %v805
    %v1372 = vunpack.c.l.b16 %v806
    %v1373 = vunpack.c.l.b16 %v807
    %v1374 = vunpack.c.h.b16 %v807
    %v1375 = vunpack.c.l.b16 %v808
    %v1376 = vunpack.c.h.b16 %v808
    %v1377 = vunpack.c.l.b16 %v809
    %v1378 = vunpack.c.h.b16 %v809
    %v1379 = vunpack.c.l.b16 %v810
    %v1380 = vunpack.c.h.b16 %v810
    %v1381 = vunpack.c.l.b16 %v811
    %v1382 = vunpack.c.l.b16 %v812
    %v1383 = vunpack.c.h.b16 %v812
    %v1384 = vunpack.c.l.b16 %v813
    %v1385 = vunpack.c.h.b16 %v813
    %v1386 = vunpack.c.l.b16 %v814
    %v1387 = vunpack.c.h.b16 %v814
    %v1388 = vunpack.c.l.b16 %v815
    %v1389 = vunpack.c.h.b16 %v815
    %v1390 = vunpack.c.l.b16 %v816
    %v1391 = vunpack.c.l.b16 %v817
    %v1392 = vunpack.c.h.b16 %v817
    %v1393 = vunpack.c.l.b16 %v818
    %v1394 = vunpack.c.h.b16 %v818
    %v1395 = vunpack.c.l.b16 %v819
    %v1396 = vunpack.c.h.b16 %v819
    %v1397 = vunpack.c.l.b16 %v820
    %v1398 = vunpack.c.h.b16 %v820
    %v1399 = vunpack.c.l.b16 %v821
    %v1400 = vunpack.c.l.b16 %v822
    %v1401 = vunpack.c.h.b16 %v822
    %v1402 = vunpack.c.l.b16 %v823
    %v1403 = vunpack.c.h.b16 %v823
    %v1404 = vunpack.c.l.b16 %v824
    %v1405 = vunpack.c.h.b16 %v824
    %v1406 = vunpack.c.l.b16 %v825
    %v1407 = vunpack.c.h.b16 %v825
    %v1408 = vunpack.c.l.b16 %v826
    %v1409 = vunpack.c.l.b16 %v827
    %v1410 = vunpack.c.h.b16 %v827
    %v1411 = vunpack.c.l.b16 %v828
    %v1412 = vunpack.c.h.b16 %v828
    %v1413 = vunpack.c.l.b16 %v829
    %v1414 = vunpack.c.h.b16 %v829
    %v1415 = vunpack.c.l.b16 %v830
    %v1416 = vunpack.c.h.b16 %v830
    %v1417 = vunpack.c.l.b16 %v831
    %v1418 = vunpack.c.l.b16 %v832
    %v1419 = vunpack.c.h.b16 %v832
    %v1420 = vunpack.c.l.b16 %v833
    %v1421 = vunpack.c.h.b16 %v833
    %v1422 = vunpack.c.l.b16 %v834
    %v1423 = vunpack.c.h.b16 %v834
    %v1424 = vunpack.c.l.b16 %v835
    %v1425 = vunpack.c.h.b16 %v835
    %v1426 = vunpack.c.l.b16 %v836
    %v1427 = vunpack.c.l.b16 %v837
    %v1428 = vunpack.c.h.b16 %v837
    %v1429 = vunpack.c.l.b16 %v838
    %v1430 = vunpack.c.h.b16 %v838
    %v1431 = vunpack.c.l.b16 %v839
    %v1432 = vunpack.c.h.b16 %v839
    %v1433 = vunpack.c.l.b16 %v840
    %v1434 = vunpack.c.h.b16 %v840
    %v1435 = vunpack.c.l.b16 %v841
    %v1436 = vunpack.c.l.b16 %v842
    %v1437 = vunpack.c.h.b16 %v842
    %v1438 = vunpack.c.l.b16 %v843
    %v1439 = vunpack.c.h.b16 %v843
    %v1440 = vunpack.c.l.b16 %v844
    %v1441 = vunpack.c.h.b16 %v844
    %v1442 = vunpack.c.l.b16 %v845
    %v1443 = vunpack.c.h.b16 %v845
    %v1444 = vunpack.c.l.b16 %v846
    %v1445 = vunpack.c.l.b16 %v847
    %v1446 = vunpack.c.h.b16 %v847
    %v1447 = vunpack.c.l.b16 %v848
    %v1448 = vunpack.c.h.b16 %v848
    %v1449 = vunpack.c.l.b16 %v849
    %v1450 = vunpack.c.h.b16 %v849
    %v1451 = vunpack.c.l.b16 %v850
    %v1452 = vunpack.c.h.b16 %v850
    %v1453 = vunpack.c.l.b16 %v851
    %v1454 = vunpack.c.l.b16 %v852
    %v1455 = vunpack.c.h.b16 %v852
    %v1456 = vunpack.c.l.b16 %v853
    %v1457 = vunpack.c.h.b16 %v853
    %v1458 = vunpack.c.l.b16 %v854
    %v1459 = vunpack.c.h.b16 %v854
    %v1460 = vunpack.c.l.b16 %v855
    %v1461 = vunpack.c.h.b16 %v855
    %v1462 = vunpack.c.l.b16 %v856
    %v1463 = vunpack.c.l.b16 %v857
    %v1464 = vunpack.c.h.b16 %v857
    %v1465 = vunpack.c.l.b16 %v858
    %v1466 = vunpack.c.h.b16 %v858
    %v1467 = vunpack.c.l.b16 %v859
    %v1468 = vunpack.c.h.b16 %v859
    %v1469 = vunpack.c.l.b16 %v860
    %v1470 = vunpack.c.h.b16 %v860
    %v1471 = vunpack.c.l.b16 %v861
    %v1472 = vunpack.c.l.b16 %v862
    %v1473 = vunpack.c.h.b16 %v862
    %v1474 = vunpack.c.l.b16 %v863
    %v1475 = vunpack.c.h.b16 %v863
    %v1476 = vunpack.c.l.b16 %v864
    %v1477 = vunpack.c.h.b16 %v864
    %v1478 = vunpack.c.l.b16 %v865
    %v1479 = vunpack.c.h.b16 %v865
    %v1480 = vunpack.c.l.b16 %v866
    %v1481 = vunpack.c.l.b16 %v867
    %v1482 = vunpack.c.h.b16 %v867
    %v1483 = vunpack.c.l.b16 %v868
    %v1484 = vunpack.c.h.b16 %v868
    %v1485 = vunpack.c.l.b16 %v869
    %v1486 = vunpack.c.h.b16 %v869
    %v1487 = vunpack.c.l.b16 %v870
    %v1488 = vunpack.c.h.b16 %v870
    %v1489 = vunpack.c.l.b16 %v871
    %v1490 = vunpack.c.l.b16 %v872
    %v1491 = vunpack.c.h.b16 %v872
    %v1492 = vunpack.c.l.b16 %v873
    %v1493 = vunpack.c.h.b16 %v873
    %v1494 = vunpack.c.l.b16 %v874
    %v1495 = vunpack.c.h.b16 %v874
    %v1496 = vunpack.c.l.b16 %v875
    %v1497 = vunpack.c.h.b16 %v875
    %v1498 = vunpack.c.l.b16 %v876
    %v1499 = vunpack.c.l.b16 %v877
    %v1500 = vunpack.c.h.b16 %v877
    %v1501 = vunpack.c.l.b16 %v878
    %v1502 = vunpack.c.h.b16 %v878
    %v1503 = vunpack.c.l.b16 %v879
    %v1504 = vunpack.c.h.b16 %v879
    %v1505 = vunpack.c.l.b16 %v880
    %v1506 = vunpack.c.h.b16 %v880
    %v1507 = vunpack.c.l.b16 %v881
    %v1508 = vunpack.c.l.b16 %v882
    %v1509 = vunpack.c.h.b16 %v882
    %v1510 = vunpack.c.l.b16 %v883
    %v1511 = vunpack.c.h.b16 %v883
    %v1512 = vunpack.c.l.b16 %v884
    %v1513 = vunpack.c.h.b16 %v884
    %v1514 = vunpack.c.l.b16 %v885
    %v1515 = vunpack.c.h.b16 %v885
    %v1516 = vunpack.c.l.b16 %v886
    %v1517 = vunpack.c.l.b16 %v887
    %v1518 = vunpack.c.h.b16 %v887
    %v1519 = vunpack.c.l.b16 %v888
    %v1520 = vunpack.c.h.b16 %v888
    %v1521 = vunpack.c.l.b16 %v889
    %v1522 = vunpack.c.h.b16 %v889
    %v1523 = vunpack.c.l.b16 %v890
    %v1524 = vunpack.c.h.b16 %v890
    %v1525 = vunpack.c.l.b16 %v891
    %v1526 = vunpack.c.l.b16 %v892
    %v1527 = vunpack.c.h.b16 %v892
    %v1528 = vunpack.c.l.b16 %v893
    %v1529 = vunpack.c.h.b16 %v893
    %v1530 = vunpack.c.l.b16 %v894
    %v1531 = vunpack.c.h.b16 %v894
    %v1532 = vunpack.c.l.b16 %v895
    %v1533 = vunpack.c.h.b16 %v895
    %v1534 = vunpack.c.l.b16 %v896
    %v1535 = vunpack.c.l.b16 %v897
    %v1536 = vunpack.c.h.b16 %v897
    %v1537 = vunpack.c.l.b16 %v898
    %v1538 = vunpack.c.h.b16 %v898
    %v1539 = vunpack.c.l.b16 %v899
    %v1540 = vunpack.c.h.b16 %v899
    %v1541 = vunpack.c.l.b16 %v900
    %v1542 = vunpack.c.h.b16 %v900
    %v1543 = vunpack.c.l.b16 %v901
    %v1544 = vunpack.c.l.b16 %v902
    %v1545 = vunpack.c.h.b16 %v902
    %v1546 = vunpack.c.l.b16 %v903
    %v1547 = vunpack.c.h.b16 %v903
    %v1548 = vunpack.c.l.b16 %v904
    %v1549 = vunpack.c.h.b16 %v904
    %v1550 = vunpack.c.l.b16 %v905
    %v1551 = vunpack.c.h.b16 %v905
    %v1552 = vunpack.c.l.b16 %v906
    %v1553 = vunpack.c.l.b16 %v907
    %v1554 = vunpack.c.h.b16 %v907
    %v1555 = vunpack.c.l.b16 %v908
    %v1556 = vunpack.c.h.b16 %v908
    %v1557 = vunpack.c.l.b16 %v909
    %v1558 = vunpack.c.h.b16 %v909
    %v1559 = vunpack.c.l.b16 %v910
    %v1560 = vunpack.c.h.b16 %v910
    %v1561 = vunpack.c.l.b16 %v911
    %v1562 = vunpack.c.l.b16 %v912
    %v1563 = vunpack.c.h.b16 %v912
    %v1564 = vunpack.c.l.b16 %v913
    %v1565 = vunpack.c.h.b16 %v913
    %v1566 = vunpack.c.l.b16 %v914
    %v1567 = vunpack.c.h.b16 %v914
    %v1568 = vunpack.c.l.b16 %v915
    %v1569 = vunpack.c.h.b16 %v915
    %v1570 = vunpack.c.l.b16 %v916
    %v1571 = vunpack.c.l.b16 %v917
    %v1572 = vunpack.c.h.b16 %v917
    %v1573 = vunpack.c.l.b16 %v918
    %v1574 = vunpack.c.h.b16 %v918
    %v1575 = vunpack.c.l.b16 %v919
    %v1576 = vunpack.c.h.b16 %v919
    %v1577 = vunpack.c.l.b16 %v920
    %v1578 = vunpack.c.h.b16 %v920
    %v1579 = vunpack.c.l.b16 %v921
    %v1580 = vunpack.c.l.b16 %v922
    %v1581 = vunpack.c.h.b16 %v922
    %v1582 = vunpack.c.l.b16 %v923
    %v1583 = vunpack.c.h.b16 %v923
    %v1584 = vunpack.c.l.b16 %v924
    %v1585 = vunpack.c.h.b16 %v924
    %v1586 = vunpack.c.l.b16 %v925
    %v1587 = vunpack.c.h.b16 %v925
    %v1588 = vunpack.c.l.b16 %v926
    %v1589 = vunpack.c.l.b16 %v927
    %v1590 = vunpack.c.h.b16 %v927
    %v1591 = vunpack.c.l.b16 %v928
    %v1592 = vunpack.c.h.b16 %v928
    %v1593 = vunpack.c.l.b16 %v929
    %v1594 = vunpack.c.h.b16 %v929
    %v1595 = vunpack.c.l.b16 %v930
    %v1596 = vunpack.c.h.b16 %v930
    %v1597 = vunpack.c.l.b16 %v931
    %v1598 = vunpack.c.l.b16 %v932
    %v1599 = vunpack.c.h.b16 %v932
    %v1600 = vunpack.c.l.b16 %v933
    %v1601 = vunpack.c.h.b16 %v933
    %v1602 = vunpack.c.l.b16 %v934
    %v1603 = vunpack.c.h.b16 %v934
    %v1604 = vunpack.c.l.b16 %v935
    %v1605 = vunpack.c.h.b16 %v935
    %v1606 = vunpack.c.l.b16 %v936
    %v1607 = vunpack.c.l.b16 %v937
    %v1608 = vunpack.c.h.b16 %v937
    %v1609 = vunpack.c.l.b16 %v938
    %v1610 = vunpack.c.h.b16 %v938
    %v1611 = vunpack.c.l.b16 %v939
    %v1612 = vunpack.c.h.b16 %v939
    %v1613 = vunpack.c.l.b16 %v940
    %v1614 = vunpack.c.h.b16 %v940
    %v1615 = vunpack.c.l.b16 %v941
    %v1616 = vunpack.c.l.b16 %v942
    %v1617 = vunpack.c.h.b16 %v942
    %v1618 = vunpack.c.l.b16 %v943
    %v1619 = vunpack.c.h.b16 %v943
    %v1620 = vunpack.c.l.b16 %v944
    %v1621 = vunpack.c.h.b16 %v944
    %v1622 = vunpack.c.l.b16 %v945
    %v1623 = vunpack.c.h.b16 %v945
    %v1624 = vunpack.c.l.b16 %v946
    %v1625 = vunpack.c.l.b16 %v947
    %v1626 = vunpack.c.h.b16 %v947
    %v1627 = vunpack.c.l.b16 %v948
    %v1628 = vunpack.c.h.b16 %v948
    %v1629 = vunpack.c.l.b16 %v949
    %v1630 = vunpack.c.h.b16 %v949
    %v1631 = vunpack.c.l.b16 %v950
    %v1632 = vunpack.c.h.b16 %v950
    %v1633 = vunpack.c.l.b16 %v951
    %v1634 = vunpack.c.l.b16 %v952
    %v1635 = vunpack.c.h.b16 %v952
    %v1636 = vunpack.c.l.b16 %v953
    %v1637 = vunpack.c.h.b16 %v953
    %v1638 = vunpack.c.l.b16 %v954
    %v1639 = vunpack.c.h.b16 %v954
    %v1640 = vunpack.c.l.b16 %v955
    %v1641 = vunpack.c.h.b16 %v955
    %v1642 = vunpack.c.l.b16 %v956
    %v1643 = vunpack.c.l.b16 %v957
    %v1644 = vunpack.c.h.b16 %v957
    %v1645 = vunpack.c.l.b16 %v958
    %v1646 = vunpack.c.h.b16 %v958
    %v1647 = vunpack.c.l.b16 %v959
    %v1648 = vunpack.c.h.b16 %v959
    %v1649 = vunpack.c.l.b16 %v960
    %v1650 = vunpack.c.h.b16 %v960
    %v1651 = vunpack.c.l.b16 %v961
    %v1652 = vunpack.c.l.b16 %v962
    %v1653 = vunpack.c.h.b16 %v962
    %v1654 = vunpack.c.l.b16 %v963
    %v1655 = vunpack.c.h.b16 %v963
    %v1656 = vunpack.c.l.b16 %v964
    %v1657 = vunpack.c.h.b16 %v964
    %v1658 = vunpack.c.l.b16 %v965
    %v1659 = vunpack.c.h.b16 %v965
    %v1660 = vunpack.c.l.b16 %v966
    %v1661 = vpack.c.b16 %v1238, %v1229
    %v1662 = vpack.c.b16 %v1239, %v1230
    %v1663 = vpack.c.b16 %v1240, %v1231
    %v1664 = vpack.c.b16 %v1241, %v1232
    %v1665 = vpack.c.b16 %v1242, %v1233
    %v1666 = vpack.c.b16 %v1243, %v1234
    %v1667 = vpack.c.b16 %v1244, %v1235
    %v1668 = vpack.c.b16 %v1245, %v1236
    %v1669 = vpack.c.b16 %v1246, %v1237
    %v1670 = vpack.c.b16 %v1256, %v1247
    %v1671 = vpack.c.b16 %v1257, %v1248
    %v1672 = vpack.c.b16 %v1258, %v1249
    %v1673 = vpack.c.b16 %v1259, %v1250
    %v1674 = vpack.c.b16 %v1260, %v1251
    %v1675 = vpack.c.b16 %v1261, %v1252
    %v1676 = vpack.c.b16 %v1262, %v1253
    %v1677 = vpack.c.b16 %v1263, %v1254
    %v1678 = vpack.c.b16 %v1264, %v1255
    %v1679 = vpack.c.b16 %v1274, %v1265
    %v1680 = vpack.c.b16 %v1275, %v1266
    %v1681 = vpack.c.b16 %v1276, %v1267
    %v1682 = vpack.c.b16 %v1277, %v1268
    %v1683 = vpack.c.b16 %v1278, %v1269
    %v1684 = vpack.c.b16 %v1279, %v1270
    %v1685 = vpack.c.b16 %v1280, %v1271
    %v1686 = vpack.c.b16 %v1281, %v1272
    %v1687 = vpack.c.b16 %v1282, %v1273
    %v1688 = vpack.c.b16 %v1292, %v1283
    %v1689 = vpack.c.b16 %v1293, %v1284
    %v1690 = vpack.c.b16 %v1294, %v1285
    %v1691 = vpack.c.b16 %v1295, %v1286
    %v1692 = vpack.c.b16 %v1296, %v1287
    %v1693 = vpack.c.b16 %v1297, %v1288
    %v1694 = vpack.c.b16 %v1298, %v1289
    %v1695 = vpack.c.b16 %v1299, %v1290
    %v1696 = vpack.c.b16 %v1300, %v1291
    %v1697 = vpack.c.b16 %v1310, %v1301
    %v1698 = vpack.c.b16 %v1311, %v1302
    %v1699 = vpack.c.b16 %v1312, %v1303
    %v1700 = vpack.c.b16 %v1313, %v1304
    %v1701 = vpack.c.b16 %v1314, %v1305
    %v1702 = vpack.c.b16 %v1315, %v1306
    %v1703 = vpack.c.b16 %v1316, %v1307
    %v1704 = vpack.c.b16 %v1317, %v1308
    %v1705 = vpack.c.b16 %v1318, %v1309
    %v1706 = vpack.c.b16 %v1328, %v1319
    %v1707 = vpack.c.b16 %v1329, %v1320
    %v1708 = vpack.c.b16 %v1330, %v1321
    %v1709 = vpack.c.b16 %v1331, %v1322
    %v1710 = vpack.c.b16 %v1332, %v1323
    %v1711 = vpack.c.b16 %v1333, %v1324
    %v1712 = vpack.c.b16 %v1334, %v1325
    %v1713 = vpack.c.b16 %v1335, %v1326
    %v1714 = vpack.c.b16 %v1336, %v1327
    %v1715 = vpack.c.b16 %v1346, %v1337
    %v1716 = vpack.c.b16 %v1347, %v1338
    %v1717 = vpack.c.b16 %v1348, %v1339
    %v1718 = vpack.c.b16 %v1349, %v1340
    %v1719 = vpack.c.b16 %v1350, %v1341
    %v1720 = vpack.c.b16 %v1351, %v1342
    %v1721 = vpack.c.b16 %v1352, %v1343
    %v1722 = vpack.c.b16 %v1353, %v1344
    %v1723 = vpack.c.b16 %v1354, %v1345
    %v1724 = vpack.c.b16 %v1364, %v1355
    %v1725 = vpack.c.b16 %v1365, %v1356
    %v1726 = vpack.c.b16 %v1366, %v1357
    %v1727 = vpack.c.b16 %v1367, %v1358
    %v1728 = vpack.c.b16 %v1368, %v1359
    %v1729 = vpack.c.b16 %v1369, %v1360
    %v1730 = vpack.c.b16 %v1370, %v1361
    %v1731 = vpack.c.b16 %v1371, %v1362
    %v1732 = vpack.c.b16 %v1372, %v1363
    %v1733 = vpack.c.b16 %v1382, %v1373
    %v1734 = vpack.c.b16 %v1383, %v1374
    %v1735 = vpack.c.b16 %v1384, %v1375
    %v1736 = vpack.c.b16 %v1385, %v1376
    %v1737 = vpack.c.b16 %v1386, %v1377
    %v1738 = vpack.c.b16 %v1387, %v1378
    %v1739 = vpack.c.b16 %v1388, %v1379
    %v1740 = vpack.c.b16 %v1389, %v1380
    %v1741 = vpack.c.b16 %v1390, %v1381
    %v1742 = vpack.c.b16 %v1400, %v1391
    %v1743 = vpack.c.b16 %v1401, %v1392
    %v1744 = vpack.c.b16 %v1402, %v1393
    %v1745 = vpack.c.b16 %v1403, %v1394
    %v1746 = vpack.c.b16 %v1404, %v1395
    %v1747 = vpack.c.b16 %v1405, %v1396
    %v1748 = vpack.c.b16 %v1406, %v1397
    %v1749 = vpack.c.b16 %v1407, %v1398
    %v1750 = vpack.c.b16 %v1408, %v1399
    %v1751 = vpack.c.b16 %v1418, %v1409
    %v1752 = vpack.c.b16 %v1419, %v1410
    %v1753 = vpack.c.b16 %v1420, %v1411
    %v1754 = vpack.c.b16 %v1421, %v1412
    %v1755 = vpack.c.b16 %v1422, %v1413
    %v1756 = vpack.c.b16 %v1423, %v1414
    %v1757 = vpack.c.b16 %v1424, %v1415
    %v1758 = vpack.c.b16 %v1425, %v1416
    %v1759 = vpack.c.b16 %v1426, %v1417
    %v1760 = vpack.c.b16 %v1436, %v1427
    %v1761 = vpack.c.b16 %v1437, %v1428
    %v1762 = vpack.c.b16 %v1438, %v1429
    %v1763 = vpack.c.b16 %v1439, %v1430
    %v1764 = vpack.c.b16 %v1440, %v1431
    %v1765 = vpack.c.b16 %v1441, %v1432
    %v1766 = vpack.c.b16 %v1442, %v1433
    %v1767 = vpack.c.b16 %v1443, %v1434
    %v1768 = vpack.c.b16 %v1444, %v1435
    %v1769 = vpack.c.b16 %v1454, %v1445
    %v1770 = vpack.c.b16 %v1455, %v1446
    %v1771 = vpack.c.b16 %v1456, %v1447
    %v1772 = vpack.c.b16 %v1457, %v1448
    %v1773 = vpack.c.b16 %v1458, %v1449
    %v1774 = vpack.c.b16 %v1459, %v1450
    %v1775 = vpack.c.b16 %v1460, %v1451
    %v1776 = vpack.c.b16 %v1461, %v1452
    %v1777 = vpack.c.b16 %v1462, %v1453
    %v1778 = vpack.c.b16 %v1472, %v1463
    %v1779 = vpack.c.b16 %v1473, %v1464
    %v1780 = vpack.c.b16 %v1474, %v1465
    %v1781 = vpack.c.b16 %v1475, %v1466
    %v1782 = vpack.c.b16 %v1476, %v1467
    %v1783 = vpack.c.b16 %v1477, %v1468
    %v1784 = vpack.c.b16 %v1478, %v1469
    %v1785 = vpack.c.b16 %v1479, %v1470
    %v1786 = vpack.c.b16 %v1480, %v1471
    %v1787 = vpack.c.b16 %v1490, %v1481
    %v1788 = vpack.c.b16 %v1491, %v1482
    %v1789 = vpack.c.b16 %v1492, %v1483
    %v1790 = vpack.c.b16 %v1493, %v1484
    %v1791 = vpack.c.b16 %v1494, %v1485
    %v1792 = vpack.c.b16 %v1495, %v1486
    %v1793 = vpack.c.b16 %v1496, %v1487
    %v1794 = vpack.c.b16 %v1497, %v1488
    %v1795 = vpack.c.b16 %v1498, %v1489
    %v1796 = vpack.c.b16 %v1508, %v1499
    %v1797 = vpack.c.b16 %v1509, %v1500
    %v1798 = vpack.c.b16 %v1510, %v1501
    %v1799 = vpack.c.b16 %v1511, %v1502
    %v1800 = vpack.c.b16 %v1512, %v1503
    %v1801 = vpack.c.b16 %v1513, %v1504
    %v1802 = vpack.c.b16 %v1514, %v1505
    %v1803 = vpack.c.b16 %v1515, %v1506
    %v1804 = vpack.c.b16 %v1516, %v1507
    %v1805 = vpack.c.b16 %v1526, %v1517
    %v1806 = vpack.c.b16 %v1527, %v1518
    %v1807 = vpack.c.b16 %v1528, %v1519
    %v1808 = vpack.c.b16 %v1529, %v1520
    %v1809 = vpack.c.b16 %v1530, %v1521
    %v1810 = vpack.c.b16 %v1531, %v1522
    %v1811 = vpack.c.b16 %v1532, %v1523
    %v1812 = vpack.c.b16 %v1533, %v1524
    %v1813 = vpack.c.b16 %v1534, %v1525
    %v1814 = vpack.c.b16 %v1544, %v1535
    %v1815 = vpack.c.b16 %v1545, %v1536
    %v1816 = vpack.c.b16 %v1546, %v1537
    %v1817 = vpack.c.b16 %v1547, %v1538
    %v1818 = vpack.c.b16 %v1548, %v1539
    %v1819 = vpack.c.b16 %v1549, %v1540
    %v1820 = vpack.c.b16 %v1550, %v1541
    %v1821 = vpack.c.b16 %v1551, %v1542
    %v1822 = vpack.c.b16 %v1552, %v1543
    %v1823 = vpack.c.b16 %v1562, %v1553
    %v1824 = vpack.c.b16 %v1563, %v1554
    %v1825 = vpack.c.b16 %v1564, %v1555
    %v1826 = vpack.c.b16 %v1565, %v1556
    %v1827 = vpack.c.b16 %v1566, %v1557
    %v1828 = vpack.c.b16 %v1567, %v1558
    %v1829 = vpack.c.b16 %v1568, %v1559
    %v1830 = vpack.c.b16 %v1569, %v1560
    %v1831 = vpack.c.b16 %v1570, %v1561
    %v1832 = vpack.c.b16 %v1580, %v1571
    %v1833 = vpack.c.b16 %v1581, %v1572
    %v1834 = vpack.c.b16 %v1582, %v1573
    %v1835 = vpack.c.b16 %v1583, %v1574
    %v1836 = vpack.c.b16 %v1584, %v1575
    %v1837 = vpack.c.b16 %v1585, %v1576
    %v1838 = vpack.c.b16 %v1586, %v1577
    %v1839 = vpack.c.b16 %v1587, %v1578
    %v1840 = vpack.c.b16 %v1588, %v1579
    %v1841 = vpack.c.b16 %v1598, %v1589
    %v1842 = vpack.c.b16 %v1599, %v1590
    %v1843 = vpack.c.b16 %v1600, %v1591
    %v1844 = vpack.c.b16 %v1601, %v1592
    %v1845 = vpack.c.b16 %v1602, %v1593
    %v1846 = vpack.c.b16 %v1603, %v1594
    %v1847 = vpack.c.b16 %v1604, %v1595
    %v1848 = vpack.c.b16 %v1605, %v1596
    %v1849 = vpack.c.b16 %v1606, %v1597
    %v1850 = vpack.c.b16 %v1616, %v1607
    %v1851 = vpack.c.b16 %v1617, %v1608
    %v1852 = vpack.c.b16 %v1618, %v1609
    %v1853 = vpack.c.b16 %v1619, %v1610
    %v1854 = vpack.c.b16 %v1620, %v1611
    %v1855 = vpack.c.b16 %v1621, %v1612
    %v1856 = vpack.c.b16 %v1622, %v1613
    %v1857 = vpack.c.b16 %v1623, %v1614
    %v1858 = vpack.c.b16 %v1624, %v1615
    %v1859 = vpack.c.b16 %v1634, %v1625
    %v1860 = vpack.c.b16 %v1635, %v1626
    %v1861 = vpack.c.b16 %v1636, %v1627
    %v1862 = vpack.c.b16 %v1637, %v1628
    %v1863 = vpack.c.b16 %v1638, %v1629
    %v1864 = vpack.c.b16 %v1639, %v1630
    %v1865 = vpack.c.b16 %v1640, %v1631
    %v1866 = vpack.c.b16 %v1641, %v1632
    %v1867 = vpack.c.b16 %v1642, %v1633
    %v1868 = vpack.c.b16 %v1652, %v1643
    %v1869 = vpack.c.b16 %v1653, %v1644
    %v1870 = vpack.c.b16 %v1654, %v1645
    %v1871 = vpack.c.b16 %v1655, %v1646
    %v1872 = vpack.c.b16 %v1656, %v1647
    %v1873 = vpack.c.b16 %v1657, %v1648
    %v1874 = vpack.c.b16 %v1658, %v1649
    %v1875 = vpack.c.b16 %v1659, %v1650
    %v1876 = vpack.c.b16 %v1660, %v1651
    %2093 = vmatpush.bf16.msra.mxu0 %v1724
    %2094 = vmatpush.bf16.msra.mxu0 %v1715
    %2095 = vmatpush.bf16.msra.mxu0 %v1706
    %2096 = vmatpush.bf16.msra.mxu0 %v1697
    %2097 = vmatpush.bf16.msra.mxu0 %v1688
    %2098 = vmatpush.bf16.msra.mxu0 %v1679
    %2099 = vmatpush.bf16.msra.mxu0 %v1670
    %2100 = vmatpush.bf16.msra.mxu0 %v1661
    %2101 = vmatmul.bf16.gmra.mxu0 %v717
    %v2102 = vpop.f32.mrf.mxu0
    %v2103 = vadd.f32 %v971, %v2102
    %v2104 = vpop.f32.mrf.mxu0
    %v2105 = vadd.f32 %v971, %v2104
    %2106 = vdwg.mxu0
    %2107 = vmatpush.bf16.msra.mxu0 %v1796
    %2108 = vmatpush.bf16.msra.mxu0 %v1787
    %2109 = vmatpush.bf16.msra.mxu0 %v1778
    %2110 = vmatpush.bf16.msra.mxu0 %v1769
    %2111 = vmatpush.bf16.msra.mxu0 %v1760
    %2112 = vmatpush.bf16.msra.mxu0 %v1751
    %2113 = vmatpush.bf16.msra.mxu0 %v1742
    %2114 = vmatpush.bf16.msra.mxu0 %v1733
    %2115 = vmatmul.bf16.gmra.mxu0 %v721
    %v2116 = vpop.f32.mrf.mxu0
    %v2117 = vadd.f32 %v2103, %v2116
    %v2118 = vpop.f32.mrf.mxu0
    %v2119 = vadd.f32 %v2105, %v2118
    %2120 = vdwg.mxu0
    %2121 = vmatpush.bf16.msra.mxu0 %v1868
    %2122 = vmatpush.bf16.msra.mxu0 %v1859
    %2123 = vmatpush.bf16.msra.mxu0 %v1850
    %2124 = vmatpush.bf16.msra.mxu0 %v1841
    %2125 = vmatpush.bf16.msra.mxu0 %v1832
    %2126 = vmatpush.bf16.msra.mxu0 %v1823
    %2127 = vmatpush.bf16.msra.mxu0 %v1814
    %2128 = vmatpush.bf16.msra.mxu0 %v1805
    %2129 = vmatmul.bf16.gmra.mxu0 %v725
    %v2130 = vpop.f32.mrf.mxu0
    %v2131 = vadd.f32 %v2117, %v2130
    %v2132 = vpop.f32.mrf.mxu0
    %v2133 = vadd.f32 %v2119, %v2132
    %2134 = vdwg.mxu0
    %2135 = vmatpush.bf16.msra.mxu0 %v1725
    %2136 = vmatpush.bf16.msra.mxu0 %v1716
    %2137 = vmatpush.bf16.msra.mxu0 %v1707
    %2138 = vmatpush.bf16.msra.mxu0 %v1698
    %2139 = vmatpush.bf16.msra.mxu0 %v1689
    %2140 = vmatpush.bf16.msra.mxu0 %v1680
    %2141 = vmatpush.bf16.msra.mxu0 %v1671
    %2142 = vmatpush.bf16.msra.mxu0 %v1662
    %2143 = vmatmul.bf16.gmra.mxu0 %v717
    %v2144 = vpop.f32.mrf.mxu0
    %v2145 = vadd.f32 %v972, %v2144
    %v2146 = vpop.f32.mrf.mxu0
    %v2147 = vadd.f32 %v972, %v2146
    %2148 = vdwg.mxu0
    %2149 = vmatpush.bf16.msra.mxu0 %v1797
    %2150 = vmatpush.bf16.msra.mxu0 %v1788
    %2151 = vmatpush.bf16.msra.mxu0 %v1779
    %2152 = vmatpush.bf16.msra.mxu0 %v1770
    %2153 = vmatpush.bf16.msra.mxu0 %v1761
    %2154 = vmatpush.bf16.msra.mxu0 %v1752
    %2155 = vmatpush.bf16.msra.mxu0 %v1743
    %2156 = vmatpush.bf16.msra.mxu0 %v1734
    %2157 = vmatmul.bf16.gmra.mxu0 %v721
    %v2158 = vpop.f32.mrf.mxu0
    %v2159 = vadd.f32 %v2145, %v2158
    %v2160 = vpop.f32.mrf.mxu0
    %v2161 = vadd.f32 %v2147, %v2160
    %2162 = vdwg.mxu0
    %2163 = vmatpush.bf16.msra.mxu0 %v1869
    %2164 = vmatpush.bf16.msra.mxu0 %v1860
    %2165 = vmatpush.bf16.msra.mxu0 %v1851
    %2166 = vmatpush.bf16.msra.mxu0 %v1842
    %2167 = vmatpush.bf16.msra.mxu0 %v1833
    %2168 = vmatpush.bf16.msra.mxu0 %v1824
    %2169 = vmatpush.bf16.msra.mxu0 %v1815
    %2170 = vmatpush.bf16.msra.mxu0 %v1806
    %2171 = vmatmul.bf16.gmra.mxu0 %v725
    %v2172 = vpop.f32.mrf.mxu0
    %v2173 = vadd.f32 %v2159, %v2172
    %v2174 = vpop.f32.mrf.mxu0
    %v2175 = vadd.f32 %v2161, %v2174
    %2176 = vdwg.mxu0
    %2177 = vmatpush.bf16.msra.mxu0 %v1726
    %2178 = vmatpush.bf16.msra.mxu0 %v1717
    %2179 = vmatpush.bf16.msra.mxu0 %v1708
    %2180 = vmatpush.bf16.msra.mxu0 %v1699
    %2181 = vmatpush.bf16.msra.mxu0 %v1690
    %2182 = vmatpush.bf16.msra.mxu0 %v1681
    %2183 = vmatpush.bf16.msra.mxu0 %v1672
    %2184 = vmatpush.bf16.msra.mxu0 %v1663
    %2185 = vmatmul.bf16.gmra.mxu0 %v717
    %v2186 = vpop.f32.mrf.mxu0
    %v2187 = vadd.f32 %v973, %v2186
    %v2188 = vpop.f32.mrf.mxu0
    %v2189 = vadd.f32 %v973, %v2188
    %2190 = vdwg.mxu0
    %2191 = vmatpush.bf16.msra.mxu0 %v1798
    %2192 = vmatpush.bf16.msra.mxu0 %v1789
    %2193 = vmatpush.bf16.msra.mxu0 %v1780
    %2194 = vmatpush.bf16.msra.mxu0 %v1771
    %2195 = vmatpush.bf16.msra.mxu0 %v1762
    %2196 = vmatpush.bf16.msra.mxu0 %v1753
    %2197 = vmatpush.bf16.msra.mxu0 %v1744
    %2198 = vmatpush.bf16.msra.mxu0 %v1735
    %2199 = vmatmul.bf16.gmra.mxu0 %v721
    %v2200 = vpop.f32.mrf.mxu0
    %v2201 = vadd.f32 %v2187, %v2200
    %v2202 = vpop.f32.mrf.mxu0
    %v2203 = vadd.f32 %v2189, %v2202
    %2204 = vdwg.mxu0
    %2205 = vmatpush.bf16.msra.mxu0 %v1870
    %2206 = vmatpush.bf16.msra.mxu0 %v1861
    %2207 = vmatpush.bf16.msra.mxu0 %v1852
    %2208 = vmatpush.bf16.msra.mxu0 %v1843
    %2209 = vmatpush.bf16.msra.mxu0 %v1834
    %2210 = vmatpush.bf16.msra.mxu0 %v1825
    %2211 = vmatpush.bf16.msra.mxu0 %v1816
    %2212 = vmatpush.bf16.msra.mxu0 %v1807
    %2213 = vmatmul.bf16.gmra.mxu0 %v725
    %v2214 = vpop.f32.mrf.mxu0
    %v2215 = vadd.f32 %v2201, %v2214
    %v2216 = vpop.f32.mrf.mxu0
    %v2217 = vadd.f32 %v2203, %v2216
    %2218 = vdwg.mxu0
    %2219 = vmatpush.bf16.msra.mxu0 %v1727
    %2220 = vmatpush.bf16.msra.mxu0 %v1718
    %2221 = vmatpush.bf16.msra.mxu0 %v1709
    %2222 = vmatpush.bf16.msra.mxu0 %v1700
    %2223 = vmatpush.bf16.msra.mxu0 %v1691
    %2224 = vmatpush.bf16.msra.mxu0 %v1682
    %2225 = vmatpush.bf16.msra.mxu0 %v1673
    %2226 = vmatpush.bf16.msra.mxu0 %v1664
    %2227 = vmatmul.bf16.gmra.mxu0 %v717
    %v2228 = vpop.f32.mrf.mxu0
    %v2229 = vadd.f32 %v974, %v2228
    %v2230 = vpop.f32.mrf.mxu0
    %v2231 = vadd.f32 %v974, %v2230
    %2232 = vdwg.mxu0
    %2233 = vmatpush.bf16.msra.mxu0 %v1799
    %2234 = vmatpush.bf16.msra.mxu0 %v1790
    %2235 = vmatpush.bf16.msra.mxu0 %v1781
    %2236 = vmatpush.bf16.msra.mxu0 %v1772
    %2237 = vmatpush.bf16.msra.mxu0 %v1763
    %2238 = vmatpush.bf16.msra.mxu0 %v1754
    %2239 = vmatpush.bf16.msra.mxu0 %v1745
    %2240 = vmatpush.bf16.msra.mxu0 %v1736
    %2241 = vmatmul.bf16.gmra.mxu0 %v721
    %v2242 = vpop.f32.mrf.mxu0
    %v2243 = vadd.f32 %v2229, %v2242
    %v2244 = vpop.f32.mrf.mxu0
    %v2245 = vadd.f32 %v2231, %v2244
    %2246 = vdwg.mxu0
    %2247 = vmatpush.bf16.msra.mxu0 %v1871
    %2248 = vmatpush.bf16.msra.mxu0 %v1862
    %2249 = vmatpush.bf16.msra.mxu0 %v1853
    %2250 = vmatpush.bf16.msra.mxu0 %v1844
    %2251 = vmatpush.bf16.msra.mxu0 %v1835
    %2252 = vmatpush.bf16.msra.mxu0 %v1826
    %2253 = vmatpush.bf16.msra.mxu0 %v1817
    %2254 = vmatpush.bf16.msra.mxu0 %v1808
    %2255 = vmatmul.bf16.gmra.mxu0 %v725
    %v2256 = vpop.f32.mrf.mxu0
    %v2257 = vadd.f32 %v2243, %v2256
    %v2258 = vpop.f32.mrf.mxu0
    %v2259 = vadd.f32 %v2245, %v2258
    %2260 = vdwg.mxu0
    %2261 = vmatpush.bf16.msra.mxu0 %v1728
    %2262 = vmatpush.bf16.msra.mxu0 %v1719
    %2263 = vmatpush.bf16.msra.mxu0 %v1710
    %2264 = vmatpush.bf16.msra.mxu0 %v1701
    %2265 = vmatpush.bf16.msra.mxu0 %v1692
    %2266 = vmatpush.bf16.msra.mxu0 %v1683
    %2267 = vmatpush.bf16.msra.mxu0 %v1674
    %2268 = vmatpush.bf16.msra.mxu0 %v1665
    %2269 = vmatmul.bf16.gmra.mxu0 %v717
    %v2270 = vpop.f32.mrf.mxu0
    %v2271 = vadd.f32 %v975, %v2270
    %v2272 = vpop.f32.mrf.mxu0
    %v2273 = vadd.f32 %v975, %v2272
    %2274 = vdwg.mxu0
    %2275 = vmatpush.bf16.msra.mxu0 %v1800
    %2276 = vmatpush.bf16.msra.mxu0 %v1791
    %2277 = vmatpush.bf16.msra.mxu0 %v1782
    %2278 = vmatpush.bf16.msra.mxu0 %v1773
    %2279 = vmatpush.bf16.msra.mxu0 %v1764
    %2280 = vmatpush.bf16.msra.mxu0 %v1755
    %2281 = vmatpush.bf16.msra.mxu0 %v1746
    %2282 = vmatpush.bf16.msra.mxu0 %v1737
    %2283 = vmatmul.bf16.gmra.mxu0 %v721
    %v2284 = vpop.f32.mrf.mxu0
    %v2285 = vadd.f32 %v2271, %v2284
    %v2286 = vpop.f32.mrf.mxu0
    %v2287 = vadd.f32 %v2273, %v2286
    %2288 = vdwg.mxu0
    %2289 = vmatpush.bf16.msra.mxu0 %v1872
    %2290 = vmatpush.bf16.msra.mxu0 %v1863
    %2291 = vmatpush.bf16.msra.mxu0 %v1854
    %2292 = vmatpush.bf16.msra.mxu0 %v1845
    %2293 = vmatpush.bf16.msra.mxu0 %v1836
    %2294 = vmatpush.bf16.msra.mxu0 %v1827
    %2295 = vmatpush.bf16.msra.mxu0 %v1818
    %2296 = vmatpush.bf16.msra.mxu0 %v1809
    %2297 = vmatmul.bf16.gmra.mxu0 %v725
    %v2298 = vpop.f32.mrf.mxu0
    %v2299 = vadd.f32 %v2285, %v2298
    %v2300 = vpop.f32.mrf.mxu0
    %v2301 = vadd.f32 %v2287, %v2300
    %2302 = vdwg.mxu0
    %2303 = vmatpush.bf16.msra.mxu0 %v1729
    %2304 = vmatpush.bf16.msra.mxu0 %v1720
    %2305 = vmatpush.bf16.msra.mxu0 %v1711
    %2306 = vmatpush.bf16.msra.mxu0 %v1702
    %2307 = vmatpush.bf16.msra.mxu0 %v1693
    %2308 = vmatpush.bf16.msra.mxu0 %v1684
    %2309 = vmatpush.bf16.msra.mxu0 %v1675
    %2310 = vmatpush.bf16.msra.mxu0 %v1666
    %2311 = vmatmul.bf16.gmra.mxu0 %v717
    %v2312 = vpop.f32.mrf.mxu0
    %v2313 = vadd.f32 %v976, %v2312
    %v2314 = vpop.f32.mrf.mxu0
    %v2315 = vadd.f32 %v976, %v2314
    %2316 = vdwg.mxu0
    %2317 = vmatpush.bf16.msra.mxu0 %v1801
    %2318 = vmatpush.bf16.msra.mxu0 %v1792
    %2319 = vmatpush.bf16.msra.mxu0 %v1783
    %2320 = vmatpush.bf16.msra.mxu0 %v1774
    %2321 = vmatpush.bf16.msra.mxu0 %v1765
    %2322 = vmatpush.bf16.msra.mxu0 %v1756
    %2323 = vmatpush.bf16.msra.mxu0 %v1747
    %2324 = vmatpush.bf16.msra.mxu0 %v1738
    %2325 = vmatmul.bf16.gmra.mxu0 %v721
    %v2326 = vpop.f32.mrf.mxu0
    %v2327 = vadd.f32 %v2313, %v2326
    %v2328 = vpop.f32.mrf.mxu0
    %v2329 = vadd.f32 %v2315, %v2328
    %2330 = vdwg.mxu0
    %2331 = vmatpush.bf16.msra.mxu0 %v1873
    %2332 = vmatpush.bf16.msra.mxu0 %v1864
    %2333 = vmatpush.bf16.msra.mxu0 %v1855
    %2334 = vmatpush.bf16.msra.mxu0 %v1846
    %2335 = vmatpush.bf16.msra.mxu0 %v1837
    %2336 = vmatpush.bf16.msra.mxu0 %v1828
    %2337 = vmatpush.bf16.msra.mxu0 %v1819
    %2338 = vmatpush.bf16.msra.mxu0 %v1810
    %2339 = vmatmul.bf16.gmra.mxu0 %v725
    %v2340 = vpop.f32.mrf.mxu0
    %v2341 = vadd.f32 %v2327, %v2340
    %v2342 = vpop.f32.mrf.mxu0
    %v2343 = vadd.f32 %v2329, %v2342
    %2344 = vdwg.mxu0
    %2345 = vmatpush.bf16.msra.mxu0 %v1730
    %2346 = vmatpush.bf16.msra.mxu0 %v1721
    %2347 = vmatpush.bf16.msra.mxu0 %v1712
    %2348 = vmatpush.bf16.msra.mxu0 %v1703
    %2349 = vmatpush.bf16.msra.mxu0 %v1694
    %2350 = vmatpush.bf16.msra.mxu0 %v1685
    %2351 = vmatpush.bf16.msra.mxu0 %v1676
    %2352 = vmatpush.bf16.msra.mxu0 %v1667
    %2353 = vmatmul.bf16.gmra.mxu0 %v717
    %v2354 = vpop.f32.mrf.mxu0
    %v2355 = vadd.f32 %v977, %v2354
    %v2356 = vpop.f32.mrf.mxu0
    %v2357 = vadd.f32 %v977, %v2356
    %2358 = vdwg.mxu0
    %2359 = vmatpush.bf16.msra.mxu0 %v1802
    %2360 = vmatpush.bf16.msra.mxu0 %v1793
    %2361 = vmatpush.bf16.msra.mxu0 %v1784
    %2362 = vmatpush.bf16.msra.mxu0 %v1775
    %2363 = vmatpush.bf16.msra.mxu0 %v1766
    %2364 = vmatpush.bf16.msra.mxu0 %v1757
    %2365 = vmatpush.bf16.msra.mxu0 %v1748
    %2366 = vmatpush.bf16.msra.mxu0 %v1739
    %2367 = vmatmul.bf16.gmra.mxu0 %v721
    %v2368 = vpop.f32.mrf.mxu0
    %v2369 = vadd.f32 %v2355, %v2368
    %v2370 = vpop.f32.mrf.mxu0
    %v2371 = vadd.f32 %v2357, %v2370
    %2372 = vdwg.mxu0
    %2373 = vmatpush.bf16.msra.mxu0 %v1874
    %2374 = vmatpush.bf16.msra.mxu0 %v1865
    %2375 = vmatpush.bf16.msra.mxu0 %v1856
    %2376 = vmatpush.bf16.msra.mxu0 %v1847
    %2377 = vmatpush.bf16.msra.mxu0 %v1838
    %2378 = vmatpush.bf16.msra.mxu0 %v1829
    %2379 = vmatpush.bf16.msra.mxu0 %v1820
    %2380 = vmatpush.bf16.msra.mxu0 %v1811
    %2381 = vmatmul.bf16.gmra.mxu0 %v725
    %v2382 = vpop.f32.mrf.mxu0
    %v2383 = vadd.f32 %v2369, %v2382
    %v2384 = vpop.f32.mrf.mxu0
    %v2385 = vadd.f32 %v2371, %v2384
    %2386 = vdwg.mxu0
    %2387 = vmatpush.bf16.msra.mxu0 %v1731
    %2388 = vmatpush.bf16.msra.mxu0 %v1722
    %2389 = vmatpush.bf16.msra.mxu0 %v1713
    %2390 = vmatpush.bf16.msra.mxu0 %v1704
    %2391 = vmatpush.bf16.msra.mxu0 %v1695
    %2392 = vmatpush.bf16.msra.mxu0 %v1686
    %2393 = vmatpush.bf16.msra.mxu0 %v1677
    %2394 = vmatpush.bf16.msra.mxu0 %v1668
    %2395 = vmatmul.bf16.gmra.mxu0 %v717
    %v2396 = vpop.f32.mrf.mxu0
    %v2397 = vadd.f32 %v978, %v2396
    %v2398 = vpop.f32.mrf.mxu0
    %v2399 = vadd.f32 %v978, %v2398
    %2400 = vdwg.mxu0
    %2401 = vmatpush.bf16.msra.mxu0 %v1803
    %2402 = vmatpush.bf16.msra.mxu0 %v1794
    %2403 = vmatpush.bf16.msra.mxu0 %v1785
    %2404 = vmatpush.bf16.msra.mxu0 %v1776
    %2405 = vmatpush.bf16.msra.mxu0 %v1767
    %2406 = vmatpush.bf16.msra.mxu0 %v1758
    %2407 = vmatpush.bf16.msra.mxu0 %v1749
    %2408 = vmatpush.bf16.msra.mxu0 %v1740
    %2409 = vmatmul.bf16.gmra.mxu0 %v721
    %v2410 = vpop.f32.mrf.mxu0
    %v2411 = vadd.f32 %v2397, %v2410
    %v2412 = vpop.f32.mrf.mxu0
    %v2413 = vadd.f32 %v2399, %v2412
    %2414 = vdwg.mxu0
    %2415 = vmatpush.bf16.msra.mxu0 %v1875
    %2416 = vmatpush.bf16.msra.mxu0 %v1866
    %2417 = vmatpush.bf16.msra.mxu0 %v1857
    %2418 = vmatpush.bf16.msra.mxu0 %v1848
    %2419 = vmatpush.bf16.msra.mxu0 %v1839
    %2420 = vmatpush.bf16.msra.mxu0 %v1830
    %2421 = vmatpush.bf16.msra.mxu0 %v1821
    %2422 = vmatpush.bf16.msra.mxu0 %v1812
    %2423 = vmatmul.bf16.gmra.mxu0 %v725
    %v2424 = vpop.f32.mrf.mxu0
    %v2425 = vadd.f32 %v2411, %v2424
    %v2426 = vpop.f32.mrf.mxu0
    %v2427 = vadd.f32 %v2413, %v2426
    %2428 = vdwg.mxu0
    %2429 = vmatpush.bf16.msra.mxu0 %v1732
    %2430 = vmatpush.bf16.msra.mxu0 %v1723
    %2431 = vmatpush.bf16.msra.mxu0 %v1714
    %2432 = vmatpush.bf16.msra.mxu0 %v1705
    %2433 = vmatpush.bf16.msra.mxu0 %v1696
    %2434 = vmatpush.bf16.msra.mxu0 %v1687
    %2435 = vmatpush.bf16.msra.mxu0 %v1678
    %2436 = vmatpush.bf16.msra.mxu0 %v1669
    %2437 = vmatmul.bf16.gmra.mxu0 %v717
    %v2438 = vpop.f32.mrf.mxu0
    %v2439 = vadd.f32 %v979, %v2438
    %v2440 = vpop.f32.mrf.mxu0
    %v2441 = vadd.f32 %v979, %v2440
    %2442 = vdwg.mxu0
    %2443 = vmatpush.bf16.msra.mxu0 %v1804
    %2444 = vmatpush.bf16.msra.mxu0 %v1795
    %2445 = vmatpush.bf16.msra.mxu0 %v1786
    %2446 = vmatpush.bf16.msra.mxu0 %v1777
    %2447 = vmatpush.bf16.msra.mxu0 %v1768
    %2448 = vmatpush.bf16.msra.mxu0 %v1759
    %2449 = vmatpush.bf16.msra.mxu0 %v1750
    %2450 = vmatpush.bf16.msra.mxu0 %v1741
    %2451 = vmatmul.bf16.gmra.mxu0 %v721
    %v2452 = vpop.f32.mrf.mxu0
    %v2453 = vadd.f32 %v2439, %v2452
    %v2454 = vpop.f32.mrf.mxu0
    %v2455 = vadd.f32 %v2441, %v2454
    %2456 = vdwg.mxu0
    %2457 = vmatpush.bf16.msra.mxu0 %v1876
    %2458 = vmatpush.bf16.msra.mxu0 %v1867
    %2459 = vmatpush.bf16.msra.mxu0 %v1858
    %2460 = vmatpush.bf16.msra.mxu0 %v1849
    %2461 = vmatpush.bf16.msra.mxu0 %v1840
    %2462 = vmatpush.bf16.msra.mxu0 %v1831
    %2463 = vmatpush.bf16.msra.mxu0 %v1822
    %2464 = vmatpush.bf16.msra.mxu0 %v1813
    %2465 = vmatmul.bf16.gmra.mxu0 %v725
    %v2466 = vpop.f32.mrf.mxu0
    %v2467 = vadd.f32 %v2453, %v2466
    %v2468 = vpop.f32.mrf.mxu0
    %v2469 = vadd.f32 %v2455, %v2468
    %2470 = vdwg.mxu0
    %v2471 = vsub.f32 %v2259, %v2257
    %v2472 = vsub.f32 %v2301, %v2299
    %v2473 = vsub.f32 %v2343, %v2341
    %v2474 = vsub.f32 %v2385, %v2383
    %v2475 = vsub.f32 %v2427, %v2425
    %v2476 = vsub.f32 %v2469, %v2467
    %v2477 = vld [vmem:[#allocation16] sm:$0xf]
    %v2478 = vld [vmem:[#allocation16 + $0x4] sm:$0xf]
    %v2479 = vld [vmem:[#allocation16 + $0x8] sm:$0xf]
    %v2480 = vld [vmem:[#allocation16 + $0xc] sm:$0xf]
    %v2481 = vld [vmem:[#allocation16 + $0x10] sm:$0xf]
    %v2482 = vld [vmem:[#allocation16 + $0x14] sm:$0xf]
    %v2483 = vld [vmem:[#allocation16 + $0x18] sm:$0xf]
    %v2484 = vld [vmem:[#allocation16 + $0x1c] sm:$0xf]
    %v2485 = vld [vmem:[#allocation16 + $0x20] sm:$0xf]
    %v2486 = vld [vmem:[#allocation16 + $0x24] sm:$0xf]
    %v2487 = vld [vmem:[#allocation16 + $0x28] sm:$0xf]
    %v2488 = vld [vmem:[#allocation16 + $0x2c] sm:$0xf]
    %v2489 = vld [vmem:[#allocation16 + $0x30] sm:$0xf]
    %v2490 = vld [vmem:[#allocation16 + $0x34] sm:$0xf]
    %v2491 = vld [vmem:[#allocation16 + $0x38] sm:$0xf]
    %v2492 = vld [vmem:[#allocation16 + $0x3c] sm:$0xf]
    %v2493 = vld [vmem:[#allocation16 + $0x40] sm:$0xf]
    %v2494 = vld [vmem:[#allocation16 + $0x44] sm:$0xf]
    %v2495 = vld [vmem:[#allocation16 + $0x48] sm:$0xf]
    %v2496 = vld [vmem:[#allocation16 + $0x4c] sm:$0xf]
    %v2497 = vld [vmem:[#allocation16 + $0x50] sm:$0xf]
    %v2498 = vld [vmem:[#allocation16 + $0x54] sm:$0xf]
    %v2499 = vld [vmem:[#allocation16 + $0x58] sm:$0xf]
    %v2500 = vld [vmem:[#allocation16 + $0x5c] sm:$0xf]
    %v2501 = vld [vmem:[#allocation16 + $0x60] sm:$0xf]
    %v2502 = vld [vmem:[#allocation16 + $0x64] sm:$0xf]
    %v2503 = vld [vmem:[#allocation16 + $0x68] sm:$0xf]
    %v2504 = vld [vmem:[#allocation16 + $0x6c] sm:$0xf]
    %v2505 = vld [vmem:[#allocation16 + $0x70] sm:$0xf]
    %v2506 = vld [vmem:[#allocation16 + $0x74] sm:$0xf]
    %v2507 = vld [vmem:[#allocation16 + $0x78] sm:$0xf]
    %v2508 = vld [vmem:[#allocation16 + $0x7c] sm:$0xf]
    %v2509 = vld [vmem:[#allocation16 + $0x80] sm:$0xf]
    %v2510 = vld [vmem:[#allocation16 + $0x84] sm:$0xf]
    %v2511 = vld [vmem:[#allocation16 + $0x88] sm:$0xf]
    %v2512 = vld [vmem:[#allocation16 + $0x8c] sm:$0xf]
    %v2513 = vld [vmem:[#allocation16 + $0x90] sm:$0xf]
    %v2514 = vld [vmem:[#allocation16 + $0x94] sm:$0xf]
    %v2515 = vld [vmem:[#allocation16 + $0x98] sm:$0xf]
    %v2516 = vld [vmem:[#allocation16 + $0x9c] sm:$0xf]
    %v2517 = vld [vmem:[#allocation16 + $0xa0] sm:$0xf]
    %v2518 = vld [vmem:[#allocation16 + $0xa4] sm:$0xf]
    %v2519 = vld [vmem:[#allocation16 + $0xa8] sm:$0xf]
    %v2520 = vld [vmem:[#allocation16 + $0xac] sm:$0xf]
    %v2521 = vld [vmem:[#allocation16 + $0xb0] sm:$0xf]
    %v2522 = vld [vmem:[#allocation16 + $0xb4] sm:$0xf]
    %v2523 = vld [vmem:[#allocation16 + $0xb8] sm:$0xf]
    %v2524 = vld [vmem:[#allocation16 + $0xbc] sm:$0xf]
    %v2525 = vld [vmem:[#allocation18] sm:$0xff]
    %v2526 = vld [vmem:[#allocation18 + $0x8] sm:$0xf]
    %v2527 = vld [vmem:[#allocation18 + $0xc] sm:$0xff]
    %v2528 = vld [vmem:[#allocation18 + $0x14] sm:$0xf]
    %v2529 = vld [vmem:[#allocation18 + $0x18] sm:$0xff]
    %v2530 = vld [vmem:[#allocation18 + $0x20] sm:$0xf]
    %v2531 = vld [vmem:[#allocation18 + $0x24] sm:$0xff]
    %v2532 = vld [vmem:[#allocation18 + $0x2c] sm:$0xf]
    %v2533 = vld [vmem:[#allocation18 + $0x30] sm:$0xff]
    %v2534 = vld [vmem:[#allocation18 + $0x38] sm:$0xf]
    %v2535 = vld [vmem:[#allocation18 + $0x3c] sm:$0xff]
    %v2536 = vld [vmem:[#allocation18 + $0x44] sm:$0xf]
    %v2537 = vld [vmem:[#allocation18 + $0x48] sm:$0xff]
    %v2538 = vld [vmem:[#allocation18 + $0x50] sm:$0xf]
    %v2539 = vld [vmem:[#allocation18 + $0x54] sm:$0xff]
    %v2540 = vld [vmem:[#allocation18 + $0x5c] sm:$0xf]
    %v2541 = vld [vmem:[#allocation18 + $0x60] sm:$0xff]
    %v2542 = vld [vmem:[#allocation18 + $0x68] sm:$0xf]
    %v2543 = vld [vmem:[#allocation18 + $0x6c] sm:$0xff]
    %v2544 = vld [vmem:[#allocation18 + $0x74] sm:$0xf]
    %v2545 = vld [vmem:[#allocation18 + $0x78] sm:$0xff]
    %v2546 = vld [vmem:[#allocation18 + $0x80] sm:$0xf]
    %v2547 = vld [vmem:[#allocation18 + $0x84] sm:$0xff]
    %v2548 = vld [vmem:[#allocation18 + $0x8c] sm:$0xf]
    %v2549 = vld [vmem:[#allocation18 + $0x90] sm:$0xff]
    %v2550 = vld [vmem:[#allocation18 + $0x98] sm:$0xf]
    %v2551 = vld [vmem:[#allocation18 + $0x9c] sm:$0xff]
    %v2552 = vld [vmem:[#allocation18 + $0xa4] sm:$0xf]
    %v2553 = vld [vmem:[#allocation18 + $0xa8] sm:$0xff]
    %v2554 = vld [vmem:[#allocation18 + $0xb0] sm:$0xf]
    %v2555 = vld [vmem:[#allocation18 + $0xb4] sm:$0xff]
    %v2556 = vld [vmem:[#allocation18 + $0xbc] sm:$0xf]
    %v2557 = vmul.f32 %v2131, %v2471
    %v2558 = vmul.f32 %v2173, %v2472
    %v2559 = vmul.f32 %v2215, %v2473
    %v2560 = vpack.c.bf16 %v2558, %v2557
    %v2561 = vpack.c.bf16 %v2559, %v2559
    %v2562 = vmul.f32 %v2133, %v2471
    %v2563 = vmul.f32 %v2175, %v2472
    %v2564 = vmul.f32 %v2217, %v2473
    %v2565 = vpack.c.bf16 %v2563, %v2562
    %v2566 = vpack.c.bf16 %v2564, %v2564
    %v2569 = vunpack.c.l.b16 %v2560
    %v2570 = vunpack.c.h.b16 %v2560
    %v2571 = vunpack.c.l.b16 %v2561
    %v2572 = vpack.c.b16 %v2569, %v2569
    %v2573 = vpack.c.b16 %v2570, %v2570
    %v2574 = vpack.c.b16 %v2571, %v2571
    %v2577 = vunpack.c.l.b16 %v2565
    %v2578 = vunpack.c.h.b16 %v2565
    %v2579 = vunpack.c.l.b16 %v2566
    %v2580 = vpack.c.b16 %v2577, %v2577
    %v2581 = vpack.c.b16 %v2578, %v2578
    %v2582 = vpack.c.b16 %v2579, %v2579
    %v2585 = vsel %vm714, %v2572, %v2580
    %v2589 = vsel %vm714, %v2573, %v2581
    %v2593 = vsel %vm714, %v2574, %v2582
    %v2643 = vunpack.c.l.b16 %v2477
    %v2644 = vunpack.c.l.b16 %v2478
    %v2645 = vunpack.c.l.b16 %v2479
    %v2646 = vunpack.c.l.b16 %v2480
    %v2647 = vunpack.c.l.b16 %v2481
    %v2648 = vunpack.c.l.b16 %v2482
    %v2649 = vunpack.c.l.b16 %v2483
    %v2650 = vunpack.c.l.b16 %v2484
    %v2651 = vunpack.c.l.b16 %v2485
    %v2652 = vunpack.c.l.b16 %v2486
    %v2653 = vunpack.c.l.b16 %v2487
    %v2654 = vunpack.c.l.b16 %v2488
    %v2655 = vunpack.c.l.b16 %v2489
    %v2656 = vunpack.c.l.b16 %v2490
    %v2657 = vunpack.c.l.b16 %v2491
    %v2658 = vunpack.c.l.b16 %v2492
    %v2659 = vunpack.c.l.b16 %v2493
    %v2660 = vunpack.c.l.b16 %v2494
    %v2661 = vunpack.c.l.b16 %v2495
    %v2662 = vunpack.c.l.b16 %v2496
    %v2663 = vunpack.c.l.b16 %v2497
    %v2664 = vunpack.c.l.b16 %v2498
    %v2665 = vunpack.c.l.b16 %v2499
    %v2666 = vunpack.c.l.b16 %v2500
    %v2667 = vunpack.c.l.b16 %v2501
    %v2668 = vunpack.c.l.b16 %v2502
    %v2669 = vunpack.c.l.b16 %v2503
    %v2670 = vunpack.c.l.b16 %v2504
    %v2671 = vunpack.c.l.b16 %v2505
    %v2672 = vunpack.c.l.b16 %v2506
    %v2673 = vunpack.c.l.b16 %v2507
    %v2674 = vunpack.c.l.b16 %v2508
    %v2675 = vunpack.c.l.b16 %v2509
    %v2676 = vunpack.c.l.b16 %v2510
    %v2677 = vunpack.c.l.b16 %v2511
    %v2678 = vunpack.c.l.b16 %v2512
    %v2679 = vunpack.c.l.b16 %v2513
    %v2680 = vunpack.c.l.b16 %v2514
    %v2681 = vunpack.c.l.b16 %v2515
    %v2682 = vunpack.c.l.b16 %v2516
    %v2683 = vunpack.c.l.b16 %v2517
    %v2684 = vunpack.c.l.b16 %v2518
    %v2685 = vunpack.c.l.b16 %v2519
    %v2686 = vunpack.c.l.b16 %v2520
    %v2687 = vunpack.c.l.b16 %v2521
    %v2688 = vunpack.c.l.b16 %v2522
    %v2689 = vunpack.c.l.b16 %v2523
    %v2690 = vunpack.c.l.b16 %v2524
    %v2691 = vpack.c.b16 %v2644, %v2643
    %v2692 = vpack.c.b16 %v2646, %v2645
    %v2693 = vpack.c.b16 %v2648, %v2647
    %v2694 = vpack.c.b16 %v2650, %v2649
    %v2695 = vpack.c.b16 %v2652, %v2651
    %v2696 = vpack.c.b16 %v2654, %v2653
    %v2697 = vpack.c.b16 %v2656, %v2655
    %v2698 = vpack.c.b16 %v2658, %v2657
    %v2699 = vpack.c.b16 %v2660, %v2659
    %v2700 = vpack.c.b16 %v2662, %v2661
    %v2701 = vpack.c.b16 %v2664, %v2663
    %v2702 = vpack.c.b16 %v2666, %v2665
    %v2703 = vpack.c.b16 %v2668, %v2667
    %v2704 = vpack.c.b16 %v2670, %v2669
    %v2705 = vpack.c.b16 %v2672, %v2671
    %v2706 = vpack.c.b16 %v2674, %v2673
    %v2707 = vpack.c.b16 %v2676, %v2675
    %v2708 = vpack.c.b16 %v2678, %v2677
    %v2709 = vpack.c.b16 %v2680, %v2679
    %v2710 = vpack.c.b16 %v2682, %v2681
    %v2711 = vpack.c.b16 %v2684, %v2683
    %v2712 = vpack.c.b16 %v2686, %v2685
    %v2713 = vpack.c.b16 %v2688, %v2687
    %v2714 = vpack.c.b16 %v2690, %v2689
    %2739 = vmatpush.bf16.msra.mxu0 %v2698
    %2740 = vmatpush.bf16.msra.mxu0 %v2697
    %2741 = vmatpush.bf16.msra.mxu0 %v2696
    %2742 = vmatpush.bf16.msra.mxu0 %v2695
    %2743 = vmatpush.bf16.msra.mxu0 %v2694
    %2744 = vmatpush.bf16.msra.mxu0 %v2693
    %2745 = vmatpush.bf16.msra.mxu0 %v2692
    %2746 = vmatpush.bf16.msra.mxu0 %v2691
    %2747 = vmatmul.bf16.gmra.mxu0 %v2585
    %v2748 = vpop.f32.mrf.mxu0
    %v2749 = vadd.f32 0.0, %v2748
    %v2750 = vpop.f32.mrf.mxu0
    %v2751 = vadd.f32 0.0, %v2750
    %2752 = vdwg.mxu0
    %2753 = vmatpush.bf16.msra.mxu0 %v2706
    %2754 = vmatpush.bf16.msra.mxu0 %v2705
    %2755 = vmatpush.bf16.msra.mxu0 %v2704
    %2756 = vmatpush.bf16.msra.mxu0 %v2703
    %2757 = vmatpush.bf16.msra.mxu0 %v2702
    %2758 = vmatpush.bf16.msra.mxu0 %v2701
    %2759 = vmatpush.bf16.msra.mxu0 %v2700
    %2760 = vmatpush.bf16.msra.mxu0 %v2699
    %2761 = vmatmul.bf16.gmra.mxu0 %v2589
    %v2762 = vpop.f32.mrf.mxu0
    %v2763 = vadd.f32 %v2749, %v2762
    %v2764 = vpop.f32.mrf.mxu0
    %v2765 = vadd.f32 %v2751, %v2764
    %2766 = vdwg.mxu0
    %2767 = vmatpush.bf16.msra.mxu0 %v2714
    %2768 = vmatpush.bf16.msra.mxu0 %v2713
    %2769 = vmatpush.bf16.msra.mxu0 %v2712
    %2770 = vmatpush.bf16.msra.mxu0 %v2711
    %2771 = vmatpush.bf16.msra.mxu0 %v2710
    %2772 = vmatpush.bf16.msra.mxu0 %v2709
    %2773 = vmatpush.bf16.msra.mxu0 %v2708
    %2774 = vmatpush.bf16.msra.mxu0 %v2707
    %2775 = vmatmul.bf16.gmra.mxu0 %v2593
    %v2776 = vpop.f32.mrf.mxu0
    %v2777 = vadd.f32 %v2763, %v2776
    %v2778 = vpop.f32.mrf.mxu0
    %v2779 = vadd.f32 %v2765, %v2778
    %2780 = vdwg.mxu0
    %v2781 = vand.u32 2147483647, %v2777
    %v2782 = vand.u32 2147483647, %v2779
    %v2783 = vsub.f32 0.0, %v2781
    %v2784 = vsub.f32 0.0, %v2782
    %v2785 = vmul.f32 %v2783, 1.442695
    %v2786 = vpow.pop %v2785
    %v2787 = vmul.f32 %v2784, 1.442695
    %v2788 = vpow.pop %v2787
    %v2789 = vadd.f32 %v2786, 1.0
    %v2790 = vadd.f32 %v2788, 1.0
    %v2791 = vrcp.pop %v2789
    %v2792 = vrcp.pop %v2790
    %vm2793 = vcmp.ge.f32.partialorder %v2777, 0.0
    %vm2794 = vcmp.ge.f32.partialorder %v2779, 0.0
    %v2795 = vmul.f32 %v2786, %v2791
    %v2796 = vmul.f32 %v2788, %v2792
    %v2797 = vsel %vm2793, %v2791, %v2795
    %v2798 = vsel %vm2794, %v2792, %v2796
    %v2799 = vpack.c.bf16 %v2798, %v2797
    %v2832 = vunpack.c.l.b16 %v2525
    %v2833 = vunpack.c.h.b16 %v2525
    %v2834 = vunpack.c.l.b16 %v2526
    %v2835 = vunpack.c.l.b16 %v2527
    %v2836 = vunpack.c.h.b16 %v2527
    %v2837 = vunpack.c.l.b16 %v2528
    %v2838 = vunpack.c.l.b16 %v2529
    %v2839 = vunpack.c.h.b16 %v2529
    %v2840 = vunpack.c.l.b16 %v2530
    %v2841 = vunpack.c.l.b16 %v2531
    %v2842 = vunpack.c.h.b16 %v2531
    %v2843 = vunpack.c.l.b16 %v2532
    %v2844 = vunpack.c.l.b16 %v2533
    %v2845 = vunpack.c.h.b16 %v2533
    %v2846 = vunpack.c.l.b16 %v2534
    %v2847 = vunpack.c.l.b16 %v2535
    %v2848 = vunpack.c.h.b16 %v2535
    %v2849 = vunpack.c.l.b16 %v2536
    %v2850 = vunpack.c.l.b16 %v2537
    %v2851 = vunpack.c.h.b16 %v2537
    %v2852 = vunpack.c.l.b16 %v2538
    %v2853 = vunpack.c.l.b16 %v2539
    %v2854 = vunpack.c.h.b16 %v2539
    %v2855 = vunpack.c.l.b16 %v2540
    %v2856 = vunpack.c.l.b16 %v2541
    %v2857 = vunpack.c.h.b16 %v2541
    %v2858 = vunpack.c.l.b16 %v2542
    %v2859 = vunpack.c.l.b16 %v2543
    %v2860 = vunpack.c.h.b16 %v2543
    %v2861 = vunpack.c.l.b16 %v2544
    %v2862 = vunpack.c.l.b16 %v2545
    %v2863 = vunpack.c.h.b16 %v2545
    %v2864 = vunpack.c.l.b16 %v2546
    %v2865 = vunpack.c.l.b16 %v2547
    %v2866 = vunpack.c.h.b16 %v2547
    %v2867 = vunpack.c.l.b16 %v2548
    %v2868 = vunpack.c.l.b16 %v2549
    %v2869 = vunpack.c.h.b16 %v2549
    %v2870 = vunpack.c.l.b16 %v2550
    %v2871 = vunpack.c.l.b16 %v2551
    %v2872 = vunpack.c.h.b16 %v2551
    %v2873 = vunpack.c.l.b16 %v2552
    %v2874 = vunpack.c.l.b16 %v2553
    %v2875 = vunpack.c.h.b16 %v2553
    %v2876 = vunpack.c.l.b16 %v2554
    %v2877 = vunpack.c.l.b16 %v2555
    %v2878 = vunpack.c.h.b16 %v2555
    %v2879 = vunpack.c.l.b16 %v2556
    %v2880 = vpack.c.b16 %v2835, %v2832
    %v2881 = vpack.c.b16 %v2836, %v2833
    %v2882 = vpack.c.b16 %v2837, %v2834
    %v2883 = vpack.c.b16 %v2841, %v2838
    %v2884 = vpack.c.b16 %v2842, %v2839
    %v2885 = vpack.c.b16 %v2843, %v2840
    %v2886 = vpack.c.b16 %v2847, %v2844
    %v2887 = vpack.c.b16 %v2848, %v2845
    %v2888 = vpack.c.b16 %v2849, %v2846
    %v2889 = vpack.c.b16 %v2853, %v2850
    %v2890 = vpack.c.b16 %v2854, %v2851
    %v2891 = vpack.c.b16 %v2855, %v2852
    %v2892 = vpack.c.b16 %v2859, %v2856
    %v2893 = vpack.c.b16 %v2860, %v2857
    %v2894 = vpack.c.b16 %v2861, %v2858
    %v2895 = vpack.c.b16 %v2865, %v2862
    %v2896 = vpack.c.b16 %v2866, %v2863
    %v2897 = vpack.c.b16 %v2867, %v2864
    %v2898 = vpack.c.b16 %v2871, %v2868
    %v2899 = vpack.c.b16 %v2872, %v2869
    %v2900 = vpack.c.b16 %v2873, %v2870
    %v2901 = vpack.c.b16 %v2877, %v2874
    %v2902 = vpack.c.b16 %v2878, %v2875
    %v2903 = vpack.c.b16 %v2879, %v2876
    %2928 = vmatpush.bf16.msra.mxu0 %v2901
    %2929 = vmatpush.bf16.msra.mxu0 %v2898
    %2930 = vmatpush.bf16.msra.mxu0 %v2895
    %2931 = vmatpush.bf16.msra.mxu0 %v2892
    %2932 = vmatpush.bf16.msra.mxu0 %v2889
    %2933 = vmatpush.bf16.msra.mxu0 %v2886
    %2934 = vmatpush.bf16.msra.mxu0 %v2883
    %2935 = vmatpush.bf16.msra.mxu0 %v2880
    %2936 = vmatmul.bf16.gmra.mxu0 %v2799
    %v2937 = vpop.f32.mrf.mxu0
    %v2938 = vadd.f32 0.0, %v2937
    %v2939 = vpop.f32.mrf.mxu0
    %v2940 = vadd.f32 0.0, %v2939
    %2941 = vdwg.mxu0
    %2942 = vmatpush.bf16.msra.mxu0 %v2902
    %2943 = vmatpush.bf16.msra.mxu0 %v2899
    %2944 = vmatpush.bf16.msra.mxu0 %v2896
    %2945 = vmatpush.bf16.msra.mxu0 %v2893
    %2946 = vmatpush.bf16.msra.mxu0 %v2890
    %2947 = vmatpush.bf16.msra.mxu0 %v2887
    %2948 = vmatpush.bf16.msra.mxu0 %v2884
    %2949 = vmatpush.bf16.msra.mxu0 %v2881
    %2950 = vmatmul.bf16.gmra.mxu0 %v2799
    %v2951 = vpop.f32.mrf.mxu0
    %v2952 = vadd.f32 0.0, %v2951
    %v2953 = vpop.f32.mrf.mxu0
    %v2954 = vadd.f32 0.0, %v2953
    %2955 = vdwg.mxu0
    %2956 = vmatpush.bf16.msra.mxu0 %v2903
    %2957 = vmatpush.bf16.msra.mxu0 %v2900
    %2958 = vmatpush.bf16.msra.mxu0 %v2897
    %2959 = vmatpush.bf16.msra.mxu0 %v2894
    %2960 = vmatpush.bf16.msra.mxu0 %v2891
    %2961 = vmatpush.bf16.msra.mxu0 %v2888
    %2962 = vmatpush.bf16.msra.mxu0 %v2885
    %2963 = vmatpush.bf16.msra.mxu0 %v2882
    %2964 = vmatmul.bf16.gmra.mxu0 %v2799
    %v2965 = vpop.f32.mrf.mxu0
    %v2966 = vadd.f32 0.0, %v2965
    %v2967 = vpop.f32.mrf.mxu0
    %v2968 = vadd.f32 0.0, %v2967
    %2969 = vdwg.mxu0
    %v2970 = vmul.f32 %v2938, %v2474
    %v2971 = vmul.f32 %v2952, %v2475
    %v2972 = vmul.f32 %v2966, %v2476
    %v2973 = vadd.f32 %v2383, %v2970
    %v2974 = vadd.f32 %v2425, %v2971
    %v2975 = vadd.f32 %v2467, %v2972
    %v2976 = vmul.f32 %v2940, %v2474
    %v2977 = vmul.f32 %v2954, %v2475
    %v2978 = vmul.f32 %v2968, %v2476
    %v2979 = vadd.f32 %v2383, %v2976
    %v2980 = vadd.f32 %v2425, %v2977
    %v2981 = vadd.f32 %v2467, %v2978
    %v2982 = vpack.c.bf16 %v2974, %v2973
    %v2983 = vpack.c.bf16 %v2975, %v2975
    %v2984 = vpack.c.bf16 %v2980, %v2979
    %v2985 = vpack.c.bf16 %v2981, %v2981
    %v2988 = vunpack.c.l.b16 %v2982
    %v2989 = vunpack.c.h.b16 %v2982
    %v2990 = vunpack.c.l.b16 %v2983
    %v2991 = vpack.c.b16 %v2988, %v2988
    %v2992 = vpack.c.b16 %v2989, %v2989
    %v2993 = vpack.c.b16 %v2990, %v2990
    %v2996 = vunpack.c.l.b16 %v2984
    %v2997 = vunpack.c.h.b16 %v2984
    %v2998 = vunpack.c.l.b16 %v2985
    %v2999 = vpack.c.b16 %v2996, %v2996
    %v3000 = vpack.c.b16 %v2997, %v2997
    %v3001 = vpack.c.b16 %v2998, %v2998
    %v3004 = vsel %vm714, %v2991, %v2999
    %v3008 = vsel %vm714, %v2992, %v3000
    %v3012 = vsel %vm714, %v2993, %v3001
    %v3014 = vld [vmem:[#allocation10] sm:$0xff]
    %v3015 = vld [vmem:[#allocation10 + $0x8] sm:$0xf]
    %v3016 = vld [vmem:[#allocation10 + $0xc] sm:$0xff]
    %v3017 = vld [vmem:[#allocation10 + $0x14] sm:$0xf]
    %v3018 = vld [vmem:[#allocation10 + $0x18] sm:$0xff]
    %v3019 = vld [vmem:[#allocation10 + $0x20] sm:$0xf]
    %v3020 = vld [vmem:[#allocation10 + $0x24] sm:$0xff]
    %v3021 = vld [vmem:[#allocation10 + $0x2c] sm:$0xf]
    %v3022 = vld [vmem:[#allocation10 + $0x30] sm:$0xff]
    %v3023 = vld [vmem:[#allocation10 + $0x38] sm:$0xf]
    %v3024 = vld [vmem:[#allocation10 + $0x3c] sm:$0xff]
    %v3025 = vld [vmem:[#allocation10 + $0x44] sm:$0xf]
    %v3026 = vld [vmem:[#allocation10 + $0x48] sm:$0xff]
    %v3027 = vld [vmem:[#allocation10 + $0x50] sm:$0xf]
    %v3028 = vld [vmem:[#allocation10 + $0x54] sm:$0xff]
    %v3029 = vld [vmem:[#allocation10 + $0x5c] sm:$0xf]
    %v3030 = vld [vmem:[#allocation10 + $0x60] sm:$0xff]
    %v3031 = vld [vmem:[#allocation10 + $0x68] sm:$0xf]
    %v3032 = vld [vmem:[#allocation10 + $0x6c] sm:$0xff]
    %v3033 = vld [vmem:[#allocation10 + $0x74] sm:$0xf]
    %v3034 = vld [vmem:[#allocation10 + $0x78] sm:$0xff]
    %v3035 = vld [vmem:[#allocation10 + $0x80] sm:$0xf]
    %v3036 = vld [vmem:[#allocation10 + $0x84] sm:$0xff]
    %v3037 = vld [vmem:[#allocation10 + $0x8c] sm:$0xf]
    %v3038 = vld [vmem:[#allocation10 + $0x90] sm:$0xff]
    %v3039 = vld [vmem:[#allocation10 + $0x98] sm:$0xf]
    %v3040 = vld [vmem:[#allocation10 + $0x9c] sm:$0xff]
    %v3041 = vld [vmem:[#allocation10 + $0xa4] sm:$0xf]
    %v3042 = vld [vmem:[#allocation10 + $0xa8] sm:$0xff]
    %v3043 = vld [vmem:[#allocation10 + $0xb0] sm:$0xf]
    %v3044 = vld [vmem:[#allocation10 + $0xb4] sm:$0xff]
    %v3045 = vld [vmem:[#allocation10 + $0xbc] sm:$0xf]
    %v3046 = vld [vmem:[#allocation10 + $0xc0] sm:$0xff]
    %v3047 = vld [vmem:[#allocation10 + $0xc8] sm:$0xf]
    %v3048 = vld [vmem:[#allocation10 + $0xcc] sm:$0xff]
    %v3049 = vld [vmem:[#allocation10 + $0xd4] sm:$0xf]
    %v3050 = vld [vmem:[#allocation10 + $0xd8] sm:$0xff]
    %v3051 = vld [vmem:[#allocation10 + $0xe0] sm:$0xf]
    %v3052 = vld [vmem:[#allocation10 + $0xe4] sm:$0xff]
    %v3053 = vld [vmem:[#allocation10 + $0xec] sm:$0xf]
    %v3054 = vld [vmem:[#allocation10 + $0xf0] sm:$0xff]
    %v3055 = vld [vmem:[#allocation10 + $0xf8] sm:$0xf]
    %v3056 = vld [vmem:[#allocation10 + $0xfc] sm:$0xff]
    %v3057 = vld [vmem:[#allocation10 + $0x104] sm:$0xf]
    %v3058 = vld [vmem:[#allocation10 + $0x108] sm:$0xff]
    %v3059 = vld [vmem:[#allocation10 + $0x110] sm:$0xf]
    %v3060 = vld [vmem:[#allocation10 + $0x114] sm:$0xff]
    %v3061 = vld [vmem:[#allocation10 + $0x11c] sm:$0xf]
    %v3062 = vld [vmem:[#allocation10 + $0x120] sm:$0xff]
    %v3063 = vld [vmem:[#allocation10 + $0x128] sm:$0xf]
    %v3064 = vld [vmem:[#allocation10 + $0x12c] sm:$0xff]
    %v3065 = vld [vmem:[#allocation10 + $0x134] sm:$0xf]
    %v3066 = vld [vmem:[#allocation10 + $0x138] sm:$0xff]
    %v3067 = vld [vmem:[#allocation10 + $0x140] sm:$0xf]
    %v3068 = vld [vmem:[#allocation10 + $0x144] sm:$0xff]
    %v3069 = vld [vmem:[#allocation10 + $0x14c] sm:$0xf]
    %v3070 = vld [vmem:[#allocation10 + $0x150] sm:$0xff]
    %v3071 = vld [vmem:[#allocation10 + $0x158] sm:$0xf]
    %v3072 = vld [vmem:[#allocation10 + $0x15c] sm:$0xff]
    %v3073 = vld [vmem:[#allocation10 + $0x164] sm:$0xf]
    %v3074 = vld [vmem:[#allocation10 + $0x168] sm:$0xff]
    %v3075 = vld [vmem:[#allocation10 + $0x170] sm:$0xf]
    %v3076 = vld [vmem:[#allocation10 + $0x174] sm:$0xff]
    %v3077 = vld [vmem:[#allocation10 + $0x17c] sm:$0xf]
    %v3078 = vld [vmem:[#allocation10 + $0x180] sm:$0xff]
    %v3079 = vld [vmem:[#allocation10 + $0x188] sm:$0xf]
    %v3080 = vld [vmem:[#allocation10 + $0x18c] sm:$0xff]
    %v3081 = vld [vmem:[#allocation10 + $0x194] sm:$0xf]
    %v3082 = vld [vmem:[#allocation10 + $0x198] sm:$0xff]
    %v3083 = vld [vmem:[#allocation10 + $0x1a0] sm:$0xf]
    %v3084 = vld [vmem:[#allocation10 + $0x1a4] sm:$0xff]
    %v3085 = vld [vmem:[#allocation10 + $0x1ac] sm:$0xf]
    %v3086 = vld [vmem:[#allocation10 + $0x1b0] sm:$0xff]
    %v3087 = vld [vmem:[#allocation10 + $0x1b8] sm:$0xf]
    %v3088 = vld [vmem:[#allocation10 + $0x1bc] sm:$0xff]
    %v3089 = vld [vmem:[#allocation10 + $0x1c4] sm:$0xf]
    %v3090 = vld [vmem:[#allocation10 + $0x1c8] sm:$0xff]
    %v3091 = vld [vmem:[#allocation10 + $0x1d0] sm:$0xf]
    %v3092 = vld [vmem:[#allocation10 + $0x1d4] sm:$0xff]
    %v3093 = vld [vmem:[#allocation10 + $0x1dc] sm:$0xf]
    %v3094 = vld [vmem:[#allocation10 + $0x1e0] sm:$0xff]
    %v3095 = vld [vmem:[#allocation10 + $0x1e8] sm:$0xf]
    %v3096 = vld [vmem:[#allocation10 + $0x1ec] sm:$0xff]
    %v3097 = vld [vmem:[#allocation10 + $0x1f4] sm:$0xf]
    %v3098 = vld [vmem:[#allocation10 + $0x1f8] sm:$0xff]
    %v3099 = vld [vmem:[#allocation10 + $0x200] sm:$0xf]
    %v3100 = vld [vmem:[#allocation10 + $0x204] sm:$0xff]
    %v3101 = vld [vmem:[#allocation10 + $0x20c] sm:$0xf]
    %v3102 = vld [vmem:[#allocation10 + $0x210] sm:$0xff]
    %v3103 = vld [vmem:[#allocation10 + $0x218] sm:$0xf]
    %v3104 = vld [vmem:[#allocation10 + $0x21c] sm:$0xff]
    %v3105 = vld [vmem:[#allocation10 + $0x224] sm:$0xf]
    %v3106 = vld [vmem:[#allocation10 + $0x228] sm:$0xff]
    %v3107 = vld [vmem:[#allocation10 + $0x230] sm:$0xf]
    %v3108 = vld [vmem:[#allocation10 + $0x234] sm:$0xff]
    %v3109 = vld [vmem:[#allocation10 + $0x23c] sm:$0xf]
    %v3110 = vld [vmem:[#allocation19 + $0x1b] sm:$0x7]
    %v3112 = vperm.slane %v3110, 0
    %v3113 = vperm.slane %v3110, 1
    %v3114 = vperm.slane %v3110, 2
    %v3214 = vunpack.c.l.b16 %v3014
    %v3215 = vunpack.c.h.b16 %v3014
    %v3216 = vunpack.c.l.b16 %v3015
    %v3217 = vunpack.c.l.b16 %v3016
    %v3218 = vunpack.c.h.b16 %v3016
    %v3219 = vunpack.c.l.b16 %v3017
    %v3220 = vunpack.c.l.b16 %v3018
    %v3221 = vunpack.c.h.b16 %v3018
    %v3222 = vunpack.c.l.b16 %v3019
    %v3223 = vunpack.c.l.b16 %v3020
    %v3224 = vunpack.c.h.b16 %v3020
    %v3225 = vunpack.c.l.b16 %v3021
    %v3226 = vunpack.c.l.b16 %v3022
    %v3227 = vunpack.c.h.b16 %v3022
    %v3228 = vunpack.c.l.b16 %v3023
    %v3229 = vunpack.c.l.b16 %v3024
    %v3230 = vunpack.c.h.b16 %v3024
    %v3231 = vunpack.c.l.b16 %v3025
    %v3232 = vunpack.c.l.b16 %v3026
    %v3233 = vunpack.c.h.b16 %v3026
    %v3234 = vunpack.c.l.b16 %v3027
    %v3235 = vunpack.c.l.b16 %v3028
    %v3236 = vunpack.c.h.b16 %v3028
    %v3237 = vunpack.c.l.b16 %v3029
    %v3238 = vunpack.c.l.b16 %v3030
    %v3239 = vunpack.c.h.b16 %v3030
    %v3240 = vunpack.c.l.b16 %v3031
    %v3241 = vunpack.c.l.b16 %v3032
    %v3242 = vunpack.c.h.b16 %v3032
    %v3243 = vunpack.c.l.b16 %v3033
    %v3244 = vunpack.c.l.b16 %v3034
    %v3245 = vunpack.c.h.b16 %v3034
    %v3246 = vunpack.c.l.b16 %v3035
    %v3247 = vunpack.c.l.b16 %v3036
    %v3248 = vunpack.c.h.b16 %v3036
    %v3249 = vunpack.c.l.b16 %v3037
    %v3250 = vunpack.c.l.b16 %v3038
    %v3251 = vunpack.c.h.b16 %v3038
    %v3252 = vunpack.c.l.b16 %v3039
    %v3253 = vunpack.c.l.b16 %v3040
    %v3254 = vunpack.c.h.b16 %v3040
    %v3255 = vunpack.c.l.b16 %v3041
    %v3256 = vunpack.c.l.b16 %v3042
    %v3257 = vunpack.c.h.b16 %v3042
    %v3258 = vunpack.c.l.b16 %v3043
    %v3259 = vunpack.c.l.b16 %v3044
    %v3260 = vunpack.c.h.b16 %v3044
    %v3261 = vunpack.c.l.b16 %v3045
    %v3262 = vunpack.c.l.b16 %v3046
    %v3263 = vunpack.c.h.b16 %v3046
    %v3264 = vunpack.c.l.b16 %v3047
    %v3265 = vunpack.c.l.b16 %v3048
    %v3266 = vunpack.c.h.b16 %v3048
    %v3267 = vunpack.c.l.b16 %v3049
    %v3268 = vunpack.c.l.b16 %v3050
    %v3269 = vunpack.c.h.b16 %v3050
    %v3270 = vunpack.c.l.b16 %v3051
    %v3271 = vunpack.c.l.b16 %v3052
    %v3272 = vunpack.c.h.b16 %v3052
    %v3273 = vunpack.c.l.b16 %v3053
    %v3274 = vunpack.c.l.b16 %v3054
    %v3275 = vunpack.c.h.b16 %v3054
    %v3276 = vunpack.c.l.b16 %v3055
    %v3277 = vunpack.c.l.b16 %v3056
    %v3278 = vunpack.c.h.b16 %v3056
    %v3279 = vunpack.c.l.b16 %v3057
    %v3280 = vunpack.c.l.b16 %v3058
    %v3281 = vunpack.c.h.b16 %v3058
    %v3282 = vunpack.c.l.b16 %v3059
    %v3283 = vunpack.c.l.b16 %v3060
    %v3284 = vunpack.c.h.b16 %v3060
    %v3285 = vunpack.c.l.b16 %v3061
    %v3286 = vunpack.c.l.b16 %v3062
    %v3287 = vunpack.c.h.b16 %v3062
    %v3288 = vunpack.c.l.b16 %v3063
    %v3289 = vunpack.c.l.b16 %v3064
    %v3290 = vunpack.c.h.b16 %v3064
    %v3291 = vunpack.c.l.b16 %v3065
    %v3292 = vunpack.c.l.b16 %v3066
    %v3293 = vunpack.c.h.b16 %v3066
    %v3294 = vunpack.c.l.b16 %v3067
    %v3295 = vunpack.c.l.b16 %v3068
    %v3296 = vunpack.c.h.b16 %v3068
    %v3297 = vunpack.c.l.b16 %v3069
    %v3298 = vunpack.c.l.b16 %v3070
    %v3299 = vunpack.c.h.b16 %v3070
    %v3300 = vunpack.c.l.b16 %v3071
    %v3301 = vunpack.c.l.b16 %v3072
    %v3302 = vunpack.c.h.b16 %v3072
    %v3303 = vunpack.c.l.b16 %v3073
    %v3304 = vunpack.c.l.b16 %v3074
    %v3305 = vunpack.c.h.b16 %v3074
    %v3306 = vunpack.c.l.b16 %v3075
    %v3307 = vunpack.c.l.b16 %v3076
    %v3308 = vunpack.c.h.b16 %v3076
    %v3309 = vunpack.c.l.b16 %v3077
    %v3310 = vunpack.c.l.b16 %v3078
    %v3311 = vunpack.c.h.b16 %v3078
    %v3312 = vunpack.c.l.b16 %v3079
    %v3313 = vunpack.c.l.b16 %v3080
    %v3314 = vunpack.c.h.b16 %v3080
    %v3315 = vunpack.c.l.b16 %v3081
    %v3316 = vunpack.c.l.b16 %v3082
    %v3317 = vunpack.c.h.b16 %v3082
    %v3318 = vunpack.c.l.b16 %v3083
    %v3319 = vunpack.c.l.b16 %v3084
    %v3320 = vunpack.c.h.b16 %v3084
    %v3321 = vunpack.c.l.b16 %v3085
    %v3322 = vunpack.c.l.b16 %v3086
    %v3323 = vunpack.c.h.b16 %v3086
    %v3324 = vunpack.c.l.b16 %v3087
    %v3325 = vunpack.c.l.b16 %v3088
    %v3326 = vunpack.c.h.b16 %v3088
    %v3327 = vunpack.c.l.b16 %v3089
    %v3328 = vunpack.c.l.b16 %v3090
    %v3329 = vunpack.c.h.b16 %v3090
    %v3330 = vunpack.c.l.b16 %v3091
    %v3331 = vunpack.c.l.b16 %v3092
    %v3332 = vunpack.c.h.b16 %v3092
    %v3333 = vunpack.c.l.b16 %v3093
    %v3334 = vunpack.c.l.b16 %v3094
    %v3335 = vunpack.c.h.b16 %v3094
    %v3336 = vunpack.c.l.b16 %v3095
    %v3337 = vunpack.c.l.b16 %v3096
    %v3338 = vunpack.c.h.b16 %v3096
    %v3339 = vunpack.c.l.b16 %v3097
    %v3340 = vunpack.c.l.b16 %v3098
    %v3341 = vunpack.c.h.b16 %v3098
    %v3342 = vunpack.c.l.b16 %v3099
    %v3343 = vunpack.c.l.b16 %v3100
    %v3344 = vunpack.c.h.b16 %v3100
    %v3345 = vunpack.c.l.b16 %v3101
    %v3346 = vunpack.c.l.b16 %v3102
    %v3347 = vunpack.c.h.b16 %v3102
    %v3348 = vunpack.c.l.b16 %v3103
    %v3349 = vunpack.c.l.b16 %v3104
    %v3350 = vunpack.c.h.b16 %v3104
    %v3351 = vunpack.c.l.b16 %v3105
    %v3352 = vunpack.c.l.b16 %v3106
    %v3353 = vunpack.c.h.b16 %v3106
    %v3354 = vunpack.c.l.b16 %v3107
    %v3355 = vunpack.c.l.b16 %v3108
    %v3356 = vunpack.c.h.b16 %v3108
    %v3357 = vunpack.c.l.b16 %v3109
    %v3358 = vpack.c.b16 %v3217, %v3214
    %v3359 = vpack.c.b16 %v3218, %v3215
    %v3360 = vpack.c.b16 %v3219, %v3216
    %v3361 = vpack.c.b16 %v3223, %v3220
    %v3362 = vpack.c.b16 %v3224, %v3221
    %v3363 = vpack.c.b16 %v3225, %v3222
    %v3364 = vpack.c.b16 %v3229, %v3226
    %v3365 = vpack.c.b16 %v3230, %v3227
    %v3366 = vpack.c.b16 %v3231, %v3228
    %v3367 = vpack.c.b16 %v3235, %v3232
    %v3368 = vpack.c.b16 %v3236, %v3233
    %v3369 = vpack.c.b16 %v3237, %v3234
    %v3370 = vpack.c.b16 %v3241, %v3238
    %v3371 = vpack.c.b16 %v3242, %v3239
    %v3372 = vpack.c.b16 %v3243, %v3240
    %v3373 = vpack.c.b16 %v3247, %v3244
    %v3374 = vpack.c.b16 %v3248, %v3245
    %v3375 = vpack.c.b16 %v3249, %v3246
    %v3376 = vpack.c.b16 %v3253, %v3250
    %v3377 = vpack.c.b16 %v3254, %v3251
    %v3378 = vpack.c.b16 %v3255, %v3252
    %v3379 = vpack.c.b16 %v3259, %v3256
    %v3380 = vpack.c.b16 %v3260, %v3257
    %v3381 = vpack.c.b16 %v3261, %v3258
    %v3382 = vpack.c.b16 %v3265, %v3262
    %v3383 = vpack.c.b16 %v3266, %v3263
    %v3384 = vpack.c.b16 %v3267, %v3264
    %v3385 = vpack.c.b16 %v3271, %v3268
    %v3386 = vpack.c.b16 %v3272, %v3269
    %v3387 = vpack.c.b16 %v3273, %v3270
    %v3388 = vpack.c.b16 %v3277, %v3274
    %v3389 = vpack.c.b16 %v3278, %v3275
    %v3390 = vpack.c.b16 %v3279, %v3276
    %v3391 = vpack.c.b16 %v3283, %v3280
    %v3392 = vpack.c.b16 %v3284, %v3281
    %v3393 = vpack.c.b16 %v3285, %v3282
    %v3394 = vpack.c.b16 %v3289, %v3286
    %v3395 = vpack.c.b16 %v3290, %v3287
    %v3396 = vpack.c.b16 %v3291, %v3288
    %v3397 = vpack.c.b16 %v3295, %v3292
    %v3398 = vpack.c.b16 %v3296, %v3293
    %v3399 = vpack.c.b16 %v3297, %v3294
    %v3400 = vpack.c.b16 %v3301, %v3298
    %v3401 = vpack.c.b16 %v3302, %v3299
    %v3402 = vpack.c.b16 %v3303, %v3300
    %v3403 = vpack.c.b16 %v3307, %v3304
    %v3404 = vpack.c.b16 %v3308, %v3305
    %v3405 = vpack.c.b16 %v3309, %v3306
    %v3406 = vpack.c.b16 %v3313, %v3310
    %v3407 = vpack.c.b16 %v3314, %v3311
    %v3408 = vpack.c.b16 %v3315, %v3312
    %v3409 = vpack.c.b16 %v3319, %v3316
    %v3410 = vpack.c.b16 %v3320, %v3317
    %v3411 = vpack.c.b16 %v3321, %v3318
    %v3412 = vpack.c.b16 %v3325, %v3322
    %v3413 = vpack.c.b16 %v3326, %v3323
    %v3414 = vpack.c.b16 %v3327, %v3324
    %v3415 = vpack.c.b16 %v3331, %v3328
    %v3416 = vpack.c.b16 %v3332, %v3329
    %v3417 = vpack.c.b16 %v3333, %v3330
    %v3418 = vpack.c.b16 %v3337, %v3334
    %v3419 = vpack.c.b16 %v3338, %v3335
    %v3420 = vpack.c.b16 %v3339, %v3336
    %v3421 = vpack.c.b16 %v3343, %v3340
    %v3422 = vpack.c.b16 %v3344, %v3341
    %v3423 = vpack.c.b16 %v3345, %v3342
    %v3424 = vpack.c.b16 %v3349, %v3346
    %v3425 = vpack.c.b16 %v3350, %v3347
    %v3426 = vpack.c.b16 %v3351, %v3348
    %v3427 = vpack.c.b16 %v3355, %v3352
    %v3428 = vpack.c.b16 %v3356, %v3353
    %v3429 = vpack.c.b16 %v3357, %v3354
    %3502 = vmatpush.bf16.msra.mxu0 %v3379
    %3503 = vmatpush.bf16.msra.mxu0 %v3376
    %3504 = vmatpush.bf16.msra.mxu0 %v3373
    %3505 = vmatpush.bf16.msra.mxu0 %v3370
    %3506 = vmatpush.bf16.msra.mxu0 %v3367
    %3507 = vmatpush.bf16.msra.mxu0 %v3364
    %3508 = vmatpush.bf16.msra.mxu0 %v3361
    %3509 = vmatpush.bf16.msra.mxu0 %v3358
    %3510 = vmatmul.bf16.gmra.mxu0 %v3004
    %v3511 = vpop.f32.mrf.mxu0
    %v3512 = vadd.f32 %v3112, %v3511
    %v3513 = vpop.f32.mrf.mxu0
    %v3514 = vadd.f32 %v3112, %v3513
    %3515 = vdwg.mxu0
    %3516 = vmatpush.bf16.msra.mxu0 %v3403
    %3517 = vmatpush.bf16.msra.mxu0 %v3400
    %3518 = vmatpush.bf16.msra.mxu0 %v3397
    %3519 = vmatpush.bf16.msra.mxu0 %v3394
    %3520 = vmatpush.bf16.msra.mxu0 %v3391
    %3521 = vmatpush.bf16.msra.mxu0 %v3388
    %3522 = vmatpush.bf16.msra.mxu0 %v3385
    %3523 = vmatpush.bf16.msra.mxu0 %v3382
    %3524 = vmatmul.bf16.gmra.mxu0 %v3008
    %v3525 = vpop.f32.mrf.mxu0
    %v3526 = vadd.f32 %v3512, %v3525
    %v3527 = vpop.f32.mrf.mxu0
    %v3528 = vadd.f32 %v3514, %v3527
    %3529 = vdwg.mxu0
    %3530 = vmatpush.bf16.msra.mxu0 %v3427
    %3531 = vmatpush.bf16.msra.mxu0 %v3424
    %3532 = vmatpush.bf16.msra.mxu0 %v3421
    %3533 = vmatpush.bf16.msra.mxu0 %v3418
    %3534 = vmatpush.bf16.msra.mxu0 %v3415
    %3535 = vmatpush.bf16.msra.mxu0 %v3412
    %3536 = vmatpush.bf16.msra.mxu0 %v3409
    %3537 = vmatpush.bf16.msra.mxu0 %v3406
    %3538 = vmatmul.bf16.gmra.mxu0 %v3012
    %v3539 = vpop.f32.mrf.mxu0
    %v3540 = vadd.f32 %v3526, %v3539
    %v3541 = vpop.f32.mrf.mxu0
    %v3542 = vadd.f32 %v3528, %v3541
    %3543 = vdwg.mxu0
    %3544 = vmatpush.bf16.msra.mxu0 %v3380
    %3545 = vmatpush.bf16.msra.mxu0 %v3377
    %3546 = vmatpush.bf16.msra.mxu0 %v3374
    %3547 = vmatpush.bf16.msra.mxu0 %v3371
    %3548 = vmatpush.bf16.msra.mxu0 %v3368
    %3549 = vmatpush.bf16.msra.mxu0 %v3365
    %3550 = vmatpush.bf16.msra.mxu0 %v3362
    %3551 = vmatpush.bf16.msra.mxu0 %v3359
    %3552 = vmatmul.bf16.gmra.mxu0 %v3004
    %v3553 = vpop.f32.mrf.mxu0
    %v3554 = vadd.f32 %v3113, %v3553
    %v3555 = vpop.f32.mrf.mxu0
    %v3556 = vadd.f32 %v3113, %v3555
    %3557 = vdwg.mxu0
    %3558 = vmatpush.bf16.msra.mxu0 %v3404
    %3559 = vmatpush.bf16.msra.mxu0 %v3401
    %3560 = vmatpush.bf16.msra.mxu0 %v3398
    %3561 = vmatpush.bf16.msra.mxu0 %v3395
    %3562 = vmatpush.bf16.msra.mxu0 %v3392
    %3563 = vmatpush.bf16.msra.mxu0 %v3389
    %3564 = vmatpush.bf16.msra.mxu0 %v3386
    %3565 = vmatpush.bf16.msra.mxu0 %v3383
    %3566 = vmatmul.bf16.gmra.mxu0 %v3008
    %v3567 = vpop.f32.mrf.mxu0
    %v3568 = vadd.f32 %v3554, %v3567
    %v3569 = vpop.f32.mrf.mxu0
    %v3570 = vadd.f32 %v3556, %v3569
    %3571 = vdwg.mxu0
    %3572 = vmatpush.bf16.msra.mxu0 %v3428
    %3573 = vmatpush.bf16.msra.mxu0 %v3425
    %3574 = vmatpush.bf16.msra.mxu0 %v3422
    %3575 = vmatpush.bf16.msra.mxu0 %v3419
    %3576 = vmatpush.bf16.msra.mxu0 %v3416
    %3577 = vmatpush.bf16.msra.mxu0 %v3413
    %3578 = vmatpush.bf16.msra.mxu0 %v3410
    %3579 = vmatpush.bf16.msra.mxu0 %v3407
    %3580 = vmatmul.bf16.gmra.mxu0 %v3012
    %v3581 = vpop.f32.mrf.mxu0
    %v3582 = vadd.f32 %v3568, %v3581
    %v3583 = vpop.f32.mrf.mxu0
    %v3584 = vadd.f32 %v3570, %v3583
    %3585 = vdwg.mxu0
    %3586 = vmatpush.bf16.msra.mxu0 %v3381
    %3587 = vmatpush.bf16.msra.mxu0 %v3378
    %3588 = vmatpush.bf16.msra.mxu0 %v3375
    %3589 = vmatpush.bf16.msra.mxu0 %v3372
    %3590 = vmatpush.bf16.msra.mxu0 %v3369
    %3591 = vmatpush.bf16.msra.mxu0 %v3366
    %3592 = vmatpush.bf16.msra.mxu0 %v3363
    %3593 = vmatpush.bf16.msra.mxu0 %v3360
    %3594 = vmatmul.bf16.gmra.mxu0 %v3004
    %v3595 = vpop.f32.mrf.mxu0
    %v3596 = vadd.f32 %v3114, %v3595
    %v3597 = vpop.f32.mrf.mxu0
    %v3598 = vadd.f32 %v3114, %v3597
    %3599 = vdwg.mxu0
    %3600 = vmatpush.bf16.msra.mxu0 %v3405
    %3601 = vmatpush.bf16.msra.mxu0 %v3402
    %3602 = vmatpush.bf16.msra.mxu0 %v3399
    %3603 = vmatpush.bf16.msra.mxu0 %v3396
    %3604 = vmatpush.bf16.msra.mxu0 %v3393
    %3605 = vmatpush.bf16.msra.mxu0 %v3390
    %3606 = vmatpush.bf16.msra.mxu0 %v3387
    %3607 = vmatpush.bf16.msra.mxu0 %v3384
    %3608 = vmatmul.bf16.gmra.mxu0 %v3008
    %v3609 = vpop.f32.mrf.mxu0
    %v3610 = vadd.f32 %v3596, %v3609
    %v3611 = vpop.f32.mrf.mxu0
    %v3612 = vadd.f32 %v3598, %v3611
    %3613 = vdwg.mxu0
    %3614 = vmatpush.bf16.msra.mxu0 %v3429
    %3615 = vmatpush.bf16.msra.mxu0 %v3426
    %3616 = vmatpush.bf16.msra.mxu0 %v3423
    %3617 = vmatpush.bf16.msra.mxu0 %v3420
    %3618 = vmatpush.bf16.msra.mxu0 %v3417
    %3619 = vmatpush.bf16.msra.mxu0 %v3414
    %3620 = vmatpush.bf16.msra.mxu0 %v3411
    %3621 = vmatpush.bf16.msra.mxu0 %v3408
    %3622 = vmatmul.bf16.gmra.mxu0 %v3012
    %v3623 = vpop.f32.mrf.mxu0
    %v3624 = vadd.f32 %v3610, %v3623
    %v3625 = vpop.f32.mrf.mxu0
    %v3626 = vadd.f32 %v3612, %v3625
    %3627 = vdwg.mxu0
    %v3628 = vld [vmem:[#allocation12] sm:$0xff]
    %v3629 = vld [vmem:[#allocation12 + $0x8] sm:$0xff]
    %v3630 = vld [vmem:[#allocation12 + $0x10] sm:$0xff]
    %v3631 = vld [vmem:[#allocation12 + $0x18] sm:$0xff]
    %v3632 = vld [vmem:[#allocation12 + $0x20] sm:$0xff]
    %v3633 = vld [vmem:[#allocation12 + $0x28] sm:$0xff]
    %v3634 = vld [vmem:[#allocation12 + $0x30] sm:$0xff]
    %v3635 = vld [vmem:[#allocation12 + $0x38] sm:$0xff]
    %v3636 = vld [vmem:[#allocation12 + $0x40] sm:$0xff]
    %v3637 = vld [vmem:[#allocation12 + $0x48] sm:$0xff]
    %v3638 = vld [vmem:[#allocation12 + $0x50] sm:$0xff]
    %v3639 = vld [vmem:[#allocation12 + $0x58] sm:$0xff]
    %v3640 = vld [vmem:[#allocation12 + $0x60] sm:$0xff]
    %v3641 = vld [vmem:[#allocation12 + $0x68] sm:$0xff]
    %v3642 = vld [vmem:[#allocation12 + $0x70] sm:$0xff]
    %v3643 = vld [vmem:[#allocation12 + $0x78] sm:$0xff]
    %v3644 = vld [vmem:[#allocation12 + $0x80] sm:$0xff]
    %v3645 = vld [vmem:[#allocation12 + $0x88] sm:$0xff]
    %v3646 = vld [vmem:[#allocation12 + $0x90] sm:$0xff]
    %v3647 = vld [vmem:[#allocation12 + $0x98] sm:$0xff]
    %v3648 = vld [vmem:[#allocation12 + $0xa0] sm:$0xff]
    %v3649 = vld [vmem:[#allocation12 + $0xa8] sm:$0xff]
    %v3650 = vld [vmem:[#allocation12 + $0xb0] sm:$0xff]
    %v3651 = vld [vmem:[#allocation12 + $0xb8] sm:$0xff]
    %v3652 = vld [vmem:[#allocation12 + $0xc0] sm:$0xff]
    %v3653 = vld [vmem:[#allocation12 + $0xc8] sm:$0xff]
    %v3654 = vld [vmem:[#allocation12 + $0xd0] sm:$0xff]
    %v3655 = vld [vmem:[#allocation12 + $0xd8] sm:$0xff]
    %v3656 = vld [vmem:[#allocation12 + $0xe0] sm:$0xff]
    %v3657 = vld [vmem:[#allocation12 + $0xe8] sm:$0xff]
    %v3658 = vld [vmem:[#allocation12 + $0xf0] sm:$0xff]
    %v3659 = vld [vmem:[#allocation12 + $0xf8] sm:$0xff]
    %v3660 = vld [vmem:[#allocation12 + $0x100] sm:$0xff]
    %v3661 = vld [vmem:[#allocation12 + $0x108] sm:$0xff]
    %v3662 = vld [vmem:[#allocation12 + $0x110] sm:$0xff]
    %v3663 = vld [vmem:[#allocation12 + $0x118] sm:$0xff]
    %v3664 = vld [vmem:[#allocation12 + $0x120] sm:$0xff]
    %v3665 = vld [vmem:[#allocation12 + $0x128] sm:$0xff]
    %v3666 = vld [vmem:[#allocation12 + $0x130] sm:$0xff]
    %v3667 = vld [vmem:[#allocation12 + $0x138] sm:$0xff]
    %v3668 = vld [vmem:[#allocation12 + $0x140] sm:$0xff]
    %v3669 = vld [vmem:[#allocation12 + $0x148] sm:$0xff]
    %v3670 = vld [vmem:[#allocation12 + $0x150] sm:$0xff]
    %v3671 = vld [vmem:[#allocation12 + $0x158] sm:$0xff]
    %v3672 = vld [vmem:[#allocation12 + $0x160] sm:$0xff]
    %v3673 = vld [vmem:[#allocation12 + $0x168] sm:$0xff]
    %v3674 = vld [vmem:[#allocation12 + $0x170] sm:$0xff]
    %v3675 = vld [vmem:[#allocation12 + $0x178] sm:$0xff]
    %v3676 = vld [vmem:[#allocation12 + $0x180] sm:$0xff]
    %v3677 = vld [vmem:[#allocation12 + $0x188] sm:$0xff]
    %v3678 = vld [vmem:[#allocation12 + $0x190] sm:$0xff]
    %v3679 = vld [vmem:[#allocation12 + $0x198] sm:$0xff]
    %v3680 = vld [vmem:[#allocation12 + $0x1a0] sm:$0xff]
    %v3681 = vld [vmem:[#allocation12 + $0x1a8] sm:$0xff]
    %v3682 = vld [vmem:[#allocation12 + $0x1b0] sm:$0xff]
    %v3683 = vld [vmem:[#allocation12 + $0x1b8] sm:$0xff]
    %v3684 = vld [vmem:[#allocation12 + $0x1c0] sm:$0xff]
    %v3685 = vld [vmem:[#allocation12 + $0x1c8] sm:$0xff]
    %v3686 = vld [vmem:[#allocation12 + $0x1d0] sm:$0xff]
    %v3687 = vld [vmem:[#allocation12 + $0x1d8] sm:$0xff]
    %v3688 = vld [vmem:[#allocation12 + $0x1e0] sm:$0xff]
    %v3689 = vld [vmem:[#allocation12 + $0x1e8] sm:$0xff]
    %v3690 = vld [vmem:[#allocation12 + $0x1f0] sm:$0xff]
    %v3691 = vld [vmem:[#allocation12 + $0x1f8] sm:$0xff]
    %v3692 = vld [vmem:[#allocation12 + $0x200] sm:$0xff]
    %v3693 = vld [vmem:[#allocation12 + $0x208] sm:$0xff]
    %v3694 = vld [vmem:[#allocation12 + $0x210] sm:$0xff]
    %v3695 = vld [vmem:[#allocation12 + $0x218] sm:$0xff]
    %v3696 = vld [vmem:[#allocation12 + $0x220] sm:$0xff]
    %v3697 = vld [vmem:[#allocation12 + $0x228] sm:$0xff]
    %v3698 = vld [vmem:[#allocation12 + $0x230] sm:$0xff]
    %v3699 = vld [vmem:[#allocation12 + $0x238] sm:$0xff]
    %v3700 = vld [vmem:[#allocation12 + $0x240] sm:$0xff]
    %v3701 = vld [vmem:[#allocation12 + $0x248] sm:$0xff]
    %v3702 = vld [vmem:[#allocation12 + $0x250] sm:$0xff]
    %v3703 = vld [vmem:[#allocation12 + $0x258] sm:$0xff]
    %v3704 = vld [vmem:[#allocation12 + $0x260] sm:$0xff]
    %v3705 = vld [vmem:[#allocation12 + $0x268] sm:$0xff]
    %v3706 = vld [vmem:[#allocation12 + $0x270] sm:$0xff]
    %v3707 = vld [vmem:[#allocation12 + $0x278] sm:$0xff]
    %v3708 = vld [vmem:[#allocation12 + $0x280] sm:$0xff]
    %v3709 = vld [vmem:[#allocation12 + $0x288] sm:$0xff]
    %v3710 = vld [vmem:[#allocation12 + $0x290] sm:$0xff]
    %v3711 = vld [vmem:[#allocation12 + $0x298] sm:$0xff]
    %v3712 = vld [vmem:[#allocation12 + $0x2a0] sm:$0xff]
    %v3713 = vld [vmem:[#allocation12 + $0x2a8] sm:$0xff]
    %v3714 = vld [vmem:[#allocation12 + $0x2b0] sm:$0xff]
    %v3715 = vld [vmem:[#allocation12 + $0x2b8] sm:$0xff]
    %v3716 = vld [vmem:[#allocation12 + $0x2c0] sm:$0xff]
    %v3717 = vld [vmem:[#allocation12 + $0x2c8] sm:$0xff]
    %v3718 = vld [vmem:[#allocation12 + $0x2d0] sm:$0xff]
    %v3719 = vld [vmem:[#allocation12 + $0x2d8] sm:$0xff]
    %v3720 = vld [vmem:[#allocation12 + $0x2e0] sm:$0xff]
    %v3721 = vld [vmem:[#allocation12 + $0x2e8] sm:$0xff]
    %v3722 = vld [vmem:[#allocation12 + $0x2f0] sm:$0xff]
    %v3723 = vld [vmem:[#allocation12 + $0x2f8] sm:$0xff]
    %v3724 = vld [vmem:[#allocation12 + $0x300] sm:$0xff]
    %v3725 = vld [vmem:[#allocation12 + $0x308] sm:$0xff]
    %v3726 = vld [vmem:[#allocation12 + $0x310] sm:$0xff]
    %v3727 = vld [vmem:[#allocation12 + $0x318] sm:$0xff]
    %v3728 = vld [vmem:[#allocation12 + $0x320] sm:$0xff]
    %v3729 = vld [vmem:[#allocation12 + $0x328] sm:$0xff]
    %v3730 = vld [vmem:[#allocation12 + $0x330] sm:$0xff]
    %v3731 = vld [vmem:[#allocation12 + $0x338] sm:$0xff]
    %v3732 = vld [vmem:[#allocation12 + $0x340] sm:$0xff]
    %v3733 = vld [vmem:[#allocation12 + $0x348] sm:$0xff]
    %v3734 = vld [vmem:[#allocation12 + $0x350] sm:$0xff]
    %v3735 = vld [vmem:[#allocation12 + $0x358] sm:$0xff]
    %v3736 = vld [vmem:[#allocation12 + $0x360] sm:$0xff]
    %v3737 = vld [vmem:[#allocation12 + $0x368] sm:$0xff]
    %v3738 = vld [vmem:[#allocation12 + $0x370] sm:$0xff]
    %v3739 = vld [vmem:[#allocation12 + $0x378] sm:$0xff]
    %v3740 = vld [vmem:[#allocation12 + $0x380] sm:$0xff]
    %v3741 = vld [vmem:[#allocation12 + $0x388] sm:$0xff]
    %v3742 = vld [vmem:[#allocation12 + $0x390] sm:$0xff]
    %v3743 = vld [vmem:[#allocation12 + $0x398] sm:$0xff]
    %v3744 = vld [vmem:[#allocation12 + $0x3a0] sm:$0xff]
    %v3745 = vld [vmem:[#allocation12 + $0x3a8] sm:$0xff]
    %v3746 = vld [vmem:[#allocation12 + $0x3b0] sm:$0xff]
    %v3747 = vld [vmem:[#allocation12 + $0x3b8] sm:$0xff]
    %v3748 = vld [vmem:[#allocation12 + $0x3c0] sm:$0xff]
    %v3749 = vld [vmem:[#allocation12 + $0x3c8] sm:$0xff]
    %v3750 = vld [vmem:[#allocation12 + $0x3d0] sm:$0xff]
    %v3751 = vld [vmem:[#allocation12 + $0x3d8] sm:$0xff]
    %v3752 = vld [vmem:[#allocation12 + $0x3e0] sm:$0xff]
    %v3753 = vld [vmem:[#allocation12 + $0x3e8] sm:$0xff]
    %v3754 = vld [vmem:[#allocation12 + $0x3f0] sm:$0xff]
    %v3755 = vld [vmem:[#allocation12 + $0x3f8] sm:$0xff]
    %v3756 = vld [vmem:[#allocation12 + $0x400] sm:$0xff]
    %v3757 = vld [vmem:[#allocation12 + $0x408] sm:$0xff]
    %v3758 = vld [vmem:[#allocation12 + $0x410] sm:$0xff]
    %v3759 = vld [vmem:[#allocation12 + $0x418] sm:$0xff]
    %v3760 = vld [vmem:[#allocation12 + $0x420] sm:$0xff]
    %v3761 = vld [vmem:[#allocation12 + $0x428] sm:$0xff]
    %v3762 = vld [vmem:[#allocation12 + $0x430] sm:$0xff]
    %v3763 = vld [vmem:[#allocation12 + $0x438] sm:$0xff]
    %v3764 = vld [vmem:[#allocation12 + $0x440] sm:$0xff]
    %v3765 = vld [vmem:[#allocation12 + $0x448] sm:$0xff]
    %v3766 = vld [vmem:[#allocation12 + $0x450] sm:$0xff]
    %v3767 = vld [vmem:[#allocation12 + $0x458] sm:$0xff]
    %v3768 = vld [vmem:[#allocation12 + $0x460] sm:$0xff]
    %v3769 = vld [vmem:[#allocation12 + $0x468] sm:$0xff]
    %v3770 = vld [vmem:[#allocation12 + $0x470] sm:$0xff]
    %v3771 = vld [vmem:[#allocation12 + $0x478] sm:$0xff]
    %v3772 = vpack.c.bf16 %v3540, %v3540
    %v3773 = vpack.c.bf16 %v3582, %v3582
    %v3774 = vpack.c.bf16 %v3624, %v3624
    %v3775 = vld [vmem:[#allocation12 + $0x480] sm:$0xff]
    %v3776 = vld [vmem:[#allocation12 + $0x488] sm:$0xff]
    %v3777 = vld [vmem:[#allocation12 + $0x490] sm:$0xff]
    %v3778 = vld [vmem:[#allocation12 + $0x498] sm:$0xff]
    %v3779 = vld [vmem:[#allocation12 + $0x4a0] sm:$0xff]
    %v3780 = vld [vmem:[#allocation12 + $0x4a8] sm:$0xff]
    %v3781 = vld [vmem:[#allocation12 + $0x4b0] sm:$0xff]
    %v3782 = vld [vmem:[#allocation12 + $0x4b8] sm:$0xff]
    %v3783 = vld [vmem:[#allocation12 + $0x4c0] sm:$0xff]
    %v3784 = vld [vmem:[#allocation12 + $0x4c8] sm:$0xff]
    %v3785 = vld [vmem:[#allocation12 + $0x4d0] sm:$0xff]
    %v3786 = vld [vmem:[#allocation12 + $0x4d8] sm:$0xff]
    %v3787 = vld [vmem:[#allocation12 + $0x4e0] sm:$0xff]
    %v3788 = vld [vmem:[#allocation12 + $0x4e8] sm:$0xff]
    %v3789 = vld [vmem:[#allocation12 + $0x4f0] sm:$0xff]
    %v3790 = vld [vmem:[#allocation12 + $0x4f8] sm:$0xff]
    %v3791 = vld [vmem:[#allocation12 + $0x500] sm:$0xff]
    %v3792 = vld [vmem:[#allocation12 + $0x508] sm:$0xff]
    %v3793 = vld [vmem:[#allocation12 + $0x510] sm:$0xff]
    %v3794 = vld [vmem:[#allocation12 + $0x518] sm:$0xff]
    %v3795 = vld [vmem:[#allocation12 + $0x520] sm:$0xff]
    %v3796 = vld [vmem:[#allocation12 + $0x528] sm:$0xff]
    %v3797 = vld [vmem:[#allocation12 + $0x530] sm:$0xff]
    %v3798 = vld [vmem:[#allocation12 + $0x538] sm:$0xff]
    %v3799 = vld [vmem:[#allocation12 + $0x540] sm:$0xff]
    %v3800 = vld [vmem:[#allocation12 + $0x548] sm:$0xff]
    %v3801 = vld [vmem:[#allocation12 + $0x550] sm:$0xff]
    %v3802 = vld [vmem:[#allocation12 + $0x558] sm:$0xff]
    %v3803 = vld [vmem:[#allocation12 + $0x560] sm:$0xff]
    %v3804 = vld [vmem:[#allocation12 + $0x568] sm:$0xff]
    %v3805 = vld [vmem:[#allocation12 + $0x570] sm:$0xff]
    %v3806 = vld [vmem:[#allocation12 + $0x578] sm:$0xff]
    %v3807 = vld [vmem:[#allocation12 + $0x580] sm:$0xff]
    %v3808 = vld [vmem:[#allocation12 + $0x588] sm:$0xff]
    %v3809 = vld [vmem:[#allocation12 + $0x590] sm:$0xff]
    %v3810 = vld [vmem:[#allocation12 + $0x598] sm:$0xff]
    %v3811 = vld [vmem:[#allocation12 + $0x5a0] sm:$0xff]
    %v3812 = vld [vmem:[#allocation12 + $0x5a8] sm:$0xff]
    %v3813 = vld [vmem:[#allocation12 + $0x5b0] sm:$0xff]
    %v3814 = vld [vmem:[#allocation12 + $0x5b8] sm:$0xff]
    %v3815 = vld [vmem:[#allocation12 + $0x5c0] sm:$0xff]
    %v3816 = vld [vmem:[#allocation12 + $0x5c8] sm:$0xff]
    %v3817 = vld [vmem:[#allocation12 + $0x5d0] sm:$0xff]
    %v3818 = vld [vmem:[#allocation12 + $0x5d8] sm:$0xff]
    %v3819 = vld [vmem:[#allocation12 + $0x5e0] sm:$0xff]
    %v3820 = vld [vmem:[#allocation12 + $0x5e8] sm:$0xff]
    %v3821 = vld [vmem:[#allocation12 + $0x5f0] sm:$0xff]
    %v3822 = vld [vmem:[#allocation12 + $0x5f8] sm:$0xff]
    %v3823 = vld [vmem:[#allocation12 + $0x600] sm:$0xff]
    %v3824 = vld [vmem:[#allocation12 + $0x608] sm:$0xff]
    %v3825 = vld [vmem:[#allocation12 + $0x610] sm:$0xff]
    %v3826 = vld [vmem:[#allocation12 + $0x618] sm:$0xff]
    %v3827 = vld [vmem:[#allocation12 + $0x620] sm:$0xff]
    %v3828 = vld [vmem:[#allocation12 + $0x628] sm:$0xff]
    %v3829 = vld [vmem:[#allocation12 + $0x630] sm:$0xff]
    %v3830 = vld [vmem:[#allocation12 + $0x638] sm:$0xff]
    %v3831 = vld [vmem:[#allocation12 + $0x640] sm:$0xff]
    %v3832 = vld [vmem:[#allocation12 + $0x648] sm:$0xff]
    %v3833 = vld [vmem:[#allocation12 + $0x650] sm:$0xff]
    %v3834 = vld [vmem:[#allocation12 + $0x658] sm:$0xff]
    %v3835 = vld [vmem:[#allocation12 + $0x660] sm:$0xff]
    %v3836 = vld [vmem:[#allocation12 + $0x668] sm:$0xff]
    %v3837 = vld [vmem:[#allocation12 + $0x670] sm:$0xff]
    %v3838 = vld [vmem:[#allocation12 + $0x678] sm:$0xff]
    %v3839 = vld [vmem:[#allocation12 + $0x680] sm:$0xff]
    %v3840 = vld [vmem:[#allocation12 + $0x688] sm:$0xff]
    %v3841 = vld [vmem:[#allocation12 + $0x690] sm:$0xff]
    %v3842 = vld [vmem:[#allocation12 + $0x698] sm:$0xff]
    %v3843 = vld [vmem:[#allocation12 + $0x6a0] sm:$0xff]
    %v3844 = vld [vmem:[#allocation12 + $0x6a8] sm:$0xff]
    %v3845 = vld [vmem:[#allocation12 + $0x6b0] sm:$0xff]
    %v3846 = vld [vmem:[#allocation12 + $0x6b8] sm:$0xff]
    %v3847 = vld [vmem:[#allocation12 + $0x6c0] sm:$0xff]
    %v3848 = vld [vmem:[#allocation12 + $0x6c8] sm:$0xff]
    %v3849 = vld [vmem:[#allocation12 + $0x6d0] sm:$0xff]
    %v3850 = vld [vmem:[#allocation12 + $0x6d8] sm:$0xff]
    %v3851 = vld [vmem:[#allocation12 + $0x6e0] sm:$0xff]
    %v3852 = vld [vmem:[#allocation12 + $0x6e8] sm:$0xff]
    %v3853 = vld [vmem:[#allocation12 + $0x6f0] sm:$0xff]
    %v3854 = vld [vmem:[#allocation12 + $0x6f8] sm:$0xff]
    %v3855 = vld [vmem:[#allocation12 + $0x700] sm:$0xff]
    %v3856 = vld [vmem:[#allocation12 + $0x708] sm:$0xff]
    %v3857 = vld [vmem:[#allocation12 + $0x710] sm:$0xff]
    %v3858 = vld [vmem:[#allocation12 + $0x718] sm:$0xff]
    %v3859 = vld [vmem:[#allocation12 + $0x720] sm:$0xff]
    %v3860 = vld [vmem:[#allocation12 + $0x728] sm:$0xff]
    %v3861 = vld [vmem:[#allocation12 + $0x730] sm:$0xff]
    %v3862 = vld [vmem:[#allocation12 + $0x738] sm:$0xff]
    %v3863 = vld [vmem:[#allocation12 + $0x740] sm:$0xff]
    %v3864 = vld [vmem:[#allocation12 + $0x748] sm:$0xff]
    %v3865 = vld [vmem:[#allocation12 + $0x750] sm:$0xff]
    %v3866 = vld [vmem:[#allocation12 + $0x758] sm:$0xff]
    %v3867 = vld [vmem:[#allocation12 + $0x760] sm:$0xff]
    %v3868 = vld [vmem:[#allocation12 + $0x768] sm:$0xff]
    %v3869 = vld [vmem:[#allocation12 + $0x770] sm:$0xff]
    %v3870 = vld [vmem:[#allocation12 + $0x778] sm:$0xff]
    %v3871 = vld [vmem:[#allocation12 + $0x780] sm:$0xff]
    %v3872 = vld [vmem:[#allocation12 + $0x788] sm:$0xff]
    %v3873 = vld [vmem:[#allocation12 + $0x790] sm:$0xff]
    %v3874 = vld [vmem:[#allocation12 + $0x798] sm:$0xff]
    %v3875 = vld [vmem:[#allocation12 + $0x7a0] sm:$0xff]
    %v3876 = vld [vmem:[#allocation12 + $0x7a8] sm:$0xff]
    %v3877 = vld [vmem:[#allocation12 + $0x7b0] sm:$0xff]
    %v3878 = vld [vmem:[#allocation12 + $0x7b8] sm:$0xff]
    %v3879 = vld [vmem:[#allocation12 + $0x7c0] sm:$0xff]
    %v3880 = vld [vmem:[#allocation12 + $0x7c8] sm:$0xff]
    %v3881 = vld [vmem:[#allocation12 + $0x7d0] sm:$0xff]
    %v3882 = vld [vmem:[#allocation12 + $0x7d8] sm:$0xff]
    %v3883 = vld [vmem:[#allocation12 + $0x7e0] sm:$0xff]
    %v3884 = vld [vmem:[#allocation12 + $0x7e8] sm:$0xff]
    %v3885 = vld [vmem:[#allocation12 + $0x7f0] sm:$0xff]
    %v3886 = vld [vmem:[#allocation12 + $0x7f8] sm:$0xff]
    %v3887 = vld [vmem:[#allocation12 + $0x800] sm:$0xff]
    %v3888 = vld [vmem:[#allocation12 + $0x808] sm:$0xff]
    %v3889 = vld [vmem:[#allocation12 + $0x810] sm:$0xff]
    %v3890 = vld [vmem:[#allocation12 + $0x818] sm:$0xff]
    %v3891 = vld [vmem:[#allocation12 + $0x820] sm:$0xff]
    %v3892 = vld [vmem:[#allocation12 + $0x828] sm:$0xff]
    %v3893 = vld [vmem:[#allocation12 + $0x830] sm:$0xff]
    %v3894 = vld [vmem:[#allocation12 + $0x838] sm:$0xff]
    %v3895 = vld [vmem:[#allocation12 + $0x840] sm:$0xff]
    %v3896 = vld [vmem:[#allocation12 + $0x848] sm:$0xff]
    %v3897 = vld [vmem:[#allocation12 + $0x850] sm:$0xff]
    %v3898 = vld [vmem:[#allocation12 + $0x858] sm:$0xff]
    %v3899 = vld [vmem:[#allocation12 + $0x860] sm:$0xff]
    %v3900 = vld [vmem:[#allocation12 + $0x868] sm:$0xff]
    %v3901 = vld [vmem:[#allocation12 + $0x870] sm:$0xff]
    %v3902 = vld [vmem:[#allocation12 + $0x878] sm:$0xff]
    %v3903 = vld [vmem:[#allocation12 + $0x880] sm:$0xff]
    %v3904 = vld [vmem:[#allocation12 + $0x888] sm:$0xff]
    %v3905 = vld [vmem:[#allocation12 + $0x890] sm:$0xff]
    %v3906 = vld [vmem:[#allocation12 + $0x898] sm:$0xff]
    %v3907 = vld [vmem:[#allocation12 + $0x8a0] sm:$0xff]
    %v3908 = vld [vmem:[#allocation12 + $0x8a8] sm:$0xff]
    %v3909 = vld [vmem:[#allocation12 + $0x8b0] sm:$0xff]
    %v3910 = vld [vmem:[#allocation12 + $0x8b8] sm:$0xff]
    %v3911 = vld [vmem:[#allocation12 + $0x8c0] sm:$0xff]
    %v3912 = vld [vmem:[#allocation12 + $0x8c8] sm:$0xff]
    %v3913 = vld [vmem:[#allocation12 + $0x8d0] sm:$0xff]
    %v3914 = vld [vmem:[#allocation12 + $0x8d8] sm:$0xff]
    %v3915 = vld [vmem:[#allocation12 + $0x8e0] sm:$0xff]
    %v3916 = vld [vmem:[#allocation12 + $0x8e8] sm:$0xff]
    %v3917 = vld [vmem:[#allocation12 + $0x8f0] sm:$0xff]
    %v3918 = vld [vmem:[#allocation12 + $0x8f8] sm:$0xff]
    %v3919 = vpack.c.bf16 %v3542, %v3542
    %v3920 = vpack.c.bf16 %v3584, %v3584
    %v3921 = vpack.c.bf16 %v3626, %v3626
    %v4066 = vunpack.c.l.b16 %v3775
    %v4067 = vunpack.c.h.b16 %v3775
    %v4068 = vunpack.c.l.b16 %v3776
    %v4069 = vunpack.c.h.b16 %v3776
    %v4070 = vunpack.c.l.b16 %v3777
    %v4071 = vunpack.c.h.b16 %v3777
    %v4072 = vunpack.c.l.b16 %v3778
    %v4073 = vunpack.c.h.b16 %v3778
    %v4074 = vunpack.c.l.b16 %v3779
    %v4075 = vunpack.c.h.b16 %v3779
    %v4076 = vunpack.c.l.b16 %v3780
    %v4077 = vunpack.c.h.b16 %v3780
    %v4078 = vunpack.c.l.b16 %v3781
    %v4079 = vunpack.c.h.b16 %v3781
    %v4080 = vunpack.c.l.b16 %v3782
    %v4081 = vunpack.c.h.b16 %v3782
    %v4082 = vunpack.c.l.b16 %v3783
    %v4083 = vunpack.c.h.b16 %v3783
    %v4084 = vunpack.c.l.b16 %v3784
    %v4085 = vunpack.c.h.b16 %v3784
    %v4086 = vunpack.c.l.b16 %v3785
    %v4087 = vunpack.c.h.b16 %v3785
    %v4088 = vunpack.c.l.b16 %v3786
    %v4089 = vunpack.c.h.b16 %v3786
    %v4090 = vunpack.c.l.b16 %v3787
    %v4091 = vunpack.c.h.b16 %v3787
    %v4092 = vunpack.c.l.b16 %v3788
    %v4093 = vunpack.c.h.b16 %v3788
    %v4094 = vunpack.c.l.b16 %v3789
    %v4095 = vunpack.c.h.b16 %v3789
    %v4096 = vunpack.c.l.b16 %v3790
    %v4097 = vunpack.c.h.b16 %v3790
    %v4098 = vunpack.c.l.b16 %v3791
    %v4099 = vunpack.c.h.b16 %v3791
    %v4100 = vunpack.c.l.b16 %v3792
    %v4101 = vunpack.c.h.b16 %v3792
    %v4102 = vunpack.c.l.b16 %v3793
    %v4103 = vunpack.c.h.b16 %v3793
    %v4104 = vunpack.c.l.b16 %v3794
    %v4105 = vunpack.c.h.b16 %v3794
    %v4106 = vunpack.c.l.b16 %v3795
    %v4107 = vunpack.c.h.b16 %v3795
    %v4108 = vunpack.c.l.b16 %v3796
    %v4109 = vunpack.c.h.b16 %v3796
    %v4110 = vunpack.c.l.b16 %v3797
    %v4111 = vunpack.c.h.b16 %v3797
    %v4112 = vunpack.c.l.b16 %v3798
    %v4113 = vunpack.c.h.b16 %v3798
    %v4114 = vunpack.c.l.b16 %v3799
    %v4115 = vunpack.c.h.b16 %v3799
    %v4116 = vunpack.c.l.b16 %v3800
    %v4117 = vunpack.c.h.b16 %v3800
    %v4118 = vunpack.c.l.b16 %v3801
    %v4119 = vunpack.c.h.b16 %v3801
    %v4120 = vunpack.c.l.b16 %v3802
    %v4121 = vunpack.c.h.b16 %v3802
    %v4122 = vunpack.c.l.b16 %v3803
    %v4123 = vunpack.c.h.b16 %v3803
    %v4124 = vunpack.c.l.b16 %v3804
    %v4125 = vunpack.c.h.b16 %v3804
    %v4126 = vunpack.c.l.b16 %v3805
    %v4127 = vunpack.c.h.b16 %v3805
    %v4128 = vunpack.c.l.b16 %v3806
    %v4129 = vunpack.c.h.b16 %v3806
    %v4130 = vunpack.c.l.b16 %v3807
    %v4131 = vunpack.c.h.b16 %v3807
    %v4132 = vunpack.c.l.b16 %v3808
    %v4133 = vunpack.c.h.b16 %v3808
    %v4134 = vunpack.c.l.b16 %v3809
    %v4135 = vunpack.c.h.b16 %v3809
    %v4136 = vunpack.c.l.b16 %v3810
    %v4137 = vunpack.c.h.b16 %v3810
    %v4138 = vunpack.c.l.b16 %v3811
    %v4139 = vunpack.c.h.b16 %v3811
    %v4140 = vunpack.c.l.b16 %v3812
    %v4141 = vunpack.c.h.b16 %v3812
    %v4142 = vunpack.c.l.b16 %v3813
    %v4143 = vunpack.c.h.b16 %v3813
    %v4144 = vunpack.c.l.b16 %v3814
    %v4145 = vunpack.c.h.b16 %v3814
    %v4146 = vunpack.c.l.b16 %v3815
    %v4147 = vunpack.c.h.b16 %v3815
    %v4148 = vunpack.c.l.b16 %v3816
    %v4149 = vunpack.c.h.b16 %v3816
    %v4150 = vunpack.c.l.b16 %v3817
    %v4151 = vunpack.c.h.b16 %v3817
    %v4152 = vunpack.c.l.b16 %v3818
    %v4153 = vunpack.c.h.b16 %v3818
    %v4154 = vunpack.c.l.b16 %v3819
    %v4155 = vunpack.c.h.b16 %v3819
    %v4156 = vunpack.c.l.b16 %v3820
    %v4157 = vunpack.c.h.b16 %v3820
    %v4158 = vunpack.c.l.b16 %v3821
    %v4159 = vunpack.c.h.b16 %v3821
    %v4160 = vunpack.c.l.b16 %v3822
    %v4161 = vunpack.c.h.b16 %v3822
    %v4162 = vunpack.c.l.b16 %v3823
    %v4163 = vunpack.c.h.b16 %v3823
    %v4164 = vunpack.c.l.b16 %v3824
    %v4165 = vunpack.c.h.b16 %v3824
    %v4166 = vunpack.c.l.b16 %v3825
    %v4167 = vunpack.c.h.b16 %v3825
    %v4168 = vunpack.c.l.b16 %v3826
    %v4169 = vunpack.c.h.b16 %v3826
    %v4170 = vunpack.c.l.b16 %v3827
    %v4171 = vunpack.c.h.b16 %v3827
    %v4172 = vunpack.c.l.b16 %v3828
    %v4173 = vunpack.c.h.b16 %v3828
    %v4174 = vunpack.c.l.b16 %v3829
    %v4175 = vunpack.c.h.b16 %v3829
    %v4176 = vunpack.c.l.b16 %v3830
    %v4177 = vunpack.c.h.b16 %v3830
    %v4178 = vunpack.c.l.b16 %v3831
    %v4179 = vunpack.c.h.b16 %v3831
    %v4180 = vunpack.c.l.b16 %v3832
    %v4181 = vunpack.c.h.b16 %v3832
    %v4182 = vunpack.c.l.b16 %v3833
    %v4183 = vunpack.c.h.b16 %v3833
    %v4184 = vunpack.c.l.b16 %v3834
    %v4185 = vunpack.c.h.b16 %v3834
    %v4186 = vunpack.c.l.b16 %v3835
    %v4187 = vunpack.c.h.b16 %v3835
    %v4188 = vunpack.c.l.b16 %v3836
    %v4189 = vunpack.c.h.b16 %v3836
    %v4190 = vunpack.c.l.b16 %v3837
    %v4191 = vunpack.c.h.b16 %v3837
    %v4192 = vunpack.c.l.b16 %v3838
    %v4193 = vunpack.c.h.b16 %v3838
    %v4194 = vunpack.c.l.b16 %v3839
    %v4195 = vunpack.c.h.b16 %v3839
    %v4196 = vunpack.c.l.b16 %v3840
    %v4197 = vunpack.c.h.b16 %v3840
    %v4198 = vunpack.c.l.b16 %v3841
    %v4199 = vunpack.c.h.b16 %v3841
    %v4200 = vunpack.c.l.b16 %v3842
    %v4201 = vunpack.c.h.b16 %v3842
    %v4202 = vunpack.c.l.b16 %v3843
    %v4203 = vunpack.c.h.b16 %v3843
    %v4204 = vunpack.c.l.b16 %v3844
    %v4205 = vunpack.c.h.b16 %v3844
    %v4206 = vunpack.c.l.b16 %v3845
    %v4207 = vunpack.c.h.b16 %v3845
    %v4208 = vunpack.c.l.b16 %v3846
    %v4209 = vunpack.c.h.b16 %v3846
    %v4210 = vunpack.c.l.b16 %v3847
    %v4211 = vunpack.c.h.b16 %v3847
    %v4212 = vunpack.c.l.b16 %v3848
    %v4213 = vunpack.c.h.b16 %v3848
    %v4214 = vunpack.c.l.b16 %v3849
    %v4215 = vunpack.c.h.b16 %v3849
    %v4216 = vunpack.c.l.b16 %v3850
    %v4217 = vunpack.c.h.b16 %v3850
    %v4218 = vunpack.c.l.b16 %v3851
    %v4219 = vunpack.c.h.b16 %v3851
    %v4220 = vunpack.c.l.b16 %v3852
    %v4221 = vunpack.c.h.b16 %v3852
    %v4222 = vunpack.c.l.b16 %v3853
    %v4223 = vunpack.c.h.b16 %v3853
    %v4224 = vunpack.c.l.b16 %v3854
    %v4225 = vunpack.c.h.b16 %v3854
    %v4226 = vunpack.c.l.b16 %v3855
    %v4227 = vunpack.c.h.b16 %v3855
    %v4228 = vunpack.c.l.b16 %v3856
    %v4229 = vunpack.c.h.b16 %v3856
    %v4230 = vunpack.c.l.b16 %v3857
    %v4231 = vunpack.c.h.b16 %v3857
    %v4232 = vunpack.c.l.b16 %v3858
    %v4233 = vunpack.c.h.b16 %v3858
    %v4234 = vunpack.c.l.b16 %v3859
    %v4235 = vunpack.c.h.b16 %v3859
    %v4236 = vunpack.c.l.b16 %v3860
    %v4237 = vunpack.c.h.b16 %v3860
    %v4238 = vunpack.c.l.b16 %v3861
    %v4239 = vunpack.c.h.b16 %v3861
    %v4240 = vunpack.c.l.b16 %v3862
    %v4241 = vunpack.c.h.b16 %v3862
    %v4242 = vunpack.c.l.b16 %v3863
    %v4243 = vunpack.c.h.b16 %v3863
    %v4244 = vunpack.c.l.b16 %v3864
    %v4245 = vunpack.c.h.b16 %v3864
    %v4246 = vunpack.c.l.b16 %v3865
    %v4247 = vunpack.c.h.b16 %v3865
    %v4248 = vunpack.c.l.b16 %v3866
    %v4249 = vunpack.c.h.b16 %v3866
    %v4250 = vunpack.c.l.b16 %v3867
    %v4251 = vunpack.c.h.b16 %v3867
    %v4252 = vunpack.c.l.b16 %v3868
    %v4253 = vunpack.c.h.b16 %v3868
    %v4254 = vunpack.c.l.b16 %v3869
    %v4255 = vunpack.c.h.b16 %v3869
    %v4256 = vunpack.c.l.b16 %v3870
    %v4257 = vunpack.c.h.b16 %v3870
    %v4258 = vunpack.c.l.b16 %v3871
    %v4259 = vunpack.c.h.b16 %v3871
    %v4260 = vunpack.c.l.b16 %v3872
    %v4261 = vunpack.c.h.b16 %v3872
    %v4262 = vunpack.c.l.b16 %v3873
    %v4263 = vunpack.c.h.b16 %v3873
    %v4264 = vunpack.c.l.b16 %v3874
    %v4265 = vunpack.c.h.b16 %v3874
    %v4266 = vunpack.c.l.b16 %v3875
    %v4267 = vunpack.c.h.b16 %v3875
    %v4268 = vunpack.c.l.b16 %v3876
    %v4269 = vunpack.c.h.b16 %v3876
    %v4270 = vunpack.c.l.b16 %v3877
    %v4271 = vunpack.c.h.b16 %v3877
    %v4272 = vunpack.c.l.b16 %v3878
    %v4273 = vunpack.c.h.b16 %v3878
    %v4274 = vunpack.c.l.b16 %v3879
    %v4275 = vunpack.c.h.b16 %v3879
    %v4276 = vunpack.c.l.b16 %v3880
    %v4277 = vunpack.c.h.b16 %v3880
    %v4278 = vunpack.c.l.b16 %v3881
    %v4279 = vunpack.c.h.b16 %v3881
    %v4280 = vunpack.c.l.b16 %v3882
    %v4281 = vunpack.c.h.b16 %v3882
    %v4282 = vunpack.c.l.b16 %v3883
    %v4283 = vunpack.c.h.b16 %v3883
    %v4284 = vunpack.c.l.b16 %v3884
    %v4285 = vunpack.c.h.b16 %v3884
    %v4286 = vunpack.c.l.b16 %v3885
    %v4287 = vunpack.c.h.b16 %v3885
    %v4288 = vunpack.c.l.b16 %v3886
    %v4289 = vunpack.c.h.b16 %v3886
    %v4290 = vunpack.c.l.b16 %v3887
    %v4291 = vunpack.c.h.b16 %v3887
    %v4292 = vunpack.c.l.b16 %v3888
    %v4293 = vunpack.c.h.b16 %v3888
    %v4294 = vunpack.c.l.b16 %v3889
    %v4295 = vunpack.c.h.b16 %v3889
    %v4296 = vunpack.c.l.b16 %v3890
    %v4297 = vunpack.c.h.b16 %v3890
    %v4298 = vunpack.c.l.b16 %v3891
    %v4299 = vunpack.c.h.b16 %v3891
    %v4300 = vunpack.c.l.b16 %v3892
    %v4301 = vunpack.c.h.b16 %v3892
    %v4302 = vunpack.c.l.b16 %v3893
    %v4303 = vunpack.c.h.b16 %v3893
    %v4304 = vunpack.c.l.b16 %v3894
    %v4305 = vunpack.c.h.b16 %v3894
    %v4306 = vunpack.c.l.b16 %v3895
    %v4307 = vunpack.c.h.b16 %v3895
    %v4308 = vunpack.c.l.b16 %v3896
    %v4309 = vunpack.c.h.b16 %v3896
    %v4310 = vunpack.c.l.b16 %v3897
    %v4311 = vunpack.c.h.b16 %v3897
    %v4312 = vunpack.c.l.b16 %v3898
    %v4313 = vunpack.c.h.b16 %v3898
    %v4314 = vunpack.c.l.b16 %v3899
    %v4315 = vunpack.c.h.b16 %v3899
    %v4316 = vunpack.c.l.b16 %v3900
    %v4317 = vunpack.c.h.b16 %v3900
    %v4318 = vunpack.c.l.b16 %v3901
    %v4319 = vunpack.c.h.b16 %v3901
    %v4320 = vunpack.c.l.b16 %v3902
    %v4321 = vunpack.c.h.b16 %v3902
    %v4322 = vunpack.c.l.b16 %v3903
    %v4323 = vunpack.c.h.b16 %v3903
    %v4324 = vunpack.c.l.b16 %v3904
    %v4325 = vunpack.c.h.b16 %v3904
    %v4326 = vunpack.c.l.b16 %v3905
    %v4327 = vunpack.c.h.b16 %v3905
    %v4328 = vunpack.c.l.b16 %v3906
    %v4329 = vunpack.c.h.b16 %v3906
    %v4330 = vunpack.c.l.b16 %v3907
    %v4331 = vunpack.c.h.b16 %v3907
    %v4332 = vunpack.c.l.b16 %v3908
    %v4333 = vunpack.c.h.b16 %v3908
    %v4334 = vunpack.c.l.b16 %v3909
    %v4335 = vunpack.c.h.b16 %v3909
    %v4336 = vunpack.c.l.b16 %v3910
    %v4337 = vunpack.c.h.b16 %v3910
    %v4338 = vunpack.c.l.b16 %v3911
    %v4339 = vunpack.c.h.b16 %v3911
    %v4340 = vunpack.c.l.b16 %v3912
    %v4341 = vunpack.c.h.b16 %v3912
    %v4342 = vunpack.c.l.b16 %v3913
    %v4343 = vunpack.c.h.b16 %v3913
    %v4344 = vunpack.c.l.b16 %v3914
    %v4345 = vunpack.c.h.b16 %v3914
    %v4346 = vunpack.c.l.b16 %v3915
    %v4347 = vunpack.c.h.b16 %v3915
    %v4348 = vunpack.c.l.b16 %v3916
    %v4349 = vunpack.c.h.b16 %v3916
    %v4350 = vunpack.c.l.b16 %v3917
    %v4351 = vunpack.c.h.b16 %v3917
    %v4352 = vunpack.c.l.b16 %v3918
    %v4353 = vunpack.c.h.b16 %v3918
    %v4354 = vpack.c.b16 %v4072, %v4066
    %v4355 = vpack.c.b16 %v4073, %v4067
    %v4356 = vpack.c.b16 %v4074, %v4068
    %v4357 = vpack.c.b16 %v4075, %v4069
    %v4358 = vpack.c.b16 %v4076, %v4070
    %v4359 = vpack.c.b16 %v4077, %v4071
    %v4360 = vpack.c.b16 %v4084, %v4078
    %v4361 = vpack.c.b16 %v4085, %v4079
    %v4362 = vpack.c.b16 %v4086, %v4080
    %v4363 = vpack.c.b16 %v4087, %v4081
    %v4364 = vpack.c.b16 %v4088, %v4082
    %v4365 = vpack.c.b16 %v4089, %v4083
    %v4366 = vpack.c.b16 %v4096, %v4090
    %v4367 = vpack.c.b16 %v4097, %v4091
    %v4368 = vpack.c.b16 %v4098, %v4092
    %v4369 = vpack.c.b16 %v4099, %v4093
    %v4370 = vpack.c.b16 %v4100, %v4094
    %v4371 = vpack.c.b16 %v4101, %v4095
    %v4372 = vpack.c.b16 %v4108, %v4102
    %v4373 = vpack.c.b16 %v4109, %v4103
    %v4374 = vpack.c.b16 %v4110, %v4104
    %v4375 = vpack.c.b16 %v4111, %v4105
    %v4376 = vpack.c.b16 %v4112, %v4106
    %v4377 = vpack.c.b16 %v4113, %v4107
    %v4378 = vpack.c.b16 %v4120, %v4114
    %v4379 = vpack.c.b16 %v4121, %v4115
    %v4380 = vpack.c.b16 %v4122, %v4116
    %v4381 = vpack.c.b16 %v4123, %v4117
    %v4382 = vpack.c.b16 %v4124, %v4118
    %v4383 = vpack.c.b16 %v4125, %v4119
    %v4384 = vpack.c.b16 %v4132, %v4126
    %v4385 = vpack.c.b16 %v4133, %v4127
    %v4386 = vpack.c.b16 %v4134, %v4128
    %v4387 = vpack.c.b16 %v4135, %v4129
    %v4388 = vpack.c.b16 %v4136, %v4130
    %v4389 = vpack.c.b16 %v4137, %v4131
    %v4390 = vpack.c.b16 %v4144, %v4138
    %v4391 = vpack.c.b16 %v4145, %v4139
    %v4392 = vpack.c.b16 %v4146, %v4140
    %v4393 = vpack.c.b16 %v4147, %v4141
    %v4394 = vpack.c.b16 %v4148, %v4142
    %v4395 = vpack.c.b16 %v4149, %v4143
    %v4396 = vpack.c.b16 %v4156, %v4150
    %v4397 = vpack.c.b16 %v4157, %v4151
    %v4398 = vpack.c.b16 %v4158, %v4152
    %v4399 = vpack.c.b16 %v4159, %v4153
    %v4400 = vpack.c.b16 %v4160, %v4154
    %v4401 = vpack.c.b16 %v4161, %v4155
    %v4402 = vpack.c.b16 %v4168, %v4162
    %v4403 = vpack.c.b16 %v4169, %v4163
    %v4404 = vpack.c.b16 %v4170, %v4164
    %v4405 = vpack.c.b16 %v4171, %v4165
    %v4406 = vpack.c.b16 %v4172, %v4166
    %v4407 = vpack.c.b16 %v4173, %v4167
    %v4408 = vpack.c.b16 %v4180, %v4174
    %v4409 = vpack.c.b16 %v4181, %v4175
    %v4410 = vpack.c.b16 %v4182, %v4176
    %v4411 = vpack.c.b16 %v4183, %v4177
    %v4412 = vpack.c.b16 %v4184, %v4178
    %v4413 = vpack.c.b16 %v4185, %v4179
    %v4414 = vpack.c.b16 %v4192, %v4186
    %v4415 = vpack.c.b16 %v4193, %v4187
    %v4416 = vpack.c.b16 %v4194, %v4188
    %v4417 = vpack.c.b16 %v4195, %v4189
    %v4418 = vpack.c.b16 %v4196, %v4190
    %v4419 = vpack.c.b16 %v4197, %v4191
    %v4420 = vpack.c.b16 %v4204, %v4198
    %v4421 = vpack.c.b16 %v4205, %v4199
    %v4422 = vpack.c.b16 %v4206, %v4200
    %v4423 = vpack.c.b16 %v4207, %v4201
    %v4424 = vpack.c.b16 %v4208, %v4202
    %v4425 = vpack.c.b16 %v4209, %v4203
    %v4426 = vpack.c.b16 %v4216, %v4210
    %v4427 = vpack.c.b16 %v4217, %v4211
    %v4428 = vpack.c.b16 %v4218, %v4212
    %v4429 = vpack.c.b16 %v4219, %v4213
    %v4430 = vpack.c.b16 %v4220, %v4214
    %v4431 = vpack.c.b16 %v4221, %v4215
    %v4432 = vpack.c.b16 %v4228, %v4222
    %v4433 = vpack.c.b16 %v4229, %v4223
    %v4434 = vpack.c.b16 %v4230, %v4224
    %v4435 = vpack.c.b16 %v4231, %v4225
    %v4436 = vpack.c.b16 %v4232, %v4226
    %v4437 = vpack.c.b16 %v4233, %v4227
    %v4438 = vpack.c.b16 %v4240, %v4234
    %v4439 = vpack.c.b16 %v4241, %v4235
    %v4440 = vpack.c.b16 %v4242, %v4236
    %v4441 = vpack.c.b16 %v4243, %v4237
    %v4442 = vpack.c.b16 %v4244, %v4238
    %v4443 = vpack.c.b16 %v4245, %v4239
    %v4444 = vpack.c.b16 %v4252, %v4246
    %v4445 = vpack.c.b16 %v4253, %v4247
    %v4446 = vpack.c.b16 %v4254, %v4248
    %v4447 = vpack.c.b16 %v4255, %v4249
    %v4448 = vpack.c.b16 %v4256, %v4250
    %v4449 = vpack.c.b16 %v4257, %v4251
    %v4450 = vpack.c.b16 %v4264, %v4258
    %v4451 = vpack.c.b16 %v4265, %v4259
    %v4452 = vpack.c.b16 %v4266, %v4260
    %v4453 = vpack.c.b16 %v4267, %v4261
    %v4454 = vpack.c.b16 %v4268, %v4262
    %v4455 = vpack.c.b16 %v4269, %v4263
    %v4456 = vpack.c.b16 %v4276, %v4270
    %v4457 = vpack.c.b16 %v4277, %v4271
    %v4458 = vpack.c.b16 %v4278, %v4272
    %v4459 = vpack.c.b16 %v4279, %v4273
    %v4460 = vpack.c.b16 %v4280, %v4274
    %v4461 = vpack.c.b16 %v4281, %v4275
    %v4462 = vpack.c.b16 %v4288, %v4282
    %v4463 = vpack.c.b16 %v4289, %v4283
    %v4464 = vpack.c.b16 %v4290, %v4284
    %v4465 = vpack.c.b16 %v4291, %v4285
    %v4466 = vpack.c.b16 %v4292, %v4286
    %v4467 = vpack.c.b16 %v4293, %v4287
    %v4468 = vpack.c.b16 %v4300, %v4294
    %v4469 = vpack.c.b16 %v4301, %v4295
    %v4470 = vpack.c.b16 %v4302, %v4296
    %v4471 = vpack.c.b16 %v4303, %v4297
    %v4472 = vpack.c.b16 %v4304, %v4298
    %v4473 = vpack.c.b16 %v4305, %v4299
    %v4474 = vpack.c.b16 %v4312, %v4306
    %v4475 = vpack.c.b16 %v4313, %v4307
    %v4476 = vpack.c.b16 %v4314, %v4308
    %v4477 = vpack.c.b16 %v4315, %v4309
    %v4478 = vpack.c.b16 %v4316, %v4310
    %v4479 = vpack.c.b16 %v4317, %v4311
    %v4480 = vpack.c.b16 %v4324, %v4318
    %v4481 = vpack.c.b16 %v4325, %v4319
    %v4482 = vpack.c.b16 %v4326, %v4320
    %v4483 = vpack.c.b16 %v4327, %v4321
    %v4484 = vpack.c.b16 %v4328, %v4322
    %v4485 = vpack.c.b16 %v4329, %v4323
    %v4486 = vpack.c.b16 %v4336, %v4330
    %v4487 = vpack.c.b16 %v4337, %v4331
    %v4488 = vpack.c.b16 %v4338, %v4332
    %v4489 = vpack.c.b16 %v4339, %v4333
    %v4490 = vpack.c.b16 %v4340, %v4334
    %v4491 = vpack.c.b16 %v4341, %v4335
    %v4492 = vpack.c.b16 %v4348, %v4342
    %v4493 = vpack.c.b16 %v4349, %v4343
    %v4494 = vpack.c.b16 %v4350, %v4344
    %v4495 = vpack.c.b16 %v4351, %v4345
    %v4496 = vpack.c.b16 %v4352, %v4346
    %v4497 = vpack.c.b16 %v4353, %v4347
    %4642 = vmatpush.bf16.msra.mxu0 %v4396
    %4643 = vmatpush.bf16.msra.mxu0 %v4390
    %4644 = vmatpush.bf16.msra.mxu0 %v4384
    %4645 = vmatpush.bf16.msra.mxu0 %v4378
    %4646 = vmatpush.bf16.msra.mxu0 %v4372
    %4647 = vmatpush.bf16.msra.mxu0 %v4366
    %4648 = vmatpush.bf16.msra.mxu0 %v4360
    %4649 = vmatpush.bf16.msra.mxu0 %v4354
    %4650 = vmatmul.bf16.gmra.mxu0 %v3919
    %v4651 = vpop.f32.mrf.mxu0
    %v4652 = vadd.f32 0.0, %v4651
    %v4653 = vpop.f32.mrf.mxu0
    %4654 = vdwg.mxu0
    %4655 = vmatpush.bf16.msra.mxu0 %v4444
    %4656 = vmatpush.bf16.msra.mxu0 %v4438
    %4657 = vmatpush.bf16.msra.mxu0 %v4432
    %4658 = vmatpush.bf16.msra.mxu0 %v4426
    %4659 = vmatpush.bf16.msra.mxu0 %v4420
    %4660 = vmatpush.bf16.msra.mxu0 %v4414
    %4661 = vmatpush.bf16.msra.mxu0 %v4408
    %4662 = vmatpush.bf16.msra.mxu0 %v4402
    %4663 = vmatmul.bf16.gmra.mxu0 %v3920
    %v4664 = vpop.f32.mrf.mxu0
    %v4665 = vadd.f32 %v4652, %v4664
    %v4666 = vpop.f32.mrf.mxu0
    %4667 = vdwg.mxu0
    %4668 = vmatpush.bf16.msra.mxu0 %v4492
    %4669 = vmatpush.bf16.msra.mxu0 %v4486
    %4670 = vmatpush.bf16.msra.mxu0 %v4480
    %4671 = vmatpush.bf16.msra.mxu0 %v4474
    %4672 = vmatpush.bf16.msra.mxu0 %v4468
    %4673 = vmatpush.bf16.msra.mxu0 %v4462
    %4674 = vmatpush.bf16.msra.mxu0 %v4456
    %4675 = vmatpush.bf16.msra.mxu0 %v4450
    %4676 = vmatmul.bf16.gmra.mxu0 %v3921
    %v4677 = vpop.f32.mrf.mxu0
    %v4678 = vadd.f32 %v4665, %v4677
    %v4679 = vpop.f32.mrf.mxu0
    %4680 = vdwg.mxu0
    %4681 = vmatpush.bf16.msra.mxu0 %v4397
    %4682 = vmatpush.bf16.msra.mxu0 %v4391
    %4683 = vmatpush.bf16.msra.mxu0 %v4385
    %4684 = vmatpush.bf16.msra.mxu0 %v4379
    %4685 = vmatpush.bf16.msra.mxu0 %v4373
    %4686 = vmatpush.bf16.msra.mxu0 %v4367
    %4687 = vmatpush.bf16.msra.mxu0 %v4361
    %4688 = vmatpush.bf16.msra.mxu0 %v4355
    %4689 = vmatmul.bf16.gmra.mxu0 %v3919
    %v4690 = vpop.f32.mrf.mxu0
    %v4691 = vadd.f32 0.0, %v4690
    %v4692 = vpop.f32.mrf.mxu0
    %4693 = vdwg.mxu0
    %4694 = vmatpush.bf16.msra.mxu0 %v4445
    %4695 = vmatpush.bf16.msra.mxu0 %v4439
    %4696 = vmatpush.bf16.msra.mxu0 %v4433
    %4697 = vmatpush.bf16.msra.mxu0 %v4427
    %4698 = vmatpush.bf16.msra.mxu0 %v4421
    %4699 = vmatpush.bf16.msra.mxu0 %v4415
    %4700 = vmatpush.bf16.msra.mxu0 %v4409
    %4701 = vmatpush.bf16.msra.mxu0 %v4403
    %4702 = vmatmul.bf16.gmra.mxu0 %v3920
    %v4703 = vpop.f32.mrf.mxu0
    %v4704 = vadd.f32 %v4691, %v4703
    %v4705 = vpop.f32.mrf.mxu0
    %4706 = vdwg.mxu0
    %4707 = vmatpush.bf16.msra.mxu0 %v4493
    %4708 = vmatpush.bf16.msra.mxu0 %v4487
    %4709 = vmatpush.bf16.msra.mxu0 %v4481
    %4710 = vmatpush.bf16.msra.mxu0 %v4475
    %4711 = vmatpush.bf16.msra.mxu0 %v4469
    %4712 = vmatpush.bf16.msra.mxu0 %v4463
    %4713 = vmatpush.bf16.msra.mxu0 %v4457
    %4714 = vmatpush.bf16.msra.mxu0 %v4451
    %4715 = vmatmul.bf16.gmra.mxu0 %v3921
    %v4716 = vpop.f32.mrf.mxu0
    %v4717 = vadd.f32 %v4704, %v4716
    %v4718 = vpop.f32.mrf.mxu0
    %4719 = vdwg.mxu0
    %4720 = vmatpush.bf16.msra.mxu0 %v4398
    %4721 = vmatpush.bf16.msra.mxu0 %v4392
    %4722 = vmatpush.bf16.msra.mxu0 %v4386
    %4723 = vmatpush.bf16.msra.mxu0 %v4380
    %4724 = vmatpush.bf16.msra.mxu0 %v4374
    %4725 = vmatpush.bf16.msra.mxu0 %v4368
    %4726 = vmatpush.bf16.msra.mxu0 %v4362
    %4727 = vmatpush.bf16.msra.mxu0 %v4356
    %4728 = vmatmul.bf16.gmra.mxu0 %v3919
    %v4729 = vpop.f32.mrf.mxu0
    %v4730 = vadd.f32 0.0, %v4729
    %v4731 = vpop.f32.mrf.mxu0
    %4732 = vdwg.mxu0
    %4733 = vmatpush.bf16.msra.mxu0 %v4446
    %4734 = vmatpush.bf16.msra.mxu0 %v4440
    %4735 = vmatpush.bf16.msra.mxu0 %v4434
    %4736 = vmatpush.bf16.msra.mxu0 %v4428
    %4737 = vmatpush.bf16.msra.mxu0 %v4422
    %4738 = vmatpush.bf16.msra.mxu0 %v4416
    %4739 = vmatpush.bf16.msra.mxu0 %v4410
    %4740 = vmatpush.bf16.msra.mxu0 %v4404
    %4741 = vmatmul.bf16.gmra.mxu0 %v3920
    %v4742 = vpop.f32.mrf.mxu0
    %v4743 = vadd.f32 %v4730, %v4742
    %v4744 = vpop.f32.mrf.mxu0
    %4745 = vdwg.mxu0
    %4746 = vmatpush.bf16.msra.mxu0 %v4494
    %4747 = vmatpush.bf16.msra.mxu0 %v4488
    %4748 = vmatpush.bf16.msra.mxu0 %v4482
    %4749 = vmatpush.bf16.msra.mxu0 %v4476
    %4750 = vmatpush.bf16.msra.mxu0 %v4470
    %4751 = vmatpush.bf16.msra.mxu0 %v4464
    %4752 = vmatpush.bf16.msra.mxu0 %v4458
    %4753 = vmatpush.bf16.msra.mxu0 %v4452
    %4754 = vmatmul.bf16.gmra.mxu0 %v3921
    %v4755 = vpop.f32.mrf.mxu0
    %v4756 = vadd.f32 %v4743, %v4755
    %v4757 = vpop.f32.mrf.mxu0
    %4758 = vdwg.mxu0
    %4759 = vmatpush.bf16.msra.mxu0 %v4399
    %4760 = vmatpush.bf16.msra.mxu0 %v4393
    %4761 = vmatpush.bf16.msra.mxu0 %v4387
    %4762 = vmatpush.bf16.msra.mxu0 %v4381
    %4763 = vmatpush.bf16.msra.mxu0 %v4375
    %4764 = vmatpush.bf16.msra.mxu0 %v4369
    %4765 = vmatpush.bf16.msra.mxu0 %v4363
    %4766 = vmatpush.bf16.msra.mxu0 %v4357
    %4767 = vmatmul.bf16.gmra.mxu0 %v3919
    %v4768 = vpop.f32.mrf.mxu0
    %v4769 = vadd.f32 0.0, %v4768
    %v4770 = vpop.f32.mrf.mxu0
    %4771 = vdwg.mxu0
    %4772 = vmatpush.bf16.msra.mxu0 %v4447
    %4773 = vmatpush.bf16.msra.mxu0 %v4441
    %4774 = vmatpush.bf16.msra.mxu0 %v4435
    %4775 = vmatpush.bf16.msra.mxu0 %v4429
    %4776 = vmatpush.bf16.msra.mxu0 %v4423
    %4777 = vmatpush.bf16.msra.mxu0 %v4417
    %4778 = vmatpush.bf16.msra.mxu0 %v4411
    %4779 = vmatpush.bf16.msra.mxu0 %v4405
    %4780 = vmatmul.bf16.gmra.mxu0 %v3920
    %v4781 = vpop.f32.mrf.mxu0
    %v4782 = vadd.f32 %v4769, %v4781
    %v4783 = vpop.f32.mrf.mxu0
    %4784 = vdwg.mxu0
    %4785 = vmatpush.bf16.msra.mxu0 %v4495
    %4786 = vmatpush.bf16.msra.mxu0 %v4489
    %4787 = vmatpush.bf16.msra.mxu0 %v4483
    %4788 = vmatpush.bf16.msra.mxu0 %v4477
    %4789 = vmatpush.bf16.msra.mxu0 %v4471
    %4790 = vmatpush.bf16.msra.mxu0 %v4465
    %4791 = vmatpush.bf16.msra.mxu0 %v4459
    %4792 = vmatpush.bf16.msra.mxu0 %v4453
    %4793 = vmatmul.bf16.gmra.mxu0 %v3921
    %v4794 = vpop.f32.mrf.mxu0
    %v4795 = vadd.f32 %v4782, %v4794
    %v4796 = vpop.f32.mrf.mxu0
    %4797 = vdwg.mxu0
    %4798 = vmatpush.bf16.msra.mxu0 %v4400
    %4799 = vmatpush.bf16.msra.mxu0 %v4394
    %4800 = vmatpush.bf16.msra.mxu0 %v4388
    %4801 = vmatpush.bf16.msra.mxu0 %v4382
    %4802 = vmatpush.bf16.msra.mxu0 %v4376
    %4803 = vmatpush.bf16.msra.mxu0 %v4370
    %4804 = vmatpush.bf16.msra.mxu0 %v4364
    %4805 = vmatpush.bf16.msra.mxu0 %v4358
    %4806 = vmatmul.bf16.gmra.mxu0 %v3919
    %v4807 = vpop.f32.mrf.mxu0
    %v4808 = vadd.f32 0.0, %v4807
    %v4809 = vpop.f32.mrf.mxu0
    %4810 = vdwg.mxu0
    %4811 = vmatpush.bf16.msra.mxu0 %v4448
    %4812 = vmatpush.bf16.msra.mxu0 %v4442
    %4813 = vmatpush.bf16.msra.mxu0 %v4436
    %4814 = vmatpush.bf16.msra.mxu0 %v4430
    %4815 = vmatpush.bf16.msra.mxu0 %v4424
    %4816 = vmatpush.bf16.msra.mxu0 %v4418
    %4817 = vmatpush.bf16.msra.mxu0 %v4412
    %4818 = vmatpush.bf16.msra.mxu0 %v4406
    %4819 = vmatmul.bf16.gmra.mxu0 %v3920
    %v4820 = vpop.f32.mrf.mxu0
    %v4821 = vadd.f32 %v4808, %v4820
    %v4822 = vpop.f32.mrf.mxu0
    %4823 = vdwg.mxu0
    %4824 = vmatpush.bf16.msra.mxu0 %v4496
    %4825 = vmatpush.bf16.msra.mxu0 %v4490
    %4826 = vmatpush.bf16.msra.mxu0 %v4484
    %4827 = vmatpush.bf16.msra.mxu0 %v4478
    %4828 = vmatpush.bf16.msra.mxu0 %v4472
    %4829 = vmatpush.bf16.msra.mxu0 %v4466
    %4830 = vmatpush.bf16.msra.mxu0 %v4460
    %4831 = vmatpush.bf16.msra.mxu0 %v4454
    %4832 = vmatmul.bf16.gmra.mxu0 %v3921
    %v4833 = vpop.f32.mrf.mxu0
    %v4834 = vadd.f32 %v4821, %v4833
    %v4835 = vpop.f32.mrf.mxu0
    %4836 = vdwg.mxu0
    %4837 = vmatpush.bf16.msra.mxu0 %v4401
    %4838 = vmatpush.bf16.msra.mxu0 %v4395
    %4839 = vmatpush.bf16.msra.mxu0 %v4389
    %4840 = vmatpush.bf16.msra.mxu0 %v4383
    %4841 = vmatpush.bf16.msra.mxu0 %v4377
    %4842 = vmatpush.bf16.msra.mxu0 %v4371
    %4843 = vmatpush.bf16.msra.mxu0 %v4365
    %4844 = vmatpush.bf16.msra.mxu0 %v4359
    %4845 = vmatmul.bf16.gmra.mxu0 %v3919
    %v4846 = vpop.f32.mrf.mxu0
    %v4847 = vadd.f32 0.0, %v4846
    %v4848 = vpop.f32.mrf.mxu0
    %4849 = vdwg.mxu0
    %4850 = vmatpush.bf16.msra.mxu0 %v4449
    %4851 = vmatpush.bf16.msra.mxu0 %v4443
    %4852 = vmatpush.bf16.msra.mxu0 %v4437
    %4853 = vmatpush.bf16.msra.mxu0 %v4431
    %4854 = vmatpush.bf16.msra.mxu0 %v4425
    %4855 = vmatpush.bf16.msra.mxu0 %v4419
    %4856 = vmatpush.bf16.msra.mxu0 %v4413
    %4857 = vmatpush.bf16.msra.mxu0 %v4407
    %4858 = vmatmul.bf16.gmra.mxu0 %v3920
    %v4859 = vpop.f32.mrf.mxu0
    %v4860 = vadd.f32 %v4847, %v4859
    %v4861 = vpop.f32.mrf.mxu0
    %4862 = vdwg.mxu0
    %4863 = vmatpush.bf16.msra.mxu0 %v4497
    %4864 = vmatpush.bf16.msra.mxu0 %v4491
    %4865 = vmatpush.bf16.msra.mxu0 %v4485
    %4866 = vmatpush.bf16.msra.mxu0 %v4479
    %4867 = vmatpush.bf16.msra.mxu0 %v4473
    %4868 = vmatpush.bf16.msra.mxu0 %v4467
    %4869 = vmatpush.bf16.msra.mxu0 %v4461
    %4870 = vmatpush.bf16.msra.mxu0 %v4455
    %4871 = vmatmul.bf16.gmra.mxu0 %v3921
    %v4872 = vpop.f32.mrf.mxu0
    %v4873 = vadd.f32 %v4860, %v4872
    %v4874 = vpop.f32.mrf.mxu0
    %4875 = vdwg.mxu0
    %v5020 = vunpack.c.l.b16 %v3628
    %v5021 = vunpack.c.h.b16 %v3628
    %v5022 = vunpack.c.l.b16 %v3629
    %v5023 = vunpack.c.h.b16 %v3629
    %v5024 = vunpack.c.l.b16 %v3630
    %v5025 = vunpack.c.h.b16 %v3630
    %v5026 = vunpack.c.l.b16 %v3631
    %v5027 = vunpack.c.h.b16 %v3631
    %v5028 = vunpack.c.l.b16 %v3632
    %v5029 = vunpack.c.h.b16 %v3632
    %v5030 = vunpack.c.l.b16 %v3633
    %v5031 = vunpack.c.h.b16 %v3633
    %v5032 = vunpack.c.l.b16 %v3634
    %v5033 = vunpack.c.h.b16 %v3634
    %v5034 = vunpack.c.l.b16 %v3635
    %v5035 = vunpack.c.h.b16 %v3635
    %v5036 = vunpack.c.l.b16 %v3636
    %v5037 = vunpack.c.h.b16 %v3636
    %v5038 = vunpack.c.l.b16 %v3637
    %v5039 = vunpack.c.h.b16 %v3637
    %v5040 = vunpack.c.l.b16 %v3638
    %v5041 = vunpack.c.h.b16 %v3638
    %v5042 = vunpack.c.l.b16 %v3639
    %v5043 = vunpack.c.h.b16 %v3639
    %v5044 = vunpack.c.l.b16 %v3640
    %v5045 = vunpack.c.h.b16 %v3640
    %v5046 = vunpack.c.l.b16 %v3641
    %v5047 = vunpack.c.h.b16 %v3641
    %v5048 = vunpack.c.l.b16 %v3642
    %v5049 = vunpack.c.h.b16 %v3642
    %v5050 = vunpack.c.l.b16 %v3643
    %v5051 = vunpack.c.h.b16 %v3643
    %v5052 = vunpack.c.l.b16 %v3644
    %v5053 = vunpack.c.h.b16 %v3644
    %v5054 = vunpack.c.l.b16 %v3645
    %v5055 = vunpack.c.h.b16 %v3645
    %v5056 = vunpack.c.l.b16 %v3646
    %v5057 = vunpack.c.h.b16 %v3646
    %v5058 = vunpack.c.l.b16 %v3647
    %v5059 = vunpack.c.h.b16 %v3647
    %v5060 = vunpack.c.l.b16 %v3648
    %v5061 = vunpack.c.h.b16 %v3648
    %v5062 = vunpack.c.l.b16 %v3649
    %v5063 = vunpack.c.h.b16 %v3649
    %v5064 = vunpack.c.l.b16 %v3650
    %v5065 = vunpack.c.h.b16 %v3650
    %v5066 = vunpack.c.l.b16 %v3651
    %v5067 = vunpack.c.h.b16 %v3651
    %v5068 = vunpack.c.l.b16 %v3652
    %v5069 = vunpack.c.h.b16 %v3652
    %v5070 = vunpack.c.l.b16 %v3653
    %v5071 = vunpack.c.h.b16 %v3653
    %v5072 = vunpack.c.l.b16 %v3654
    %v5073 = vunpack.c.h.b16 %v3654
    %v5074 = vunpack.c.l.b16 %v3655
    %v5075 = vunpack.c.h.b16 %v3655
    %v5076 = vunpack.c.l.b16 %v3656
    %v5077 = vunpack.c.h.b16 %v3656
    %v5078 = vunpack.c.l.b16 %v3657
    %v5079 = vunpack.c.h.b16 %v3657
    %v5080 = vunpack.c.l.b16 %v3658
    %v5081 = vunpack.c.h.b16 %v3658
    %v5082 = vunpack.c.l.b16 %v3659
    %v5083 = vunpack.c.h.b16 %v3659
    %v5084 = vunpack.c.l.b16 %v3660
    %v5085 = vunpack.c.h.b16 %v3660
    %v5086 = vunpack.c.l.b16 %v3661
    %v5087 = vunpack.c.h.b16 %v3661
    %v5088 = vunpack.c.l.b16 %v3662
    %v5089 = vunpack.c.h.b16 %v3662
    %v5090 = vunpack.c.l.b16 %v3663
    %v5091 = vunpack.c.h.b16 %v3663
    %v5092 = vunpack.c.l.b16 %v3664
    %v5093 = vunpack.c.h.b16 %v3664
    %v5094 = vunpack.c.l.b16 %v3665
    %v5095 = vunpack.c.h.b16 %v3665
    %v5096 = vunpack.c.l.b16 %v3666
    %v5097 = vunpack.c.h.b16 %v3666
    %v5098 = vunpack.c.l.b16 %v3667
    %v5099 = vunpack.c.h.b16 %v3667
    %v5100 = vunpack.c.l.b16 %v3668
    %v5101 = vunpack.c.h.b16 %v3668
    %v5102 = vunpack.c.l.b16 %v3669
    %v5103 = vunpack.c.h.b16 %v3669
    %v5104 = vunpack.c.l.b16 %v3670
    %v5105 = vunpack.c.h.b16 %v3670
    %v5106 = vunpack.c.l.b16 %v3671
    %v5107 = vunpack.c.h.b16 %v3671
    %v5108 = vunpack.c.l.b16 %v3672
    %v5109 = vunpack.c.h.b16 %v3672
    %v5110 = vunpack.c.l.b16 %v3673
    %v5111 = vunpack.c.h.b16 %v3673
    %v5112 = vunpack.c.l.b16 %v3674
    %v5113 = vunpack.c.h.b16 %v3674
    %v5114 = vunpack.c.l.b16 %v3675
    %v5115 = vunpack.c.h.b16 %v3675
    %v5116 = vunpack.c.l.b16 %v3676
    %v5117 = vunpack.c.h.b16 %v3676
    %v5118 = vunpack.c.l.b16 %v3677
    %v5119 = vunpack.c.h.b16 %v3677
    %v5120 = vunpack.c.l.b16 %v3678
    %v5121 = vunpack.c.h.b16 %v3678
    %v5122 = vunpack.c.l.b16 %v3679
    %v5123 = vunpack.c.h.b16 %v3679
    %v5124 = vunpack.c.l.b16 %v3680
    %v5125 = vunpack.c.h.b16 %v3680
    %v5126 = vunpack.c.l.b16 %v3681
    %v5127 = vunpack.c.h.b16 %v3681
    %v5128 = vunpack.c.l.b16 %v3682
    %v5129 = vunpack.c.h.b16 %v3682
    %v5130 = vunpack.c.l.b16 %v3683
    %v5131 = vunpack.c.h.b16 %v3683
    %v5132 = vunpack.c.l.b16 %v3684
    %v5133 = vunpack.c.h.b16 %v3684
    %v5134 = vunpack.c.l.b16 %v3685
    %v5135 = vunpack.c.h.b16 %v3685
    %v5136 = vunpack.c.l.b16 %v3686
    %v5137 = vunpack.c.h.b16 %v3686
    %v5138 = vunpack.c.l.b16 %v3687
    %v5139 = vunpack.c.h.b16 %v3687
    %v5140 = vunpack.c.l.b16 %v3688
    %v5141 = vunpack.c.h.b16 %v3688
    %v5142 = vunpack.c.l.b16 %v3689
    %v5143 = vunpack.c.h.b16 %v3689
    %v5144 = vunpack.c.l.b16 %v3690
    %v5145 = vunpack.c.h.b16 %v3690
    %v5146 = vunpack.c.l.b16 %v3691
    %v5147 = vunpack.c.h.b16 %v3691
    %v5148 = vunpack.c.l.b16 %v3692
    %v5149 = vunpack.c.h.b16 %v3692
    %v5150 = vunpack.c.l.b16 %v3693
    %v5151 = vunpack.c.h.b16 %v3693
    %v5152 = vunpack.c.l.b16 %v3694
    %v5153 = vunpack.c.h.b16 %v3694
    %v5154 = vunpack.c.l.b16 %v3695
    %v5155 = vunpack.c.h.b16 %v3695
    %v5156 = vunpack.c.l.b16 %v3696
    %v5157 = vunpack.c.h.b16 %v3696
    %v5158 = vunpack.c.l.b16 %v3697
    %v5159 = vunpack.c.h.b16 %v3697
    %v5160 = vunpack.c.l.b16 %v3698
    %v5161 = vunpack.c.h.b16 %v3698
    %v5162 = vunpack.c.l.b16 %v3699
    %v5163 = vunpack.c.h.b16 %v3699
    %v5164 = vunpack.c.l.b16 %v3700
    %v5165 = vunpack.c.h.b16 %v3700
    %v5166 = vunpack.c.l.b16 %v3701
    %v5167 = vunpack.c.h.b16 %v3701
    %v5168 = vunpack.c.l.b16 %v3702
    %v5169 = vunpack.c.h.b16 %v3702
    %v5170 = vunpack.c.l.b16 %v3703
    %v5171 = vunpack.c.h.b16 %v3703
    %v5172 = vunpack.c.l.b16 %v3704
    %v5173 = vunpack.c.h.b16 %v3704
    %v5174 = vunpack.c.l.b16 %v3705
    %v5175 = vunpack.c.h.b16 %v3705
    %v5176 = vunpack.c.l.b16 %v3706
    %v5177 = vunpack.c.h.b16 %v3706
    %v5178 = vunpack.c.l.b16 %v3707
    %v5179 = vunpack.c.h.b16 %v3707
    %v5180 = vunpack.c.l.b16 %v3708
    %v5181 = vunpack.c.h.b16 %v3708
    %v5182 = vunpack.c.l.b16 %v3709
    %v5183 = vunpack.c.h.b16 %v3709
    %v5184 = vunpack.c.l.b16 %v3710
    %v5185 = vunpack.c.h.b16 %v3710
    %v5186 = vunpack.c.l.b16 %v3711
    %v5187 = vunpack.c.h.b16 %v3711
    %v5188 = vunpack.c.l.b16 %v3712
    %v5189 = vunpack.c.h.b16 %v3712
    %v5190 = vunpack.c.l.b16 %v3713
    %v5191 = vunpack.c.h.b16 %v3713
    %v5192 = vunpack.c.l.b16 %v3714
    %v5193 = vunpack.c.h.b16 %v3714
    %v5194 = vunpack.c.l.b16 %v3715
    %v5195 = vunpack.c.h.b16 %v3715
    %v5196 = vunpack.c.l.b16 %v3716
    %v5197 = vunpack.c.h.b16 %v3716
    %v5198 = vunpack.c.l.b16 %v3717
    %v5199 = vunpack.c.h.b16 %v3717
    %v5200 = vunpack.c.l.b16 %v3718
    %v5201 = vunpack.c.h.b16 %v3718
    %v5202 = vunpack.c.l.b16 %v3719
    %v5203 = vunpack.c.h.b16 %v3719
    %v5204 = vunpack.c.l.b16 %v3720
    %v5205 = vunpack.c.h.b16 %v3720
    %v5206 = vunpack.c.l.b16 %v3721
    %v5207 = vunpack.c.h.b16 %v3721
    %v5208 = vunpack.c.l.b16 %v3722
    %v5209 = vunpack.c.h.b16 %v3722
    %v5210 = vunpack.c.l.b16 %v3723
    %v5211 = vunpack.c.h.b16 %v3723
    %v5212 = vunpack.c.l.b16 %v3724
    %v5213 = vunpack.c.h.b16 %v3724
    %v5214 = vunpack.c.l.b16 %v3725
    %v5215 = vunpack.c.h.b16 %v3725
    %v5216 = vunpack.c.l.b16 %v3726
    %v5217 = vunpack.c.h.b16 %v3726
    %v5218 = vunpack.c.l.b16 %v3727
    %v5219 = vunpack.c.h.b16 %v3727
    %v5220 = vunpack.c.l.b16 %v3728
    %v5221 = vunpack.c.h.b16 %v3728
    %v5222 = vunpack.c.l.b16 %v3729
    %v5223 = vunpack.c.h.b16 %v3729
    %v5224 = vunpack.c.l.b16 %v3730
    %v5225 = vunpack.c.h.b16 %v3730
    %v5226 = vunpack.c.l.b16 %v3731
    %v5227 = vunpack.c.h.b16 %v3731
    %v5228 = vunpack.c.l.b16 %v3732
    %v5229 = vunpack.c.h.b16 %v3732
    %v5230 = vunpack.c.l.b16 %v3733
    %v5231 = vunpack.c.h.b16 %v3733
    %v5232 = vunpack.c.l.b16 %v3734
    %v5233 = vunpack.c.h.b16 %v3734
    %v5234 = vunpack.c.l.b16 %v3735
    %v5235 = vunpack.c.h.b16 %v3735
    %v5236 = vunpack.c.l.b16 %v3736
    %v5237 = vunpack.c.h.b16 %v3736
    %v5238 = vunpack.c.l.b16 %v3737
    %v5239 = vunpack.c.h.b16 %v3737
    %v5240 = vunpack.c.l.b16 %v3738
    %v5241 = vunpack.c.h.b16 %v3738
    %v5242 = vunpack.c.l.b16 %v3739
    %v5243 = vunpack.c.h.b16 %v3739
    %v5244 = vunpack.c.l.b16 %v3740
    %v5245 = vunpack.c.h.b16 %v3740
    %v5246 = vunpack.c.l.b16 %v3741
    %v5247 = vunpack.c.h.b16 %v3741
    %v5248 = vunpack.c.l.b16 %v3742
    %v5249 = vunpack.c.h.b16 %v3742
    %v5250 = vunpack.c.l.b16 %v3743
    %v5251 = vunpack.c.h.b16 %v3743
    %v5252 = vunpack.c.l.b16 %v3744
    %v5253 = vunpack.c.h.b16 %v3744
    %v5254 = vunpack.c.l.b16 %v3745
    %v5255 = vunpack.c.h.b16 %v3745
    %v5256 = vunpack.c.l.b16 %v3746
    %v5257 = vunpack.c.h.b16 %v3746
    %v5258 = vunpack.c.l.b16 %v3747
    %v5259 = vunpack.c.h.b16 %v3747
    %v5260 = vunpack.c.l.b16 %v3748
    %v5261 = vunpack.c.h.b16 %v3748
    %v5262 = vunpack.c.l.b16 %v3749
    %v5263 = vunpack.c.h.b16 %v3749
    %v5264 = vunpack.c.l.b16 %v3750
    %v5265 = vunpack.c.h.b16 %v3750
    %v5266 = vunpack.c.l.b16 %v3751
    %v5267 = vunpack.c.h.b16 %v3751
    %v5268 = vunpack.c.l.b16 %v3752
    %v5269 = vunpack.c.h.b16 %v3752
    %v5270 = vunpack.c.l.b16 %v3753
    %v5271 = vunpack.c.h.b16 %v3753
    %v5272 = vunpack.c.l.b16 %v3754
    %v5273 = vunpack.c.h.b16 %v3754
    %v5274 = vunpack.c.l.b16 %v3755
    %v5275 = vunpack.c.h.b16 %v3755
    %v5276 = vunpack.c.l.b16 %v3756
    %v5277 = vunpack.c.h.b16 %v3756
    %v5278 = vunpack.c.l.b16 %v3757
    %v5279 = vunpack.c.h.b16 %v3757
    %v5280 = vunpack.c.l.b16 %v3758
    %v5281 = vunpack.c.h.b16 %v3758
    %v5282 = vunpack.c.l.b16 %v3759
    %v5283 = vunpack.c.h.b16 %v3759
    %v5284 = vunpack.c.l.b16 %v3760
    %v5285 = vunpack.c.h.b16 %v3760
    %v5286 = vunpack.c.l.b16 %v3761
    %v5287 = vunpack.c.h.b16 %v3761
    %v5288 = vunpack.c.l.b16 %v3762
    %v5289 = vunpack.c.h.b16 %v3762
    %v5290 = vunpack.c.l.b16 %v3763
    %v5291 = vunpack.c.h.b16 %v3763
    %v5292 = vunpack.c.l.b16 %v3764
    %v5293 = vunpack.c.h.b16 %v3764
    %v5294 = vunpack.c.l.b16 %v3765
    %v5295 = vunpack.c.h.b16 %v3765
    %v5296 = vunpack.c.l.b16 %v3766
    %v5297 = vunpack.c.h.b16 %v3766
    %v5298 = vunpack.c.l.b16 %v3767
    %v5299 = vunpack.c.h.b16 %v3767
    %v5300 = vunpack.c.l.b16 %v3768
    %v5301 = vunpack.c.h.b16 %v3768
    %v5302 = vunpack.c.l.b16 %v3769
    %v5303 = vunpack.c.h.b16 %v3769
    %v5304 = vunpack.c.l.b16 %v3770
    %v5305 = vunpack.c.h.b16 %v3770
    %v5306 = vunpack.c.l.b16 %v3771
    %v5307 = vunpack.c.h.b16 %v3771
    %v5308 = vpack.c.b16 %v5026, %v5020
    %v5309 = vpack.c.b16 %v5027, %v5021
    %v5310 = vpack.c.b16 %v5028, %v5022
    %v5311 = vpack.c.b16 %v5029, %v5023
    %v5312 = vpack.c.b16 %v5030, %v5024
    %v5313 = vpack.c.b16 %v5031, %v5025
    %v5314 = vpack.c.b16 %v5038, %v5032
    %v5315 = vpack.c.b16 %v5039, %v5033
    %v5316 = vpack.c.b16 %v5040, %v5034
    %v5317 = vpack.c.b16 %v5041, %v5035
    %v5318 = vpack.c.b16 %v5042, %v5036
    %v5319 = vpack.c.b16 %v5043, %v5037
    %v5320 = vpack.c.b16 %v5050, %v5044
    %v5321 = vpack.c.b16 %v5051, %v5045
    %v5322 = vpack.c.b16 %v5052, %v5046
    %v5323 = vpack.c.b16 %v5053, %v5047
    %v5324 = vpack.c.b16 %v5054, %v5048
    %v5325 = vpack.c.b16 %v5055, %v5049
    %v5326 = vpack.c.b16 %v5062, %v5056
    %v5327 = vpack.c.b16 %v5063, %v5057
    %v5328 = vpack.c.b16 %v5064, %v5058
    %v5329 = vpack.c.b16 %v5065, %v5059
    %v5330 = vpack.c.b16 %v5066, %v5060
    %v5331 = vpack.c.b16 %v5067, %v5061
    %v5332 = vpack.c.b16 %v5074, %v5068
    %v5333 = vpack.c.b16 %v5075, %v5069
    %v5334 = vpack.c.b16 %v5076, %v5070
    %v5335 = vpack.c.b16 %v5077, %v5071
    %v5336 = vpack.c.b16 %v5078, %v5072
    %v5337 = vpack.c.b16 %v5079, %v5073
    %v5338 = vpack.c.b16 %v5086, %v5080
    %v5339 = vpack.c.b16 %v5087, %v5081
    %v5340 = vpack.c.b16 %v5088, %v5082
    %v5341 = vpack.c.b16 %v5089, %v5083
    %v5342 = vpack.c.b16 %v5090, %v5084
    %v5343 = vpack.c.b16 %v5091, %v5085
    %v5344 = vpack.c.b16 %v5098, %v5092
    %v5345 = vpack.c.b16 %v5099, %v5093
    %v5346 = vpack.c.b16 %v5100, %v5094
    %v5347 = vpack.c.b16 %v5101, %v5095
    %v5348 = vpack.c.b16 %v5102, %v5096
    %v5349 = vpack.c.b16 %v5103, %v5097
    %v5350 = vpack.c.b16 %v5110, %v5104
    %v5351 = vpack.c.b16 %v5111, %v5105
    %v5352 = vpack.c.b16 %v5112, %v5106
    %v5353 = vpack.c.b16 %v5113, %v5107
    %v5354 = vpack.c.b16 %v5114, %v5108
    %v5355 = vpack.c.b16 %v5115, %v5109
    %v5356 = vpack.c.b16 %v5122, %v5116
    %v5357 = vpack.c.b16 %v5123, %v5117
    %v5358 = vpack.c.b16 %v5124, %v5118
    %v5359 = vpack.c.b16 %v5125, %v5119
    %v5360 = vpack.c.b16 %v5126, %v5120
    %v5361 = vpack.c.b16 %v5127, %v5121
    %v5362 = vpack.c.b16 %v5134, %v5128
    %v5363 = vpack.c.b16 %v5135, %v5129
    %v5364 = vpack.c.b16 %v5136, %v5130
    %v5365 = vpack.c.b16 %v5137, %v5131
    %v5366 = vpack.c.b16 %v5138, %v5132
    %v5367 = vpack.c.b16 %v5139, %v5133
    %v5368 = vpack.c.b16 %v5146, %v5140
    %v5369 = vpack.c.b16 %v5147, %v5141
    %v5370 = vpack.c.b16 %v5148, %v5142
    %v5371 = vpack.c.b16 %v5149, %v5143
    %v5372 = vpack.c.b16 %v5150, %v5144
    %v5373 = vpack.c.b16 %v5151, %v5145
    %v5374 = vpack.c.b16 %v5158, %v5152
    %v5375 = vpack.c.b16 %v5159, %v5153
    %v5376 = vpack.c.b16 %v5160, %v5154
    %v5377 = vpack.c.b16 %v5161, %v5155
    %v5378 = vpack.c.b16 %v5162, %v5156
    %v5379 = vpack.c.b16 %v5163, %v5157
    %v5380 = vpack.c.b16 %v5170, %v5164
    %v5381 = vpack.c.b16 %v5171, %v5165
    %v5382 = vpack.c.b16 %v5172, %v5166
    %v5383 = vpack.c.b16 %v5173, %v5167
    %v5384 = vpack.c.b16 %v5174, %v5168
    %v5385 = vpack.c.b16 %v5175, %v5169
    %v5386 = vpack.c.b16 %v5182, %v5176
    %v5387 = vpack.c.b16 %v5183, %v5177
    %v5388 = vpack.c.b16 %v5184, %v5178
    %v5389 = vpack.c.b16 %v5185, %v5179
    %v5390 = vpack.c.b16 %v5186, %v5180
    %v5391 = vpack.c.b16 %v5187, %v5181
    %v5392 = vpack.c.b16 %v5194, %v5188
    %v5393 = vpack.c.b16 %v5195, %v5189
    %v5394 = vpack.c.b16 %v5196, %v5190
    %v5395 = vpack.c.b16 %v5197, %v5191
    %v5396 = vpack.c.b16 %v5198, %v5192
    %v5397 = vpack.c.b16 %v5199, %v5193
    %v5398 = vpack.c.b16 %v5206, %v5200
    %v5399 = vpack.c.b16 %v5207, %v5201
    %v5400 = vpack.c.b16 %v5208, %v5202
    %v5401 = vpack.c.b16 %v5209, %v5203
    %v5402 = vpack.c.b16 %v5210, %v5204
    %v5403 = vpack.c.b16 %v5211, %v5205
    %v5404 = vpack.c.b16 %v5218, %v5212
    %v5405 = vpack.c.b16 %v5219, %v5213
    %v5406 = vpack.c.b16 %v5220, %v5214
    %v5407 = vpack.c.b16 %v5221, %v5215
    %v5408 = vpack.c.b16 %v5222, %v5216
    %v5409 = vpack.c.b16 %v5223, %v5217
    %v5410 = vpack.c.b16 %v5230, %v5224
    %v5411 = vpack.c.b16 %v5231, %v5225
    %v5412 = vpack.c.b16 %v5232, %v5226
    %v5413 = vpack.c.b16 %v5233, %v5227
    %v5414 = vpack.c.b16 %v5234, %v5228
    %v5415 = vpack.c.b16 %v5235, %v5229
    %v5416 = vpack.c.b16 %v5242, %v5236
    %v5417 = vpack.c.b16 %v5243, %v5237
    %v5418 = vpack.c.b16 %v5244, %v5238
    %v5419 = vpack.c.b16 %v5245, %v5239
    %v5420 = vpack.c.b16 %v5246, %v5240
    %v5421 = vpack.c.b16 %v5247, %v5241
    %v5422 = vpack.c.b16 %v5254, %v5248
    %v5423 = vpack.c.b16 %v5255, %v5249
    %v5424 = vpack.c.b16 %v5256, %v5250
    %v5425 = vpack.c.b16 %v5257, %v5251
    %v5426 = vpack.c.b16 %v5258, %v5252
    %v5427 = vpack.c.b16 %v5259, %v5253
    %v5428 = vpack.c.b16 %v5266, %v5260
    %v5429 = vpack.c.b16 %v5267, %v5261
    %v5430 = vpack.c.b16 %v5268, %v5262
    %v5431 = vpack.c.b16 %v5269, %v5263
    %v5432 = vpack.c.b16 %v5270, %v5264
    %v5433 = vpack.c.b16 %v5271, %v5265
    %v5434 = vpack.c.b16 %v5278, %v5272
    %v5435 = vpack.c.b16 %v5279, %v5273
    %v5436 = vpack.c.b16 %v5280, %v5274
    %v5437 = vpack.c.b16 %v5281, %v5275
    %v5438 = vpack.c.b16 %v5282, %v5276
    %v5439 = vpack.c.b16 %v5283, %v5277
    %v5440 = vpack.c.b16 %v5290, %v5284
    %v5441 = vpack.c.b16 %v5291, %v5285
    %v5442 = vpack.c.b16 %v5292, %v5286
    %v5443 = vpack.c.b16 %v5293, %v5287
    %v5444 = vpack.c.b16 %v5294, %v5288
    %v5445 = vpack.c.b16 %v5295, %v5289
    %v5446 = vpack.c.b16 %v5302, %v5296
    %v5447 = vpack.c.b16 %v5303, %v5297
    %v5448 = vpack.c.b16 %v5304, %v5298
    %v5449 = vpack.c.b16 %v5305, %v5299
    %v5450 = vpack.c.b16 %v5306, %v5300
    %v5451 = vpack.c.b16 %v5307, %v5301
    %5596 = vmatpush.bf16.msra.mxu0 %v5350
    %5597 = vmatpush.bf16.msra.mxu0 %v5344
    %5598 = vmatpush.bf16.msra.mxu0 %v5338
    %5599 = vmatpush.bf16.msra.mxu0 %v5332
    %5600 = vmatpush.bf16.msra.mxu0 %v5326
    %5601 = vmatpush.bf16.msra.mxu0 %v5320
    %5602 = vmatpush.bf16.msra.mxu0 %v5314
    %5603 = vmatpush.bf16.msra.mxu0 %v5308
    %5604 = vmatmul.bf16.gmra.mxu0 %v3772
    %v5605 = vpop.f32.mrf.mxu0
    %v5606 = vadd.f32 %v4678, %v5605
    %v5607 = vpop.f32.mrf.mxu0
    %5608 = vdwg.mxu0
    %5609 = vmatpush.bf16.msra.mxu0 %v5398
    %5610 = vmatpush.bf16.msra.mxu0 %v5392
    %5611 = vmatpush.bf16.msra.mxu0 %v5386
    %5612 = vmatpush.bf16.msra.mxu0 %v5380
    %5613 = vmatpush.bf16.msra.mxu0 %v5374
    %5614 = vmatpush.bf16.msra.mxu0 %v5368
    %5615 = vmatpush.bf16.msra.mxu0 %v5362
    %5616 = vmatpush.bf16.msra.mxu0 %v5356
    %5617 = vmatmul.bf16.gmra.mxu0 %v3773
    %v5618 = vpop.f32.mrf.mxu0
    %v5619 = vadd.f32 %v5606, %v5618
    %v5620 = vpop.f32.mrf.mxu0
    %5621 = vdwg.mxu0
    %5622 = vmatpush.bf16.msra.mxu0 %v5446
    %5623 = vmatpush.bf16.msra.mxu0 %v5440
    %5624 = vmatpush.bf16.msra.mxu0 %v5434
    %5625 = vmatpush.bf16.msra.mxu0 %v5428
    %5626 = vmatpush.bf16.msra.mxu0 %v5422
    %5627 = vmatpush.bf16.msra.mxu0 %v5416
    %5628 = vmatpush.bf16.msra.mxu0 %v5410
    %5629 = vmatpush.bf16.msra.mxu0 %v5404
    %5630 = vmatmul.bf16.gmra.mxu0 %v3774
    %v5631 = vpop.f32.mrf.mxu0
    %v5632 = vadd.f32 %v5619, %v5631
    %v5633 = vpop.f32.mrf.mxu0
    %5634 = vdwg.mxu0
    %5635 = vmatpush.bf16.msra.mxu0 %v5351
    %5636 = vmatpush.bf16.msra.mxu0 %v5345
    %5637 = vmatpush.bf16.msra.mxu0 %v5339
    %5638 = vmatpush.bf16.msra.mxu0 %v5333
    %5639 = vmatpush.bf16.msra.mxu0 %v5327
    %5640 = vmatpush.bf16.msra.mxu0 %v5321
    %5641 = vmatpush.bf16.msra.mxu0 %v5315
    %5642 = vmatpush.bf16.msra.mxu0 %v5309
    %5643 = vmatmul.bf16.gmra.mxu0 %v3772
    %v5644 = vpop.f32.mrf.mxu0
    %v5645 = vadd.f32 %v4717, %v5644
    %v5646 = vpop.f32.mrf.mxu0
    %5647 = vdwg.mxu0
    %5648 = vmatpush.bf16.msra.mxu0 %v5399
    %5649 = vmatpush.bf16.msra.mxu0 %v5393
    %5650 = vmatpush.bf16.msra.mxu0 %v5387
    %5651 = vmatpush.bf16.msra.mxu0 %v5381
    %5652 = vmatpush.bf16.msra.mxu0 %v5375
    %5653 = vmatpush.bf16.msra.mxu0 %v5369
    %5654 = vmatpush.bf16.msra.mxu0 %v5363
    %5655 = vmatpush.bf16.msra.mxu0 %v5357
    %5656 = vmatmul.bf16.gmra.mxu0 %v3773
    %v5657 = vpop.f32.mrf.mxu0
    %v5658 = vadd.f32 %v5645, %v5657
    %v5659 = vpop.f32.mrf.mxu0
    %5660 = vdwg.mxu0
    %5661 = vmatpush.bf16.msra.mxu0 %v5447
    %5662 = vmatpush.bf16.msra.mxu0 %v5441
    %5663 = vmatpush.bf16.msra.mxu0 %v5435
    %5664 = vmatpush.bf16.msra.mxu0 %v5429
    %5665 = vmatpush.bf16.msra.mxu0 %v5423
    %5666 = vmatpush.bf16.msra.mxu0 %v5417
    %5667 = vmatpush.bf16.msra.mxu0 %v5411
    %5668 = vmatpush.bf16.msra.mxu0 %v5405
    %5669 = vmatmul.bf16.gmra.mxu0 %v3774
    %v5670 = vpop.f32.mrf.mxu0
    %v5671 = vadd.f32 %v5658, %v5670
    %v5672 = vpop.f32.mrf.mxu0
    %5673 = vdwg.mxu0
    %5674 = vmatpush.bf16.msra.mxu0 %v5352
    %5675 = vmatpush.bf16.msra.mxu0 %v5346
    %5676 = vmatpush.bf16.msra.mxu0 %v5340
    %5677 = vmatpush.bf16.msra.mxu0 %v5334
    %5678 = vmatpush.bf16.msra.mxu0 %v5328
    %5679 = vmatpush.bf16.msra.mxu0 %v5322
    %5680 = vmatpush.bf16.msra.mxu0 %v5316
    %5681 = vmatpush.bf16.msra.mxu0 %v5310
    %5682 = vmatmul.bf16.gmra.mxu0 %v3772
    %v5683 = vpop.f32.mrf.mxu0
    %v5684 = vadd.f32 %v4756, %v5683
    %v5685 = vpop.f32.mrf.mxu0
    %5686 = vdwg.mxu0
    %5687 = vmatpush.bf16.msra.mxu0 %v5400
    %5688 = vmatpush.bf16.msra.mxu0 %v5394
    %5689 = vmatpush.bf16.msra.mxu0 %v5388
    %5690 = vmatpush.bf16.msra.mxu0 %v5382
    %5691 = vmatpush.bf16.msra.mxu0 %v5376
    %5692 = vmatpush.bf16.msra.mxu0 %v5370
    %5693 = vmatpush.bf16.msra.mxu0 %v5364
    %5694 = vmatpush.bf16.msra.mxu0 %v5358
    %5695 = vmatmul.bf16.gmra.mxu0 %v3773
    %v5696 = vpop.f32.mrf.mxu0
    %v5697 = vadd.f32 %v5684, %v5696
    %v5698 = vpop.f32.mrf.mxu0
    %5699 = vdwg.mxu0
    %5700 = vmatpush.bf16.msra.mxu0 %v5448
    %5701 = vmatpush.bf16.msra.mxu0 %v5442
    %5702 = vmatpush.bf16.msra.mxu0 %v5436
    %5703 = vmatpush.bf16.msra.mxu0 %v5430
    %5704 = vmatpush.bf16.msra.mxu0 %v5424
    %5705 = vmatpush.bf16.msra.mxu0 %v5418
    %5706 = vmatpush.bf16.msra.mxu0 %v5412
    %5707 = vmatpush.bf16.msra.mxu0 %v5406
    %5708 = vmatmul.bf16.gmra.mxu0 %v3774
    %v5709 = vpop.f32.mrf.mxu0
    %v5710 = vadd.f32 %v5697, %v5709
    %v5711 = vpop.f32.mrf.mxu0
    %5712 = vdwg.mxu0
    %5713 = vmatpush.bf16.msra.mxu0 %v5353
    %5714 = vmatpush.bf16.msra.mxu0 %v5347
    %5715 = vmatpush.bf16.msra.mxu0 %v5341
    %5716 = vmatpush.bf16.msra.mxu0 %v5335
    %5717 = vmatpush.bf16.msra.mxu0 %v5329
    %5718 = vmatpush.bf16.msra.mxu0 %v5323
    %5719 = vmatpush.bf16.msra.mxu0 %v5317
    %5720 = vmatpush.bf16.msra.mxu0 %v5311
    %5721 = vmatmul.bf16.gmra.mxu0 %v3772
    %v5722 = vpop.f32.mrf.mxu0
    %v5723 = vadd.f32 %v4795, %v5722
    %v5724 = vpop.f32.mrf.mxu0
    %5725 = vdwg.mxu0
    %5726 = vmatpush.bf16.msra.mxu0 %v5401
    %5727 = vmatpush.bf16.msra.mxu0 %v5395
    %5728 = vmatpush.bf16.msra.mxu0 %v5389
    %5729 = vmatpush.bf16.msra.mxu0 %v5383
    %5730 = vmatpush.bf16.msra.mxu0 %v5377
    %5731 = vmatpush.bf16.msra.mxu0 %v5371
    %5732 = vmatpush.bf16.msra.mxu0 %v5365
    %5733 = vmatpush.bf16.msra.mxu0 %v5359
    %5734 = vmatmul.bf16.gmra.mxu0 %v3773
    %v5735 = vpop.f32.mrf.mxu0
    %v5736 = vadd.f32 %v5723, %v5735
    %v5737 = vpop.f32.mrf.mxu0
    %5738 = vdwg.mxu0
    %5739 = vmatpush.bf16.msra.mxu0 %v5449
    %5740 = vmatpush.bf16.msra.mxu0 %v5443
    %5741 = vmatpush.bf16.msra.mxu0 %v5437
    %5742 = vmatpush.bf16.msra.mxu0 %v5431
    %5743 = vmatpush.bf16.msra.mxu0 %v5425
    %5744 = vmatpush.bf16.msra.mxu0 %v5419
    %5745 = vmatpush.bf16.msra.mxu0 %v5413
    %5746 = vmatpush.bf16.msra.mxu0 %v5407
    %5747 = vmatmul.bf16.gmra.mxu0 %v3774
    %v5748 = vpop.f32.mrf.mxu0
    %v5749 = vadd.f32 %v5736, %v5748
    %v5750 = vpop.f32.mrf.mxu0
    %5751 = vdwg.mxu0
    %5752 = vmatpush.bf16.msra.mxu0 %v5354
    %5753 = vmatpush.bf16.msra.mxu0 %v5348
    %5754 = vmatpush.bf16.msra.mxu0 %v5342
    %5755 = vmatpush.bf16.msra.mxu0 %v5336
    %5756 = vmatpush.bf16.msra.mxu0 %v5330
    %5757 = vmatpush.bf16.msra.mxu0 %v5324
    %5758 = vmatpush.bf16.msra.mxu0 %v5318
    %5759 = vmatpush.bf16.msra.mxu0 %v5312
    %5760 = vmatmul.bf16.gmra.mxu0 %v3772
    %v5761 = vpop.f32.mrf.mxu0
    %v5762 = vadd.f32 %v4834, %v5761
    %v5763 = vpop.f32.mrf.mxu0
    %5764 = vdwg.mxu0
    %5765 = vmatpush.bf16.msra.mxu0 %v5402
    %5766 = vmatpush.bf16.msra.mxu0 %v5396
    %5767 = vmatpush.bf16.msra.mxu0 %v5390
    %5768 = vmatpush.bf16.msra.mxu0 %v5384
    %5769 = vmatpush.bf16.msra.mxu0 %v5378
    %5770 = vmatpush.bf16.msra.mxu0 %v5372
    %5771 = vmatpush.bf16.msra.mxu0 %v5366
    %5772 = vmatpush.bf16.msra.mxu0 %v5360
    %5773 = vmatmul.bf16.gmra.mxu0 %v3773
    %v5774 = vpop.f32.mrf.mxu0
    %v5775 = vadd.f32 %v5762, %v5774
    %v5776 = vpop.f32.mrf.mxu0
    %5777 = vdwg.mxu0
    %5778 = vmatpush.bf16.msra.mxu0 %v5450
    %5779 = vmatpush.bf16.msra.mxu0 %v5444
    %5780 = vmatpush.bf16.msra.mxu0 %v5438
    %5781 = vmatpush.bf16.msra.mxu0 %v5432
    %5782 = vmatpush.bf16.msra.mxu0 %v5426
    %5783 = vmatpush.bf16.msra.mxu0 %v5420
    %5784 = vmatpush.bf16.msra.mxu0 %v5414
    %5785 = vmatpush.bf16.msra.mxu0 %v5408
    %5786 = vmatmul.bf16.gmra.mxu0 %v3774
    %v5787 = vpop.f32.mrf.mxu0
    %v5788 = vadd.f32 %v5775, %v5787
    %v5789 = vpop.f32.mrf.mxu0
    %5790 = vdwg.mxu0
    %5791 = vmatpush.bf16.msra.mxu0 %v5355
    %5792 = vmatpush.bf16.msra.mxu0 %v5349
    %5793 = vmatpush.bf16.msra.mxu0 %v5343
    %5794 = vmatpush.bf16.msra.mxu0 %v5337
    %5795 = vmatpush.bf16.msra.mxu0 %v5331
    %5796 = vmatpush.bf16.msra.mxu0 %v5325
    %5797 = vmatpush.bf16.msra.mxu0 %v5319
    %5798 = vmatpush.bf16.msra.mxu0 %v5313
    %5799 = vmatmul.bf16.gmra.mxu0 %v3772
    %v5800 = vpop.f32.mrf.mxu0
    %v5801 = vadd.f32 %v4873, %v5800
    %v5802 = vpop.f32.mrf.mxu0
    %5803 = vdwg.mxu0
    %5804 = vmatpush.bf16.msra.mxu0 %v5403
    %5805 = vmatpush.bf16.msra.mxu0 %v5397
    %5806 = vmatpush.bf16.msra.mxu0 %v5391
    %5807 = vmatpush.bf16.msra.mxu0 %v5385
    %5808 = vmatpush.bf16.msra.mxu0 %v5379
    %5809 = vmatpush.bf16.msra.mxu0 %v5373
    %5810 = vmatpush.bf16.msra.mxu0 %v5367
    %5811 = vmatpush.bf16.msra.mxu0 %v5361
    %5812 = vmatmul.bf16.gmra.mxu0 %v3773
    %v5813 = vpop.f32.mrf.mxu0
    %v5814 = vadd.f32 %v5801, %v5813
    %v5815 = vpop.f32.mrf.mxu0
    %5816 = vdwg.mxu0
    %5817 = vmatpush.bf16.msra.mxu0 %v5451
    %5818 = vmatpush.bf16.msra.mxu0 %v5445
    %5819 = vmatpush.bf16.msra.mxu0 %v5439
    %5820 = vmatpush.bf16.msra.mxu0 %v5433
    %5821 = vmatpush.bf16.msra.mxu0 %v5427
    %5822 = vmatpush.bf16.msra.mxu0 %v5421
    %5823 = vmatpush.bf16.msra.mxu0 %v5415
    %5824 = vmatpush.bf16.msra.mxu0 %v5409
    %5825 = vmatmul.bf16.gmra.mxu0 %v3774
    %v5826 = vpop.f32.mrf.mxu0
    %v5827 = vadd.f32 %v5814, %v5826
    %v5828 = vpop.f32.mrf.mxu0
    %5829 = vdwg.mxu0
    %v5830 = vld [vmem:[#allocation19 + $0x1e] sm:$0x3f]
    %v5832 = vperm.slane %v5830, 0
    %v5833 = vperm.slane %v5830, 1
    %v5834 = vperm.slane %v5830, 2
    %v5835 = vperm.slane %v5830, 3
    %v5836 = vperm.slane %v5830, 4
    %v5837 = vperm.slane %v5830, 5
    %v5844 = vadd.f32 %v5632, %v5832
    %v5845 = vadd.f32 %v5671, %v5833
    %v5846 = vadd.f32 %v5710, %v5834
    %v5847 = vadd.f32 %v5749, %v5835
    %v5848 = vadd.f32 %v5788, %v5836
    %v5849 = vadd.f32 %v5827, %v5837
    %v5850 = vmax.f32 %v5844, 0.0
    %v5851 = vmax.f32 %v5845, 0.0
    %v5852 = vmax.f32 %v5846, 0.0
    %v5853 = vld [vmem:[#allocation19 + $0x24] sm:$0x7]
    %v5855 = vperm.slane %v5853, 0
    %v5856 = vperm.slane %v5853, 1
    %v5857 = vperm.slane %v5853, 2
    %v5861 = vmul.f32 %v5850, %v5855
    %v5862 = vmul.f32 %v5851, %v5856
    %v5863 = vmul.f32 %v5852, %v5857
    %v5864 = vld [vmem:[#allocation19 + $0x27] sm:$0x7]
    %v5866 = vperm.slane %v5864, 0
    %v5867 = vperm.slane %v5864, 1
    %v5868 = vperm.slane %v5864, 2
    %v5872 = vadd.f32 %v5861, %v5866
    %v5873 = vadd.f32 %v5862, %v5867
    %v5874 = vadd.f32 %v5863, %v5868
    %v5875 = vmax.f32 %v5847, 0.0
    %v5876 = vmax.f32 %v5848, 0.0
    %v5877 = vmax.f32 %v5849, 0.0
    %v5878 = vld [vmem:[%s7] sm:$0xff]
    %v5879 = vld [vmem:[%s7 + $0x8] sm:$0xff]
    %v5880 = vld [vmem:[%s7 + $0x10] sm:$0xff]
    %v5881 = vld [vmem:[%s7 + $0x18] sm:$0xff]
    %v5882 = vld [vmem:[%s7 + $0x20] sm:$0xff]
    %v5883 = vld [vmem:[%s7 + $0x28] sm:$0xff]
    %v5884 = vld [vmem:[%s7 + $0x30] sm:$0xff]
    %v5885 = vld [vmem:[%s7 + $0x38] sm:$0xff]
    %v5886 = vld [vmem:[%s7 + $0x40] sm:$0xff]
    %v5887 = vld [vmem:[%s7 + $0x48] sm:$0xff]
    %v5888 = vld [vmem:[%s7 + $0x50] sm:$0xff]
    %v5889 = vld [vmem:[%s7 + $0x58] sm:$0xff]
    %v5890 = vld [vmem:[%s7 + $0x60] sm:$0xff]
    %v5891 = vld [vmem:[%s7 + $0x68] sm:$0xff]
    %v5892 = vld [vmem:[%s7 + $0x70] sm:$0xff]
    %v5893 = vld [vmem:[%s7 + $0x78] sm:$0xff]
    %v5894 = vld [vmem:[%s7 + $0x80] sm:$0xff]
    %v5895 = vld [vmem:[%s7 + $0x88] sm:$0xff]
    %v5896 = vld [vmem:[%s7 + $0x90] sm:$0xff]
    %v5897 = vld [vmem:[%s7 + $0x98] sm:$0xff]
    %v5898 = vld [vmem:[%s7 + $0xa0] sm:$0xff]
    %v5899 = vld [vmem:[%s7 + $0xa8] sm:$0xff]
    %v5900 = vld [vmem:[%s7 + $0xb0] sm:$0xff]
    %v5901 = vld [vmem:[%s7 + $0xb8] sm:$0xff]
    %v5902 = vld [vmem:[%s7 + $0xc0] sm:$0xff]
    %v5903 = vld [vmem:[%s7 + $0xc8] sm:$0xff]
    %v5904 = vld [vmem:[%s7 + $0xd0] sm:$0xff]
    %v5905 = vld [vmem:[%s7 + $0xd8] sm:$0xff]
    %v5906 = vld [vmem:[%s7 + $0xe0] sm:$0xff]
    %v5907 = vld [vmem:[%s7 + $0xe8] sm:$0xff]
    %v5908 = vld [vmem:[%s7 + $0xf0] sm:$0xff]
    %v5909 = vld [vmem:[%s7 + $0xf8] sm:$0xff]
    %v5910 = vld [vmem:[%s7 + $0x100] sm:$0xff]
    %v5911 = vld [vmem:[%s7 + $0x108] sm:$0xff]
    %v5912 = vld [vmem:[%s7 + $0x110] sm:$0xff]
    %v5913 = vld [vmem:[%s7 + $0x118] sm:$0xff]
    %v5914 = vld [vmem:[%s7 + $0x120] sm:$0xff]
    %v5915 = vld [vmem:[%s7 + $0x128] sm:$0xff]
    %v5916 = vld [vmem:[%s7 + $0x130] sm:$0xff]
    %v5917 = vld [vmem:[%s7 + $0x138] sm:$0xff]
    %v5918 = vld [vmem:[%s7 + $0x140] sm:$0xff]
    %v5919 = vld [vmem:[%s7 + $0x148] sm:$0xff]
    %v5920 = vld [vmem:[%s7 + $0x150] sm:$0xff]
    %v5921 = vld [vmem:[%s7 + $0x158] sm:$0xff]
    %v5922 = vld [vmem:[%s7 + $0x160] sm:$0xff]
    %v5923 = vld [vmem:[%s7 + $0x168] sm:$0xff]
    %v5924 = vld [vmem:[%s7 + $0x170] sm:$0xff]
    %v5925 = vld [vmem:[%s7 + $0x178] sm:$0xff]
    %v5926 = vpack.c.bf16 %v5872, %v5872
    %v5927 = vpack.c.bf16 %v5873, %v5873
    %v5928 = vpack.c.bf16 %v5874, %v5874
    %v5929 = vld [vmem:[#allocation19 + $0x2a] sm:$0x3]
    %v5931 = vperm.slane %v5929, 0
    %v5932 = vperm.slane %v5929, 1
    %v5983 = vunpack.c.l.b16 %v5878
    %v5984 = vunpack.c.h.b16 %v5878
    %v5985 = vunpack.c.l.b16 %v5879
    %v5986 = vunpack.c.h.b16 %v5879
    %v5987 = vunpack.c.l.b16 %v5880
    %v5988 = vunpack.c.h.b16 %v5880
    %v5989 = vunpack.c.l.b16 %v5881
    %v5990 = vunpack.c.h.b16 %v5881
    %v5991 = vunpack.c.l.b16 %v5882
    %v5992 = vunpack.c.h.b16 %v5882
    %v5993 = vunpack.c.l.b16 %v5883
    %v5994 = vunpack.c.h.b16 %v5883
    %v5995 = vunpack.c.l.b16 %v5884
    %v5996 = vunpack.c.h.b16 %v5884
    %v5997 = vunpack.c.l.b16 %v5885
    %v5998 = vunpack.c.h.b16 %v5885
    %v5999 = vunpack.c.l.b16 %v5886
    %v6000 = vunpack.c.h.b16 %v5886
    %v6001 = vunpack.c.l.b16 %v5887
    %v6002 = vunpack.c.h.b16 %v5887
    %v6003 = vunpack.c.l.b16 %v5888
    %v6004 = vunpack.c.h.b16 %v5888
    %v6005 = vunpack.c.l.b16 %v5889
    %v6006 = vunpack.c.h.b16 %v5889
    %v6007 = vunpack.c.l.b16 %v5890
    %v6008 = vunpack.c.h.b16 %v5890
    %v6009 = vunpack.c.l.b16 %v5891
    %v6010 = vunpack.c.h.b16 %v5891
    %v6011 = vunpack.c.l.b16 %v5892
    %v6012 = vunpack.c.h.b16 %v5892
    %v6013 = vunpack.c.l.b16 %v5893
    %v6014 = vunpack.c.h.b16 %v5893
    %v6015 = vunpack.c.l.b16 %v5894
    %v6016 = vunpack.c.h.b16 %v5894
    %v6017 = vunpack.c.l.b16 %v5895
    %v6018 = vunpack.c.h.b16 %v5895
    %v6019 = vunpack.c.l.b16 %v5896
    %v6020 = vunpack.c.h.b16 %v5896
    %v6021 = vunpack.c.l.b16 %v5897
    %v6022 = vunpack.c.h.b16 %v5897
    %v6023 = vunpack.c.l.b16 %v5898
    %v6024 = vunpack.c.h.b16 %v5898
    %v6025 = vunpack.c.l.b16 %v5899
    %v6026 = vunpack.c.h.b16 %v5899
    %v6027 = vunpack.c.l.b16 %v5900
    %v6028 = vunpack.c.h.b16 %v5900
    %v6029 = vunpack.c.l.b16 %v5901
    %v6030 = vunpack.c.h.b16 %v5901
    %v6031 = vunpack.c.l.b16 %v5902
    %v6032 = vunpack.c.h.b16 %v5902
    %v6033 = vunpack.c.l.b16 %v5903
    %v6034 = vunpack.c.h.b16 %v5903
    %v6035 = vunpack.c.l.b16 %v5904
    %v6036 = vunpack.c.h.b16 %v5904
    %v6037 = vunpack.c.l.b16 %v5905
    %v6038 = vunpack.c.h.b16 %v5905
    %v6039 = vunpack.c.l.b16 %v5906
    %v6040 = vunpack.c.h.b16 %v5906
    %v6041 = vunpack.c.l.b16 %v5907
    %v6042 = vunpack.c.h.b16 %v5907
    %v6043 = vunpack.c.l.b16 %v5908
    %v6044 = vunpack.c.h.b16 %v5908
    %v6045 = vunpack.c.l.b16 %v5909
    %v6046 = vunpack.c.h.b16 %v5909
    %v6047 = vunpack.c.l.b16 %v5910
    %v6048 = vunpack.c.h.b16 %v5910
    %v6049 = vunpack.c.l.b16 %v5911
    %v6050 = vunpack.c.h.b16 %v5911
    %v6051 = vunpack.c.l.b16 %v5912
    %v6052 = vunpack.c.h.b16 %v5912
    %v6053 = vunpack.c.l.b16 %v5913
    %v6054 = vunpack.c.h.b16 %v5913
    %v6055 = vunpack.c.l.b16 %v5914
    %v6056 = vunpack.c.h.b16 %v5914
    %v6057 = vunpack.c.l.b16 %v5915
    %v6058 = vunpack.c.h.b16 %v5915
    %v6059 = vunpack.c.l.b16 %v5916
    %v6060 = vunpack.c.h.b16 %v5916
    %v6061 = vunpack.c.l.b16 %v5917
    %v6062 = vunpack.c.h.b16 %v5917
    %v6063 = vunpack.c.l.b16 %v5918
    %v6064 = vunpack.c.h.b16 %v5918
    %v6065 = vunpack.c.l.b16 %v5919
    %v6066 = vunpack.c.h.b16 %v5919
    %v6067 = vunpack.c.l.b16 %v5920
    %v6068 = vunpack.c.h.b16 %v5920
    %v6069 = vunpack.c.l.b16 %v5921
    %v6070 = vunpack.c.h.b16 %v5921
    %v6071 = vunpack.c.l.b16 %v5922
    %v6072 = vunpack.c.h.b16 %v5922
    %v6073 = vunpack.c.l.b16 %v5923
    %v6074 = vunpack.c.h.b16 %v5923
    %v6075 = vunpack.c.l.b16 %v5924
    %v6076 = vunpack.c.h.b16 %v5924
    %v6077 = vunpack.c.l.b16 %v5925
    %v6078 = vunpack.c.h.b16 %v5925
    %v6079 = vpack.c.b16 %v5985, %v5983
    %v6080 = vpack.c.b16 %v5986, %v5984
    %v6081 = vpack.c.b16 %v5989, %v5987
    %v6082 = vpack.c.b16 %v5990, %v5988
    %v6083 = vpack.c.b16 %v5993, %v5991
    %v6084 = vpack.c.b16 %v5994, %v5992
    %v6085 = vpack.c.b16 %v5997, %v5995
    %v6086 = vpack.c.b16 %v5998, %v5996
    %v6087 = vpack.c.b16 %v6001, %v5999
    %v6088 = vpack.c.b16 %v6002, %v6000
    %v6089 = vpack.c.b16 %v6005, %v6003
    %v6090 = vpack.c.b16 %v6006, %v6004
    %v6091 = vpack.c.b16 %v6009, %v6007
    %v6092 = vpack.c.b16 %v6010, %v6008
    %v6093 = vpack.c.b16 %v6013, %v6011
    %v6094 = vpack.c.b16 %v6014, %v6012
    %v6095 = vpack.c.b16 %v6017, %v6015
    %v6096 = vpack.c.b16 %v6018, %v6016
    %v6097 = vpack.c.b16 %v6021, %v6019
    %v6098 = vpack.c.b16 %v6022, %v6020
    %v6099 = vpack.c.b16 %v6025, %v6023
    %v6100 = vpack.c.b16 %v6026, %v6024
    %v6101 = vpack.c.b16 %v6029, %v6027
    %v6102 = vpack.c.b16 %v6030, %v6028
    %v6103 = vpack.c.b16 %v6033, %v6031
    %v6104 = vpack.c.b16 %v6034, %v6032
    %v6105 = vpack.c.b16 %v6037, %v6035
    %v6106 = vpack.c.b16 %v6038, %v6036
    %v6107 = vpack.c.b16 %v6041, %v6039
    %v6108 = vpack.c.b16 %v6042, %v6040
    %v6109 = vpack.c.b16 %v6045, %v6043
    %v6110 = vpack.c.b16 %v6046, %v6044
    %v6111 = vpack.c.b16 %v6049, %v6047
    %v6112 = vpack.c.b16 %v6050, %v6048
    %v6113 = vpack.c.b16 %v6053, %v6051
    %v6114 = vpack.c.b16 %v6054, %v6052
    %v6115 = vpack.c.b16 %v6057, %v6055
    %v6116 = vpack.c.b16 %v6058, %v6056
    %v6117 = vpack.c.b16 %v6061, %v6059
    %v6118 = vpack.c.b16 %v6062, %v6060
    %v6119 = vpack.c.b16 %v6065, %v6063
    %v6120 = vpack.c.b16 %v6066, %v6064
    %v6121 = vpack.c.b16 %v6069, %v6067
    %v6122 = vpack.c.b16 %v6070, %v6068
    %v6123 = vpack.c.b16 %v6073, %v6071
    %v6124 = vpack.c.b16 %v6074, %v6072
    %v6125 = vpack.c.b16 %v6077, %v6075
    %v6126 = vpack.c.b16 %v6078, %v6076
    %6175 = vmatpush.bf16.msra.mxu0 %v6093
    %6176 = vmatpush.bf16.msra.mxu0 %v6091
    %6177 = vmatpush.bf16.msra.mxu0 %v6089
    %6178 = vmatpush.bf16.msra.mxu0 %v6087
    %6179 = vmatpush.bf16.msra.mxu0 %v6085
    %6180 = vmatpush.bf16.msra.mxu0 %v6083
    %6181 = vmatpush.bf16.msra.mxu0 %v6081
    %6182 = vmatpush.bf16.msra.mxu0 %v6079
    %6183 = vmatmul.bf16.gmra.mxu0 %v5926
    %v6184 = vpop.f32.mrf.mxu0
    %v6185 = vadd.f32 %v5931, %v6184
    %v6186 = vpop.f32.mrf.mxu0
    %6187 = vdwg.mxu0
    %6188 = vmatpush.bf16.msra.mxu0 %v6109
    %6189 = vmatpush.bf16.msra.mxu0 %v6107
    %6190 = vmatpush.bf16.msra.mxu0 %v6105
    %6191 = vmatpush.bf16.msra.mxu0 %v6103
    %6192 = vmatpush.bf16.msra.mxu0 %v6101
    %6193 = vmatpush.bf16.msra.mxu0 %v6099
    %6194 = vmatpush.bf16.msra.mxu0 %v6097
    %6195 = vmatpush.bf16.msra.mxu0 %v6095
    %6196 = vmatmul.bf16.gmra.mxu0 %v5927
    %v6197 = vpop.f32.mrf.mxu0
    %v6198 = vadd.f32 %v6185, %v6197
    %v6199 = vpop.f32.mrf.mxu0
    %6200 = vdwg.mxu0
    %6201 = vmatpush.bf16.msra.mxu0 %v6125
    %6202 = vmatpush.bf16.msra.mxu0 %v6123
    %6203 = vmatpush.bf16.msra.mxu0 %v6121
    %6204 = vmatpush.bf16.msra.mxu0 %v6119
    %6205 = vmatpush.bf16.msra.mxu0 %v6117
    %6206 = vmatpush.bf16.msra.mxu0 %v6115
    %6207 = vmatpush.bf16.msra.mxu0 %v6113
    %6208 = vmatpush.bf16.msra.mxu0 %v6111
    %6209 = vmatmul.bf16.gmra.mxu0 %v5928
    %v6210 = vpop.f32.mrf.mxu0
    %v6211 = vadd.f32 %v6198, %v6210
    %v6212 = vpop.f32.mrf.mxu0
    %6213 = vdwg.mxu0
    %6214 = vmatpush.bf16.msra.mxu0 %v6094
    %6215 = vmatpush.bf16.msra.mxu0 %v6092
    %6216 = vmatpush.bf16.msra.mxu0 %v6090
    %6217 = vmatpush.bf16.msra.mxu0 %v6088
    %6218 = vmatpush.bf16.msra.mxu0 %v6086
    %6219 = vmatpush.bf16.msra.mxu0 %v6084
    %6220 = vmatpush.bf16.msra.mxu0 %v6082
    %6221 = vmatpush.bf16.msra.mxu0 %v6080
    %6222 = vmatmul.bf16.gmra.mxu0 %v5926
    %v6223 = vpop.f32.mrf.mxu0
    %v6224 = vadd.f32 %v5932, %v6223
    %v6225 = vpop.f32.mrf.mxu0
    %6226 = vdwg.mxu0
    %6227 = vmatpush.bf16.msra.mxu0 %v6110
    %6228 = vmatpush.bf16.msra.mxu0 %v6108
    %6229 = vmatpush.bf16.msra.mxu0 %v6106
    %6230 = vmatpush.bf16.msra.mxu0 %v6104
    %6231 = vmatpush.bf16.msra.mxu0 %v6102
    %6232 = vmatpush.bf16.msra.mxu0 %v6100
    %6233 = vmatpush.bf16.msra.mxu0 %v6098
    %6234 = vmatpush.bf16.msra.mxu0 %v6096
    %6235 = vmatmul.bf16.gmra.mxu0 %v5927
    %v6236 = vpop.f32.mrf.mxu0
    %v6237 = vadd.f32 %v6224, %v6236
    %v6238 = vpop.f32.mrf.mxu0
    %6239 = vdwg.mxu0
    %6240 = vmatpush.bf16.msra.mxu0 %v6126
    %6241 = vmatpush.bf16.msra.mxu0 %v6124
    %6242 = vmatpush.bf16.msra.mxu0 %v6122
    %6243 = vmatpush.bf16.msra.mxu0 %v6120
    %6244 = vmatpush.bf16.msra.mxu0 %v6118
    %6245 = vmatpush.bf16.msra.mxu0 %v6116
    %6246 = vmatpush.bf16.msra.mxu0 %v6114
    %6247 = vmatpush.bf16.msra.mxu0 %v6112
    %6248 = vmatmul.bf16.gmra.mxu0 %v5928
    %v6249 = vpop.f32.mrf.mxu0
    %v6250 = vadd.f32 %v6237, %v6249
    %v6251 = vpop.f32.mrf.mxu0
    %6252 = vdwg.mxu0
    %v6253 = vmax.f32 %v6211, 0.0
    %v6254 = vmax.f32 %v6250, 0.0
    %v6255 = vld [vmem:[#allocation19 + $0x2c] sm:$0x3]
    %v6257 = vperm.slane %v6255, 0
    %v6258 = vperm.slane %v6255, 1
    %v6261 = vmul.f32 %v6253, %v6257
    %v6262 = vmul.f32 %v6254, %v6258
    %v6263 = vld [vmem:[#allocation19 + $0x2e] sm:$0x3]
    %v6265 = vperm.slane %v6263, 0
    %v6266 = vperm.slane %v6263, 1
    %v6269 = vadd.f32 %v6261, %v6265
    %v6270 = vadd.f32 %v6262, %v6266
    %v6271 = vld [vmem:[#allocation13] sm:$0xf]
    %v6272 = vld [vmem:[#allocation13 + $0x4] sm:$0xf]
    %v6273 = vld [vmem:[#allocation13 + $0x8] sm:$0xf]
    %v6274 = vld [vmem:[#allocation13 + $0xc] sm:$0xf]
    %v6275 = vld [vmem:[#allocation13 + $0x10] sm:$0xf]
    %v6276 = vld [vmem:[#allocation13 + $0x14] sm:$0xf]
    %v6277 = vld [vmem:[#allocation13 + $0x18] sm:$0xf]
    %v6278 = vld [vmem:[#allocation13 + $0x1c] sm:$0xf]
    %v6279 = vld [vmem:[#allocation13 + $0x20] sm:$0xf]
    %v6280 = vld [vmem:[#allocation13 + $0x24] sm:$0xf]
    %v6281 = vld [vmem:[#allocation13 + $0x28] sm:$0xf]
    %v6282 = vld [vmem:[#allocation13 + $0x2c] sm:$0xf]
    %v6283 = vld [vmem:[#allocation13 + $0x30] sm:$0xf]
    %v6284 = vld [vmem:[#allocation13 + $0x34] sm:$0xf]
    %v6285 = vld [vmem:[#allocation13 + $0x38] sm:$0xf]
    %v6286 = vld [vmem:[#allocation13 + $0x3c] sm:$0xf]
    %v6287 = vld [vmem:[#allocation13 + $0x40] sm:$0xf]
    %v6288 = vld [vmem:[#allocation13 + $0x44] sm:$0xf]
    %v6289 = vld [vmem:[#allocation13 + $0x48] sm:$0xf]
    %v6290 = vld [vmem:[#allocation13 + $0x4c] sm:$0xf]
    %v6291 = vld [vmem:[#allocation13 + $0x50] sm:$0xf]
    %v6292 = vld [vmem:[#allocation13 + $0x54] sm:$0xf]
    %v6293 = vld [vmem:[#allocation13 + $0x58] sm:$0xf]
    %v6294 = vld [vmem:[#allocation13 + $0x5c] sm:$0xf]
    %v6295 = vpack.c.bf16 %v6269, %v6269
    %v6296 = vpack.c.bf16 %v6270, %v6270
    %v6297 = vld [vmem:[#allocation19 + $0x30] sm:$0x1]
    %v6299 = vperm.slane %v6297, 0
    %v6325 = vunpack.c.l.b16 %v6271
    %v6326 = vunpack.c.l.b16 %v6272
    %v6327 = vunpack.c.l.b16 %v6273
    %v6328 = vunpack.c.l.b16 %v6274
    %v6329 = vunpack.c.l.b16 %v6275
    %v6330 = vunpack.c.l.b16 %v6276
    %v6331 = vunpack.c.l.b16 %v6277
    %v6332 = vunpack.c.l.b16 %v6278
    %v6333 = vunpack.c.l.b16 %v6279
    %v6334 = vunpack.c.l.b16 %v6280
    %v6335 = vunpack.c.l.b16 %v6281
    %v6336 = vunpack.c.l.b16 %v6282
    %v6337 = vunpack.c.l.b16 %v6283
    %v6338 = vunpack.c.l.b16 %v6284
    %v6339 = vunpack.c.l.b16 %v6285
    %v6340 = vunpack.c.l.b16 %v6286
    %v6341 = vunpack.c.l.b16 %v6287
    %v6342 = vunpack.c.l.b16 %v6288
    %v6343 = vunpack.c.l.b16 %v6289
    %v6344 = vunpack.c.l.b16 %v6290
    %v6345 = vunpack.c.l.b16 %v6291
    %v6346 = vunpack.c.l.b16 %v6292
    %v6347 = vunpack.c.l.b16 %v6293
    %v6348 = vunpack.c.l.b16 %v6294
    %v6349 = vpack.c.b16 %v6326, %v6325
    %v6350 = vpack.c.b16 %v6328, %v6327
    %v6351 = vpack.c.b16 %v6330, %v6329
    %v6352 = vpack.c.b16 %v6332, %v6331
    %v6353 = vpack.c.b16 %v6334, %v6333
    %v6354 = vpack.c.b16 %v6336, %v6335
    %v6355 = vpack.c.b16 %v6338, %v6337
    %v6356 = vpack.c.b16 %v6340, %v6339
    %v6357 = vpack.c.b16 %v6342, %v6341
    %v6358 = vpack.c.b16 %v6344, %v6343
    %v6359 = vpack.c.b16 %v6346, %v6345
    %v6360 = vpack.c.b16 %v6348, %v6347
    %vm6373 = vcmask 523264
    %v6375 = vsel %vm6373, %v6296, 0
    %6377 = vmatpush.bf16.msra.mxu0 %v6356
    %6378 = vmatpush.bf16.msra.mxu0 %v6355
    %6379 = vmatpush.bf16.msra.mxu0 %v6354
    %6380 = vmatpush.bf16.msra.mxu0 %v6353
    %6381 = vmatpush.bf16.msra.mxu0 %v6352
    %6382 = vmatpush.bf16.msra.mxu0 %v6351
    %6383 = vmatpush.bf16.msra.mxu0 %v6350
    %6384 = vmatpush.bf16.msra.mxu0 %v6349
    %6385 = vmatmul.bf16.gmra.mxu0 %v6295
    %v6386 = vpop.f32.mrf.mxu0
    %v6387 = vadd.f32 %v6299, %v6386
    %v6388 = vpop.f32.mrf.mxu0
    %6389 = vdwg.mxu0
    %6390 = vmatpush.bf16.msra.mxu0 0
    %6391 = vmatpush.bf16.msra.mxu0 0
    %6392 = vmatpush.bf16.msra.mxu0 0
    %6393 = vmatpush.bf16.msra.mxu0 0
    %6394 = vmatpush.bf16.msra.mxu0 %v6360
    %6395 = vmatpush.bf16.msra.mxu0 %v6359
    %6396 = vmatpush.bf16.msra.mxu0 %v6358
    %6397 = vmatpush.bf16.msra.mxu0 %v6357
    %6398 = vmatmul.bf16.gmra.mxu0 %v6375
    %v6399 = vpop.f32.mrf.mxu0
    %v6400 = vadd.f32 %v6387, %v6399
    %v6401 = vpop.f32.mrf.mxu0
    %6402 = vdwg.mxu0
    %v6403 = vmax.f32 %v6400, 0.0
    %v6404 = vld [vmem:[#allocation19 + $0x31] sm:$0x1]
    %v6406 = vperm.slane %v6404, 0
    %v6408 = vmul.f32 %v6403, %v6406
    %v6409 = vld [vmem:[#allocation19 + $0x32] sm:$0x1]
    %v6411 = vperm.slane %v6409, 0
    %v6413 = vadd.f32 %v6408, %v6411
    %v6414 = vpack.c.bf16 %v6413, %v6413
    %v6415 = vpack.c.bf16 %v5876, %v5875
    %v6416 = vpack.c.bf16 %v5877, %v5877
    %v6419 = vunpack.c.l.b16 %v6415
    %v6420 = vunpack.c.h.b16 %v6415
    %v6421 = vunpack.c.l.b16 %v6416
    %v6422 = vpack.c.b16 %v6419, %v6419
    %v6423 = vpack.c.b16 %v6420, %v6420
    %v6424 = vpack.c.b16 %v6421, %v6421
    %v6428 = vld [vmem:[#allocation15] sm:$0xf]
    %v6429 = vld [vmem:[#allocation15 + $0x4] sm:$0xf]
    %v6430 = vld [vmem:[#allocation15 + $0x8] sm:$0xf]
    %v6431 = vld [vmem:[#allocation15 + $0xc] sm:$0xf]
    %v6432 = vld [vmem:[#allocation15 + $0x10] sm:$0xf]
    %v6433 = vld [vmem:[#allocation15 + $0x14] sm:$0xf]
    %v6434 = vld [vmem:[#allocation15 + $0x18] sm:$0xf]
    %v6435 = vld [vmem:[#allocation15 + $0x1c] sm:$0xf]
    %v6436 = vld [vmem:[#allocation15 + $0x20] sm:$0xf]
    %v6437 = vld [vmem:[#allocation15 + $0x24] sm:$0xf]
    %v6438 = vld [vmem:[#allocation15 + $0x28] sm:$0xf]
    %v6439 = vld [vmem:[#allocation15 + $0x2c] sm:$0xf]
    %v6440 = vld [vmem:[#allocation15 + $0x30] sm:$0xf]
    %v6441 = vld [vmem:[#allocation15 + $0x34] sm:$0xf]
    %v6442 = vld [vmem:[#allocation15 + $0x38] sm:$0xf]
    %v6443 = vld [vmem:[#allocation15 + $0x3c] sm:$0xf]
    %v6444 = vld [vmem:[#allocation15 + $0x40] sm:$0xf]
    %v6445 = vld [vmem:[#allocation15 + $0x44] sm:$0xf]
    %v6446 = vld [vmem:[#allocation15 + $0x48] sm:$0xf]
    %v6447 = vld [vmem:[#allocation15 + $0x4c] sm:$0xf]
    %v6448 = vld [vmem:[#allocation15 + $0x50] sm:$0xf]
    %v6449 = vld [vmem:[#allocation15 + $0x54] sm:$0xf]
    %v6450 = vld [vmem:[#allocation15 + $0x58] sm:$0xf]
    %v6451 = vld [vmem:[#allocation15 + $0x5c] sm:$0xf]
    %v6452 = vld [vmem:[#allocation15 + $0x60] sm:$0xf]
    %v6453 = vld [vmem:[#allocation15 + $0x64] sm:$0xf]
    %v6454 = vld [vmem:[#allocation15 + $0x68] sm:$0xf]
    %v6455 = vld [vmem:[#allocation15 + $0x6c] sm:$0xf]
    %v6456 = vld [vmem:[#allocation15 + $0x70] sm:$0xf]
    %v6457 = vld [vmem:[#allocation15 + $0x74] sm:$0xf]
    %v6458 = vld [vmem:[#allocation15 + $0x78] sm:$0xf]
    %v6459 = vld [vmem:[#allocation15 + $0x7c] sm:$0xf]
    %v6460 = vld [vmem:[#allocation15 + $0x80] sm:$0xf]
    %v6461 = vld [vmem:[#allocation15 + $0x84] sm:$0xf]
    %v6462 = vld [vmem:[#allocation15 + $0x88] sm:$0xf]
    %v6463 = vld [vmem:[#allocation15 + $0x8c] sm:$0xf]
    %v6464 = vld [vmem:[#allocation15 + $0x90] sm:$0xf]
    %v6465 = vld [vmem:[#allocation15 + $0x94] sm:$0xf]
    %v6466 = vld [vmem:[#allocation15 + $0x98] sm:$0xf]
    %v6467 = vld [vmem:[#allocation15 + $0x9c] sm:$0xf]
    %v6468 = vld [vmem:[#allocation15 + $0xa0] sm:$0xf]
    %v6469 = vld [vmem:[#allocation15 + $0xa4] sm:$0xf]
    %v6470 = vld [vmem:[#allocation15 + $0xa8] sm:$0xf]
    %v6471 = vld [vmem:[#allocation15 + $0xac] sm:$0xf]
    %v6472 = vld [vmem:[#allocation15 + $0xb0] sm:$0xf]
    %v6473 = vld [vmem:[#allocation15 + $0xb4] sm:$0xf]
    %v6474 = vld [vmem:[#allocation15 + $0xb8] sm:$0xf]
    %v6475 = vld [vmem:[#allocation15 + $0xbc] sm:$0xf]
    %v6476 = vld [vmem:[#allocation15 + $0xc0] sm:$0xf]
    %v6477 = vld [vmem:[#allocation15 + $0xc4] sm:$0xf]
    %v6478 = vld [vmem:[#allocation15 + $0xc8] sm:$0xf]
    %v6479 = vld [vmem:[#allocation15 + $0xcc] sm:$0xf]
    %v6480 = vld [vmem:[#allocation15 + $0xd0] sm:$0xf]
    %v6481 = vld [vmem:[#allocation15 + $0xd4] sm:$0xf]
    %v6482 = vld [vmem:[#allocation15 + $0xd8] sm:$0xf]
    %v6483 = vld [vmem:[#allocation15 + $0xdc] sm:$0xf]
    %v6484 = vld [vmem:[#allocation15 + $0xe0] sm:$0xf]
    %v6485 = vld [vmem:[#allocation15 + $0xe4] sm:$0xf]
    %v6486 = vld [vmem:[#allocation15 + $0xe8] sm:$0xf]
    %v6487 = vld [vmem:[#allocation15 + $0xec] sm:$0xf]
    %v6488 = vld [vmem:[#allocation15 + $0xf0] sm:$0xf]
    %v6489 = vld [vmem:[#allocation15 + $0xf4] sm:$0xf]
    %v6490 = vld [vmem:[#allocation15 + $0xf8] sm:$0xf]
    %v6491 = vld [vmem:[#allocation15 + $0xfc] sm:$0xf]
    %v6492 = vld [vmem:[#allocation19 + $0x33] sm:$0x1]
    %v6494 = vperm.slane %v6492, 0
    %v6560 = vunpack.c.l.b16 %v6428
    %v6561 = vunpack.c.l.b16 %v6429
    %v6562 = vunpack.c.l.b16 %v6430
    %v6563 = vunpack.c.l.b16 %v6431
    %v6564 = vunpack.c.l.b16 %v6432
    %v6565 = vunpack.c.l.b16 %v6433
    %v6566 = vunpack.c.l.b16 %v6434
    %v6567 = vunpack.c.l.b16 %v6435
    %v6568 = vunpack.c.l.b16 %v6436
    %v6569 = vunpack.c.l.b16 %v6437
    %v6570 = vunpack.c.l.b16 %v6438
    %v6571 = vunpack.c.l.b16 %v6439
    %v6572 = vunpack.c.l.b16 %v6440
    %v6573 = vunpack.c.l.b16 %v6441
    %v6574 = vunpack.c.l.b16 %v6442
    %v6575 = vunpack.c.l.b16 %v6443
    %v6576 = vunpack.c.l.b16 %v6444
    %v6577 = vunpack.c.l.b16 %v6445
    %v6578 = vunpack.c.l.b16 %v6446
    %v6579 = vunpack.c.l.b16 %v6447
    %v6580 = vunpack.c.l.b16 %v6448
    %v6581 = vunpack.c.l.b16 %v6449
    %v6582 = vunpack.c.l.b16 %v6450
    %v6583 = vunpack.c.l.b16 %v6451
    %v6584 = vunpack.c.l.b16 %v6452
    %v6585 = vunpack.c.l.b16 %v6453
    %v6586 = vunpack.c.l.b16 %v6454
    %v6587 = vunpack.c.l.b16 %v6455
    %v6588 = vunpack.c.l.b16 %v6456
    %v6589 = vunpack.c.l.b16 %v6457
    %v6590 = vunpack.c.l.b16 %v6458
    %v6591 = vunpack.c.l.b16 %v6459
    %v6592 = vunpack.c.l.b16 %v6460
    %v6593 = vunpack.c.l.b16 %v6461
    %v6594 = vunpack.c.l.b16 %v6462
    %v6595 = vunpack.c.l.b16 %v6463
    %v6596 = vunpack.c.l.b16 %v6464
    %v6597 = vunpack.c.l.b16 %v6465
    %v6598 = vunpack.c.l.b16 %v6466
    %v6599 = vunpack.c.l.b16 %v6467
    %v6600 = vunpack.c.l.b16 %v6468
    %v6601 = vunpack.c.l.b16 %v6469
    %v6602 = vunpack.c.l.b16 %v6470
    %v6603 = vunpack.c.l.b16 %v6471
    %v6604 = vunpack.c.l.b16 %v6472
    %v6605 = vunpack.c.l.b16 %v6473
    %v6606 = vunpack.c.l.b16 %v6474
    %v6607 = vunpack.c.l.b16 %v6475
    %v6608 = vunpack.c.l.b16 %v6476
    %v6609 = vunpack.c.l.b16 %v6477
    %v6610 = vunpack.c.l.b16 %v6478
    %v6611 = vunpack.c.l.b16 %v6479
    %v6612 = vunpack.c.l.b16 %v6480
    %v6613 = vunpack.c.l.b16 %v6481
    %v6614 = vunpack.c.l.b16 %v6482
    %v6615 = vunpack.c.l.b16 %v6483
    %v6616 = vunpack.c.l.b16 %v6484
    %v6617 = vunpack.c.l.b16 %v6485
    %v6618 = vunpack.c.l.b16 %v6486
    %v6619 = vunpack.c.l.b16 %v6487
    %v6620 = vunpack.c.l.b16 %v6488
    %v6621 = vunpack.c.l.b16 %v6489
    %v6622 = vunpack.c.l.b16 %v6490
    %v6623 = vunpack.c.l.b16 %v6491
    %v6624 = vpack.c.b16 %v6561, %v6560
    %v6625 = vpack.c.b16 %v6563, %v6562
    %v6626 = vpack.c.b16 %v6565, %v6564
    %v6627 = vpack.c.b16 %v6567, %v6566
    %v6628 = vpack.c.b16 %v6569, %v6568
    %v6629 = vpack.c.b16 %v6571, %v6570
    %v6630 = vpack.c.b16 %v6573, %v6572
    %v6631 = vpack.c.b16 %v6575, %v6574
    %v6632 = vpack.c.b16 %v6577, %v6576
    %v6633 = vpack.c.b16 %v6579, %v6578
    %v6634 = vpack.c.b16 %v6581, %v6580
    %v6635 = vpack.c.b16 %v6583, %v6582
    %v6636 = vpack.c.b16 %v6585, %v6584
    %v6637 = vpack.c.b16 %v6587, %v6586
    %v6638 = vpack.c.b16 %v6589, %v6588
    %v6639 = vpack.c.b16 %v6591, %v6590
    %v6640 = vpack.c.b16 %v6593, %v6592
    %v6641 = vpack.c.b16 %v6595, %v6594
    %v6642 = vpack.c.b16 %v6597, %v6596
    %v6643 = vpack.c.b16 %v6599, %v6598
    %v6644 = vpack.c.b16 %v6601, %v6600
    %v6645 = vpack.c.b16 %v6603, %v6602
    %v6646 = vpack.c.b16 %v6605, %v6604
    %v6647 = vpack.c.b16 %v6607, %v6606
    %v6648 = vpack.c.b16 %v6609, %v6608
    %v6649 = vpack.c.b16 %v6611, %v6610
    %v6650 = vpack.c.b16 %v6613, %v6612
    %v6651 = vpack.c.b16 %v6615, %v6614
    %v6652 = vpack.c.b16 %v6617, %v6616
    %v6653 = vpack.c.b16 %v6619, %v6618
    %v6654 = vpack.c.b16 %v6621, %v6620
    %v6655 = vpack.c.b16 %v6623, %v6622
    %6688 = vmatpush.bf16.msra.mxu0 %v6631
    %6689 = vmatpush.bf16.msra.mxu0 %v6630
    %6690 = vmatpush.bf16.msra.mxu0 %v6629
    %6691 = vmatpush.bf16.msra.mxu0 %v6628
    %6692 = vmatpush.bf16.msra.mxu0 %v6627
    %6693 = vmatpush.bf16.msra.mxu0 %v6626
    %6694 = vmatpush.bf16.msra.mxu0 %v6625
    %6695 = vmatpush.bf16.msra.mxu0 %v6624
    %6696 = vmatmul.bf16.gmra.mxu0 %v6414
    %v6697 = vpop.f32.mrf.mxu0
    %v6698 = vadd.f32 %v6494, %v6697
    %v6699 = vpop.f32.mrf.mxu0
    %6700 = vdwg.mxu0
    %6701 = vmatpush.bf16.msra.mxu0 %v6639
    %6702 = vmatpush.bf16.msra.mxu0 %v6638
    %6703 = vmatpush.bf16.msra.mxu0 %v6637
    %6704 = vmatpush.bf16.msra.mxu0 %v6636
    %6705 = vmatpush.bf16.msra.mxu0 %v6635
    %6706 = vmatpush.bf16.msra.mxu0 %v6634
    %6707 = vmatpush.bf16.msra.mxu0 %v6633
    %6708 = vmatpush.bf16.msra.mxu0 %v6632
    %6709 = vmatmul.bf16.gmra.mxu0 %v6422
    %v6710 = vpop.f32.mrf.mxu0
    %v6711 = vadd.f32 %v6698, %v6710
    %v6712 = vpop.f32.mrf.mxu0
    %6713 = vdwg.mxu0
    %6714 = vmatpush.bf16.msra.mxu0 %v6647
    %6715 = vmatpush.bf16.msra.mxu0 %v6646
    %6716 = vmatpush.bf16.msra.mxu0 %v6645
    %6717 = vmatpush.bf16.msra.mxu0 %v6644
    %6718 = vmatpush.bf16.msra.mxu0 %v6643
    %6719 = vmatpush.bf16.msra.mxu0 %v6642
    %6720 = vmatpush.bf16.msra.mxu0 %v6641
    %6721 = vmatpush.bf16.msra.mxu0 %v6640
    %6722 = vmatmul.bf16.gmra.mxu0 %v6423
    %v6723 = vpop.f32.mrf.mxu0
    %v6724 = vadd.f32 %v6711, %v6723
    %v6725 = vpop.f32.mrf.mxu0
    %6726 = vdwg.mxu0
    %6727 = vmatpush.bf16.msra.mxu0 %v6655
    %6728 = vmatpush.bf16.msra.mxu0 %v6654
    %6729 = vmatpush.bf16.msra.mxu0 %v6653
    %6730 = vmatpush.bf16.msra.mxu0 %v6652
    %6731 = vmatpush.bf16.msra.mxu0 %v6651
    %6732 = vmatpush.bf16.msra.mxu0 %v6650
    %6733 = vmatpush.bf16.msra.mxu0 %v6649
    %6734 = vmatpush.bf16.msra.mxu0 %v6648
    %6735 = vmatmul.bf16.gmra.mxu0 %v6424
    %v6736 = vpop.f32.mrf.mxu0
    %v6737 = vadd.f32 %v6724, %v6736
    %v6738 = vpop.f32.mrf.mxu0
    %6739 = vdwg.mxu0
    %v6740 = vand.u32 2147483647, %v6737
    %v6741 = vsub.f32 0.0, %v6740
    %v6742 = vmul.f32 %v6741, 1.442695
    %v6743 = vpow.pop %v6742
    %v6744 = vadd.f32 %v6743, 1.0
    %v6745 = vrcp.pop %v6744
    %v6746 = vmul.f32 %v6744, %v6745
    %v6747 = vsub.f32 1.0, %v6746
    %v6748 = vmul.f32 %v6745, %v6747
    %v6749 = vadd.f32 %v6745, %v6748
    %vm6750 = vweird.f32 %v6744
    %vm6751 = vweird.f32 %v6745
    %vm6752 = vmor %vm6750, %vm6751
    %v6753 = vsel %vm6752, %v6745, %v6749
    %v6754 = vand.u32 2147483647, %v6744
    %vm6755 = vcmp.eq.f32.partialorder %v6754, 8.507059e+37
    %v6756 = vand.u32 %v6744, 2147483648
    %v6757 = vor.u32 1.1754944e-38, %v6756
    %v6758 = vsel %vm6755, %v6757, %v6753
    %v6759 = vmul.f32 1.0, %v6758
    %vm6760 = vcmp.ge.f32.partialorder %v6737, 0.0
    %v6761 = vmul.f32 %v6743, %v6759
    %v6762 = vsel %vm6760, %v6759, %v6761
    %6763 = vst [vmem:[%s13] sm:$0xff] %v6762
    // Predicated region
    $region102: #{forward.1} parent=1 // pred_check
      _
    $region103: #{forward.1} parent=1 // pred_check_branch
      %6765 = sbr.rel (0) target = $region105
    $region104: #{forward.1} parent=1 // pred_region
      _
    $region105: #{forward.1} parent=1 // pred_fallthru
      _
    // Predicated region
    $region106: #{forward.1} parent=1 // pred_check
      _
    $region107: #{forward.1} parent=1 // pred_check_branch
      %6767 = sbr.rel (0) target = $region109
    $region108: #{forward.1} parent=1 // pred_region
      _
    $region109: #{forward.1} parent=1 // pred_fallthru
      _
    %6768 = vsyncpa [#allocation3], 1
    %6769 = vsyncpa [#allocation5], 1
    %6770 = vsyncpa [#allocation8], 1
    %6771 = vsyncpa [#allocation11], 1
    %6772 = vsyncpa [#allocation14], 1
    %6773 = vsyncpa [#allocation17], 1
    %6774 = vsyncpa [#allocation20], 1

</llo_original>
